<compile_context>
chip_gen: v6e
topology: v6e:2x2x1
jax: 0.10.0
libtpu: 0.0.40
codegen_flags: <defaults>
</compile_context>

<pallas_src>
import jax
import jax.numpy as jnp
from jax.experimental import pallas as pl
from jax.experimental.pallas import tpu as pltpu


def _round_up(x, m):
    return (x + m - 1) // m * m


def lstm_classifier_kernel(x_ref,        # (T, Bb, E)   f32
                           wih_ref,      # (E, 8*Hp)    bf16  [fwd 4Hp | bwd 4Hp]
                           b_ref,        # (1, 8*Hp)    f32   fused b_ih+b_hh, both dirs
                           whh_f_ref,    # (Hp, 4*Hp)   bf16
                           whh_b_ref,    # (Hp, 4*Hp)   bf16
                           wdec_f_ref,   # (Hp, Lp)     bf16
                           wdec_b_ref,   # (Hp, Lp)     bf16
                           bdec_ref,     # (1, Lp)      f32
                           out_ref,      # (Bb, Lp)     f32
                           xp_ref):      # scratch (T, Bb, 8*Hp) f32
    T, Bb, E = x_ref.shape
    Hp = whh_f_ref.shape[0]
    G = 4 * Hp

    # ---- Phase 1: hoisted input projection -----------------------------------
    # One MXU-friendly GEMM for all timesteps and BOTH directions (8*Hp wide),
    # biases added here once (not per step, not re-broadcast inside the loop).
    x_flat = x_ref[...].reshape(T * Bb, E).astype(jnp.bfloat16)
    xp = jnp.dot(x_flat, wih_ref[...], preferred_element_type=jnp.float32)
    xp = xp + b_ref[...]
    xp_ref[...] = xp.reshape(T, Bb, 2 * G)

    whh_f = whh_f_ref[...]
    whh_b = whh_b_ref[...]

    def cell(pre, c):
        # Hp is a multiple of 128 -> every gate slice is lane-aligned.
        i = jax.nn.sigmoid(pre[:, 0 * Hp:1 * Hp])
        f = jax.nn.sigmoid(pre[:, 1 * Hp:2 * Hp])
        g = jnp.tanh(pre[:, 2 * Hp:3 * Hp])
        o = jax.nn.sigmoid(pre[:, 3 * Hp:4 * Hp])
        c_new = f * c + i * g
        h_new = o * jnp.tanh(c_new)
        return h_new, c_new

    zeros = jnp.zeros((Bb, Hp), jnp.float32)
    neg_inf = jnp.full((Bb, Hp), -jnp.inf, jnp.float32)   # safe: T >= 1

    # ---- Phase 2: fused fwd+bwd recurrence, fully unrolled --------------------
    def step(t, carry):
        h_f, c_f, m_f, h_b, c_b, m_b = carry
        xp_f = xp_ref[t]                 # (Bb, 8Hp); fwd half used
        xp_b = xp_ref[T - 1 - t]         # backward direction walks reversed time
        pre_f = xp_f[:, :G] + jnp.dot(h_f.astype(jnp.bfloat16), whh_f,
                                      preferred_element_type=jnp.float32)
        pre_b = xp_b[:, G:] + jnp.dot(h_b.astype(jnp.bfloat16), whh_b,
                                      preferred_element_type=jnp.float32)
        h_f, c_f = cell(pre_f, c_f)
        h_b, c_b = cell(pre_b, c_b)
        return (h_f, c_f, jnp.maximum(m_f, h_f),
                h_b, c_b, jnp.maximum(m_b, h_b))

    carry = (zeros, zeros, neg_inf, zeros, zeros, neg_inf)
    _, _, m_f, _, _, m_b = jax.lax.fori_loop(0, T, step, carry, unroll=True)

    # ---- Phase 3: max-pooled features -> decoder (two dots, no concat) --------
    logits = (jnp.dot(m_f.astype(jnp.bfloat16), wdec_f_ref[...],
                      preferred_element_type=jnp.float32)
              + jnp.dot(m_b.astype(jnp.bfloat16), wdec_b_ref[...],
                        preferred_element_type=jnp.float32)
              + bdec_ref[...])
    out_ref[...] = logits


# ------------------------------ parameter handling ------------------------------

def init_params(key, vocab_size, embedding_dim, hidden_dim, label_size):
    """PyTorch-layout parameters (same semantics as nn.LSTM / nn.Linear)."""
    ks = jax.random.split(key, 12)
    k = 1.0 / jnp.sqrt(jnp.float32(hidden_dim))
    u = lambda kk, shape: jax.random.uniform(kk, shape, jnp.float32, -k, k)
    H4 = 4 * hidden_dim
    return {
        "embedding": jax.random.normal(ks[0], (vocab_size, embedding_dim), jnp.float32),
        "w_ih_f": u(ks[1], (H4, embedding_dim)),
        "w_hh_f": u(ks[2], (H4, hidden_dim)),
        "b_ih_f": u(ks[3], (H4,)),
        "b_hh_f": u(ks[4], (H4,)),
        "w_ih_b": u(ks[5], (H4, embedding_dim)),
        "w_hh_b": u(ks[6], (H4, hidden_dim)),
        "b_ih_b": u(ks[7], (H4,)),
        "b_hh_b": u(ks[8], (H4,)),
        "w_dec": u(ks[9], (label_size, 2 * hidden_dim)),
        "b_dec": u(ks[10], (label_size,)),
    }


def pack_kernel_params(params):
    """One-time packing into kernel layout: transpose, pad H/L to lane multiples,
    stack fwd/bwd Wih along the output axis, fuse biases, cast MXU weights to bf16."""
    H = params["w_hh_f"].shape[1]
    E = params["w_ih_f"].shape[1]
    L = params["w_dec"].shape[0]
    Hp = _round_up(H, 128)
    Lp = _round_up(L, 128)

    def pad_ih(w):                       # (4H, E) -> (E, 4Hp)
        out = jnp.zeros((E, 4 * Hp), jnp.float32)
        for g in range(4):
            out = out.at[:, g * Hp:g * Hp + H].set(w[g * H:(g + 1) * H, :].T)
        return out

    def pad_hh(w):                       # (4H, H) -> (Hp, 4Hp)
        out = jnp.zeros((Hp, 4 * Hp), jnp.float32)
        for g in range(4):
            out = out.at[:H, g * Hp:g * Hp + H].set(w[g * H:(g + 1) * H, :].T)
        return out

    def pad_b(b):                        # (4H,) -> (1, 4Hp)
        out = jnp.zeros((1, 4 * Hp), jnp.float32)
        for g in range(4):
            out = out.at[0, g * Hp:g * Hp + H].set(b[g * H:(g + 1) * H])
        return out

    wih = jnp.concatenate([pad_ih(params["w_ih_f"]),
                           pad_ih(params["w_ih_b"])], axis=1).astype(jnp.bfloat16)
    bias = jnp.concatenate([pad_b(params["b_ih_f"] + params["b_hh_f"]),
                            pad_b(params["b_ih_b"] + params["b_hh_b"])], axis=1)
    whh_f = pad_hh(params["w_hh_f"]).astype(jnp.bfloat16)
    whh_b = pad_hh(params["w_hh_b"]).astype(jnp.bfloat16)

    wdec = params["w_dec"]               # (L, 2H)
    wdec_f = jnp.zeros((Hp, Lp), jnp.float32).at[:H, :L].set(wdec[:, :H].T).astype(jnp.bfloat16)
    wdec_b = jnp.zeros((Hp, Lp), jnp.float32).at[:H, :L].set(wdec[:, H:].T).astype(jnp.bfloat16)
    bdec = jnp.zeros((1, Lp), jnp.float32).at[0, :L].set(params["b_dec"])

    return {"embedding": params["embedding"], "wih": wih, "bias": bias,
            "whh_f": whh_f, "whh_b": whh_b,
            "wdec_f": wdec_f, "wdec_b": wdec_b, "bdec": bdec,
            "H": H, "Hp": Hp, "L": L, "Lp": Lp, "E": E}


# ------------------------------ forward wrapper ------------------------------

def binary_classifier_forward(token_ids, kp):
    # TODO(synk): the embedding gather (jnp.take) stays in XLA; a dense Pallas
    # gather is not worthwhile at these sizes.
    emb = jnp.take(kp["embedding"], token_ids, axis=0)          # (B, T, E)
    B, T, E = emb.shape
    Hp, Lp, L = kp["Hp"], kp["Lp"], kp["L"]

    # batch grid: >=128-row blocks at real batch sizes, sublane-aligned otherwise
    B_blk = 128 if B >= 128 else _round_up(B, 8)
    B_pad = _round_up(B, B_blk)
    nb = B_pad // B_blk

    x = jnp.transpose(emb, (1, 0, 2)).astype(jnp.float32)        # (T, B, E)
    if B_pad != B:
        x = jnp.pad(x, ((0, 0), (0, B_pad - B), (0, 0)))

    const = lambda b: (0, 0)
    grid_spec = pltpu.PrefetchScalarGridSpec(
        num_scalar_prefetch=0,
        grid=(nb,),
        in_specs=[
            pl.BlockSpec((T, B_blk, E), lambda b: (0, b, 0)),    # x streamed per batch block
            pl.BlockSpec(kp["wih"].shape, const),
            pl.BlockSpec(kp["bias"].shape, const),
            pl.BlockSpec(kp["whh_f"].shape, const),
            pl.BlockSpec(kp["whh_b"].shape, const),
            pl.BlockSpec(kp["wdec_f"].shape, const),
            pl.BlockSpec(kp["wdec_b"].shape, const),
            pl.BlockSpec(kp["bdec"].shape, const),
        ],
        out_specs=pl.BlockSpec((B_blk, Lp), lambda b: (b, 0)),   # lane-dense padded output
        scratch_shapes=[pltpu.VMEM((T, B_blk, 8 * Hp), jnp.float32)],
    )
    # TODO(synk): for very large T the per-block (T, B_blk, ·) residency should be
    # chunked over time (emit_pipeline) to stay inside v7x's 64 MiB VMEM.
    out = pl.pallas_call(
        lstm_classifier_kernel,
        out_shape=jax.ShapeDtypeStruct((B_pad, Lp), jnp.float32),
        grid_spec=grid_spec,
        compiler_params=pltpu.CompilerParams(
            dimension_semantics=("parallel",),          # batch blocks split across TCs
            vmem_limit_bytes=32 * 1024 * 1024),
    )(x, kp["wih"], kp["bias"], kp["whh_f"], kp["whh_b"],
      kp["wdec_f"], kp["wdec_b"], kp["bdec"])
    return out[:B, :L]


# ------------------------------ pure-JAX reference ------------------------------

def reference_forward(token_ids, params):
    emb = jnp.take(params["embedding"], token_ids, axis=0)      # (B, T, E)
    B, T, E = emb.shape
    H = params["w_hh_f"].shape[1]

    def run_dir(xs, w_ih, w_hh, b):
        def step(carry, x_t):
            h, c = carry
            g = x_t @ w_ih.T + h @ w_hh.T + b
            i = jax.nn.sigmoid(g[:, 0 * H:1 * H])
            f = jax.nn.sigmoid(g[:, 1 * H:2 * H])
            gg = jnp.tanh(g[:, 2 * H:3 * H])
            o = jax.nn.sigmoid(g[:, 3 * H:4 * H])
            c = f * c + i * gg
            h = o * jnp.tanh(c)
            return (h, c), h
        init = (jnp.zeros((B, H)), jnp.zeros((B, H)))
        _, hs = jax.lax.scan(step, init, xs)
        return hs                                                # (T, B, H)

    xs = jnp.transpose(emb, (1, 0, 2))
    h_fwd = run_dir(xs, params["w_ih_f"], params["w_hh_f"],
                    params["b_ih_f"] + params["b_hh_f"])
    h_bwd = run_dir(xs[::-1], params["w_ih_b"], params["w_hh_b"],
                    params["b_ih_b"] + params["b_hh_b"])[::-1]
    lstm_out = jnp.concatenate([h_fwd, h_bwd], axis=-1)          # (T, B, 2H)
    pooled = jnp.max(lstm_out, axis=0)                            # (B, 2H)
    return pooled @ params["w_dec"].T + params["b_dec"]


if __name__ == "__main__":
    vocab_size, embedding_dim, hidden_dim, label_size = 50, 32, 32, 2
    batch, seq = 2, 8

    key = jax.random.PRNGKey(0)
    k_param, k_tok = jax.random.split(key)
    params = init_params(k_param, vocab_size, embedding_dim, hidden_dim, label_size)
    kparams = pack_kernel_params(params)        # kernel-layout packing done once
    token_ids = jax.random.randint(k_tok, (batch, seq), 0, vocab_size, dtype=jnp.int32)

    out = jax.block_until_ready(binary_classifier_forward(token_ids, kparams))
    ref = jax.block_until_ready(reference_forward(token_ids, params))

    assert out.shape == (batch, label_size)
    assert jnp.allclose(out, ref, atol=2e-2, rtol=2e-2), float(jnp.max(jnp.abs(out - ref)))

    print("KERNEL_OK")
</pallas_src>

<mosaic_0001>
module attributes {stable_mosaic.version = 11 : i64} {
  func.func @lstm_classifier_kernel(%arg0: i32, %arg1: memref<8x8x32xf32, #tpu.memory_space<vmem>>, %arg2: memref<32x1024xbf16, #tpu.memory_space<vmem>>, %arg3: memref<1x1024xf32, #tpu.memory_space<vmem>>, %arg4: memref<128x512xbf16, #tpu.memory_space<vmem>>, %arg5: memref<128x512xbf16, #tpu.memory_space<vmem>>, %arg6: memref<128x128xbf16, #tpu.memory_space<vmem>>, %arg7: memref<128x128xbf16, #tpu.memory_space<vmem>>, %arg8: memref<1x128xf32, #tpu.memory_space<vmem>>, %arg9: memref<8x128xf32, #tpu.memory_space<vmem>>, %arg10: memref<8x8x1024xf32, #tpu.memory_space<vmem>>) attributes {dimension_semantics = [#tpu.dimension_semantics<parallel>], iteration_bounds = array<i64: 1>, scalar_prefetch = 0 : i64, scratch_operands = 1 : i64, tpu.core_type = #tpu.core_type<tc>, window_params = [{transform_indices = @transform_0, window_bounds = array<i64: 8, 8, 32>}, {pipeline_mode = #tpu.pipeline_mode<synchronous>, transform_indices = @transform_1, window_bounds = array<i64: 32, 1024>}, {pipeline_mode = #tpu.pipeline_mode<synchronous>, transform_indices = @transform_2, window_bounds = array<i64: 1, 1024>}, {pipeline_mode = #tpu.pipeline_mode<synchronous>, transform_indices = @transform_3, window_bounds = array<i64: 128, 512>}, {pipeline_mode = #tpu.pipeline_mode<synchronous>, transform_indices = @transform_4, window_bounds = array<i64: 128, 512>}, {pipeline_mode = #tpu.pipeline_mode<synchronous>, transform_indices = @transform_5, window_bounds = array<i64: 128, 128>}, {pipeline_mode = #tpu.pipeline_mode<synchronous>, transform_indices = @transform_6, window_bounds = array<i64: 128, 128>}, {pipeline_mode = #tpu.pipeline_mode<synchronous>, transform_indices = @transform_7, window_bounds = array<i64: 1, 128>}, {transform_indices = @transform_8, window_bounds = array<i64: 8, 128>}]} {
    %c0 = arith.constant 0 : index
    %c0_0 = arith.constant 0 : index
    %c0_1 = arith.constant 0 : index
    %0 = vector.load %arg1[%c0, %c0_0, %c0_1] : memref<8x8x32xf32, #tpu.memory_space<vmem>>, vector<8x8x32xf32>
    %1 = vector.shape_cast %0 : vector<8x8x32xf32> to vector<64x32xf32>
    %2 = arith.truncf %1 : vector<64x32xf32> to vector<64x32xbf16>
    %c0_2 = arith.constant 0 : index
    %c0_3 = arith.constant 0 : index
    %3 = vector.load %arg2[%c0_2, %c0_3] : memref<32x1024xbf16, #tpu.memory_space<vmem>>, vector<32x1024xbf16>
    %cst = arith.constant dense<0.000000e+00> : vector<64x1024xf32>
    %4 = tpu.matmul %2, %3, %cst {dimension_numbers = #tpu.dot_dimension_numbers<[1], [0], [0], [1], [0, 0, 1, 1], [], []>} : vector<64x32xbf16>, vector<32x1024xbf16>, vector<64x1024xf32> -> vector<64x1024xf32>
    %c0_4 = arith.constant 0 : index
    %c0_5 = arith.constant 0 : index
    %5 = vector.load %arg3[%c0_4, %c0_5] : memref<1x1024xf32, #tpu.memory_space<vmem>>, vector<1x1024xf32>
    %6 = vector.broadcast %5 : vector<1x1024xf32> to vector<64x1024xf32>
    %7 = arith.addf %4, %6 : vector<64x1024xf32>
    %8 = vector.shape_cast %7 : vector<64x1024xf32> to vector<8x8x1024xf32>
    %c0_6 = arith.constant 0 : index
    %c0_7 = arith.constant 0 : index
    %c0_8 = arith.constant 0 : index
    %9 = vector.load %arg10[%c0_6, %c0_7, %c0_8] : memref<8x8x1024xf32, #tpu.memory_space<vmem>>, vector<8x8x1024xf32>
    tpu.vector_store %arg10[%c0_6, %c0_7, %c0_8], %8 {strides = array<i32>} : memref<8x8x1024xf32, #tpu.memory_space<vmem>>, vector<8x8x1024xf32>,
    %c0_9 = arith.constant 0 : index
    %c0_10 = arith.constant 0 : index
    %10 = vector.load %arg4[%c0_9, %c0_10] : memref<128x512xbf16, #tpu.memory_space<vmem>>, vector<128x512xbf16>
    %c0_11 = arith.constant 0 : index
    %c0_12 = arith.constant 0 : index
    %11 = vector.load %arg5[%c0_11, %c0_12] : memref<128x512xbf16, #tpu.memory_space<vmem>>, vector<128x512xbf16>
    %cst_13 = arith.constant 0.000000e+00 : f32
    %12 = vector.broadcast %cst_13 : f32 to vector<8x128xf32>
    %cst_14 = arith.constant 0xFF800000 : f32
    %13 = vector.broadcast %cst_14 : f32 to vector<8x128xf32>
    %c0_i32 = arith.constant 0 : i32
    %14 = arith.index_cast %c0_i32 : i32 to index
    %c0_15 = arith.constant 0 : index
    %c0_16 = arith.constant 0 : index
    %15 = vector.load %arg10[%14, %c0_15, %c0_16] : memref<8x8x1024xf32, #tpu.memory_space<vmem>>, vector<1x8x1024xf32>
    %16 = vector.shape_cast %15 : vector<1x8x1024xf32> to vector<8x1024xf32>
    %c7_i32 = arith.constant 7 : i32
    %17 = arith.subi %c7_i32, %c0_i32 : i32
    %18 = arith.index_cast %17 : i32 to index
    %c0_17 = arith.constant 0 : index
    %c0_18 = arith.constant 0 : index
    %19 = vector.load %arg10[%18, %c0_17, %c0_18] : memref<8x8x1024xf32, #tpu.memory_space<vmem>>, vector<1x8x1024xf32>
    %20 = vector.shape_cast %19 : vector<1x8x1024xf32> to vector<8x1024xf32>
    %21 = vector.extract_strided_slice %16 {offsets = [0, 0], sizes = [8, 512], strides = [1, 1]} : vector<8x1024xf32> to vector<8x512xf32>
    %22 = arith.truncf %12 : vector<8x128xf32> to vector<8x128xbf16>
    %cst_19 = arith.constant dense<0.000000e+00> : vector<8x512xf32>
    %23 = tpu.matmul %22, %10, %cst_19 {dimension_numbers = #tpu.dot_dimension_numbers<[1], [0], [0], [1], [0, 0, 1, 1], [], []>} : vector<8x128xbf16>, vector<128x512xbf16>, vector<8x512xf32> -> vector<8x512xf32>
    %24 = arith.addf %21, %23 : vector<8x512xf32>
    %25 = vector.extract_strided_slice %20 {offsets = [0, 512], sizes = [8, 512], strides = [1, 1]} : vector<8x1024xf32> to vector<8x512xf32>
    %26 = arith.truncf %12 : vector<8x128xf32> to vector<8x128xbf16>
    %cst_20 = arith.constant dense<0.000000e+00> : vector<8x512xf32>
    %27 = tpu.matmul %26, %11, %cst_20 {dimension_numbers = #tpu.dot_dimension_numbers<[1], [0], [0], [1], [0, 0, 1, 1], [], []>} : vector<8x128xbf16>, vector<128x512xbf16>, vector<8x512xf32> -> vector<8x512xf32>
    %28 = arith.addf %25, %27 : vector<8x512xf32>
    %29 = vector.extract_strided_slice %24 {offsets = [0, 0], sizes = [8, 128], strides = [1, 1]} : vector<8x512xf32> to vector<8x128xf32>
    %30 = arith.negf %29 : vector<8x128xf32>
    %31 = math.exp %30 : vector<8x128xf32>
    %cst_21 = arith.constant 1.000000e+00 : f32
    %32 = vector.broadcast %cst_21 : f32 to vector<8x128xf32>
    %33 = arith.addf %32, %31 : vector<8x128xf32>
    %34 = arith.divf %32, %33 : vector<8x128xf32>
    %35 = vector.extract_strided_slice %24 {offsets = [0, 128], sizes = [8, 128], strides = [1, 1]} : vector<8x512xf32> to vector<8x128xf32>
    %36 = arith.negf %35 : vector<8x128xf32>
    %37 = math.exp %36 : vector<8x128xf32>
    %cst_22 = arith.constant 1.000000e+00 : f32
    %38 = vector.broadcast %cst_22 : f32 to vector<8x128xf32>
    %39 = arith.addf %38, %37 : vector<8x128xf32>
    %40 = arith.divf %38, %39 : vector<8x128xf32>
    %41 = vector.extract_strided_slice %24 {offsets = [0, 256], sizes = [8, 128], strides = [1, 1]} : vector<8x512xf32> to vector<8x128xf32>
    %42 = math.tanh %41 : vector<8x128xf32>
    %43 = vector.extract_strided_slice %24 {offsets = [0, 384], sizes = [8, 128], strides = [1, 1]} : vector<8x512xf32> to vector<8x128xf32>
    %44 = arith.negf %43 : vector<8x128xf32>
    %45 = math.exp %44 : vector<8x128xf32>
    %cst_23 = arith.constant 1.000000e+00 : f32
    %46 = vector.broadcast %cst_23 : f32 to vector<8x128xf32>
    %47 = arith.addf %46, %45 : vector<8x128xf32>
    %48 = arith.divf %46, %47 : vector<8x128xf32>
    %49 = arith.mulf %40, %12 : vector<8x128xf32>
    %50 = arith.mulf %34, %42 : vector<8x128xf32>
    %51 = arith.addf %49, %50 : vector<8x128xf32>
    %52 = math.tanh %51 : vector<8x128xf32>
    %53 = arith.mulf %48, %52 : vector<8x128xf32>
    %54 = vector.extract_strided_slice %28 {offsets = [0, 0], sizes = [8, 128], strides = [1, 1]} : vector<8x512xf32> to vector<8x128xf32>
    %55 = arith.negf %54 : vector<8x128xf32>
    %56 = math.exp %55 : vector<8x128xf32>
    %cst_24 = arith.constant 1.000000e+00 : f32
    %57 = vector.broadcast %cst_24 : f32 to vector<8x128xf32>
    %58 = arith.addf %57, %56 : vector<8x128xf32>
    %59 = arith.divf %57, %58 : vector<8x128xf32>
    %60 = vector.extract_strided_slice %28 {offsets = [0, 128], sizes = [8, 128], strides = [1, 1]} : vector<8x512xf32> to vector<8x128xf32>
    %61 = arith.negf %60 : vector<8x128xf32>
    %62 = math.exp %61 : vector<8x128xf32>
    %cst_25 = arith.constant 1.000000e+00 : f32
    %63 = vector.broadcast %cst_25 : f32 to vector<8x128xf32>
    %64 = arith.addf %63, %62 : vector<8x128xf32>
    %65 = arith.divf %63, %64 : vector<8x128xf32>
    %66 = vector.extract_strided_slice %28 {offsets = [0, 256], sizes = [8, 128], strides = [1, 1]} : vector<8x512xf32> to vector<8x128xf32>
    %67 = math.tanh %66 : vector<8x128xf32>
    %68 = vector.extract_strided_slice %28 {offsets = [0, 384], sizes = [8, 128], strides = [1, 1]} : vector<8x512xf32> to vector<8x128xf32>
    %69 = arith.negf %68 : vector<8x128xf32>
    %70 = math.exp %69 : vector<8x128xf32>
    %cst_26 = arith.constant 1.000000e+00 : f32
    %71 = vector.broadcast %cst_26 : f32 to vector<8x128xf32>
    %72 = arith.addf %71, %70 : vector<8x128xf32>
    %73 = arith.divf %71, %72 : vector<8x128xf32>
    %74 = arith.mulf %65, %12 : vector<8x128xf32>
    %75 = arith.mulf %59, %67 : vector<8x128xf32>
    %76 = arith.addf %74, %75 : vector<8x128xf32>
    %77 = math.tanh %76 : vector<8x128xf32>
    %78 = arith.mulf %73, %77 : vector<8x128xf32>
    %79 = arith.maximumf %13, %53 : vector<8x128xf32>
    %80 = arith.maximumf %13, %78 : vector<8x128xf32>
    %c1_i32 = arith.constant 1 : i32
    %81 = arith.index_cast %c1_i32 : i32 to index
    %c0_27 = arith.constant 0 : index
    %c0_28 = arith.constant 0 : index
    %82 = vector.load %arg10[%81, %c0_27, %c0_28] : memref<8x8x1024xf32, #tpu.memory_space<vmem>>, vector<1x8x1024xf32>
    %83 = vector.shape_cast %82 : vector<1x8x1024xf32> to vector<8x1024xf32>
    %c7_i32_29 = arith.constant 7 : i32
    %84 = arith.subi %c7_i32_29, %c1_i32 : i32
    %85 = arith.index_cast %84 : i32 to index
    %c0_30 = arith.constant 0 : index
    %c0_31 = arith.constant 0 : index
    %86 = vector.load %arg10[%85, %c0_30, %c0_31] : memref<8x8x1024xf32, #tpu.memory_space<vmem>>, vector<1x8x1024xf32>
    %87 = vector.shape_cast %86 : vector<1x8x1024xf32> to vector<8x1024xf32>
    %88 = vector.extract_strided_slice %83 {offsets = [0, 0], sizes = [8, 512], strides = [1, 1]} : vector<8x1024xf32> to vector<8x512xf32>
    %89 = arith.truncf %53 : vector<8x128xf32> to vector<8x128xbf16>
    %cst_32 = arith.constant dense<0.000000e+00> : vector<8x512xf32>
    %90 = tpu.matmul %89, %10, %cst_32 {dimension_numbers = #tpu.dot_dimension_numbers<[1], [0], [0], [1], [0, 0, 1, 1], [], []>} : vector<8x128xbf16>, vector<128x512xbf16>, vector<8x512xf32> -> vector<8x512xf32>
    %91 = arith.addf %88, %90 : vector<8x512xf32>
    %92 = vector.extract_strided_slice %87 {offsets = [0, 512], sizes = [8, 512], strides = [1, 1]} : vector<8x1024xf32> to vector<8x512xf32>
    %93 = arith.truncf %78 : vector<8x128xf32> to vector<8x128xbf16>
    %cst_33 = arith.constant dense<0.000000e+00> : vector<8x512xf32>
    %94 = tpu.matmul %93, %11, %cst_33 {dimension_numbers = #tpu.dot_dimension_numbers<[1], [0], [0], [1], [0, 0, 1, 1], [], []>} : vector<8x128xbf16>, vector<128x512xbf16>, vector<8x512xf32> -> vector<8x512xf32>
    %95 = arith.addf %92, %94 : vector<8x512xf32>
    %96 = vector.extract_strided_slice %91 {offsets = [0, 0], sizes = [8, 128], strides = [1, 1]} : vector<8x512xf32> to vector<8x128xf32>
    %97 = arith.negf %96 : vector<8x128xf32>
    %98 = math.exp %97 : vector<8x128xf32>
    %cst_34 = arith.constant 1.000000e+00 : f32
    %99 = vector.broadcast %cst_34 : f32 to vector<8x128xf32>
    %100 = arith.addf %99, %98 : vector<8x128xf32>
    %101 = arith.divf %99, %100 : vector<8x128xf32>
    %102 = vector.extract_strided_slice %91 {offsets = [0, 128], sizes = [8, 128], strides = [1, 1]} : vector<8x512xf32> to vector<8x128xf32>
    %103 = arith.negf %102 : vector<8x128xf32>
    %104 = math.exp %103 : vector<8x128xf32>
    %cst_35 = arith.constant 1.000000e+00 : f32
    %105 = vector.broadcast %cst_35 : f32 to vector<8x128xf32>
    %106 = arith.addf %105, %104 : vector<8x128xf32>
    %107 = arith.divf %105, %106 : vector<8x128xf32>
    %108 = vector.extract_strided_slice %91 {offsets = [0, 256], sizes = [8, 128], strides = [1, 1]} : vector<8x512xf32> to vector<8x128xf32>
    %109 = math.tanh %108 : vector<8x128xf32>
    %110 = vector.extract_strided_slice %91 {offsets = [0, 384], sizes = [8, 128], strides = [1, 1]} : vector<8x512xf32> to vector<8x128xf32>
    %111 = arith.negf %110 : vector<8x128xf32>
    %112 = math.exp %111 : vector<8x128xf32>
    %cst_36 = arith.constant 1.000000e+00 : f32
    %113 = vector.broadcast %cst_36 : f32 to vector<8x128xf32>
    %114 = arith.addf %113, %112 : vector<8x128xf32>
    %115 = arith.divf %113, %114 : vector<8x128xf32>
    %116 = arith.mulf %107, %51 : vector<8x128xf32>
    %117 = arith.mulf %101, %109 : vector<8x128xf32>
    %118 = arith.addf %116, %117 : vector<8x128xf32>
    %119 = math.tanh %118 : vector<8x128xf32>
    %120 = arith.mulf %115, %119 : vector<8x128xf32>
    %121 = vector.extract_strided_slice %95 {offsets = [0, 0], sizes = [8, 128], strides = [1, 1]} : vector<8x512xf32> to vector<8x128xf32>
    %122 = arith.negf %121 : vector<8x128xf32>
    %123 = math.exp %122 : vector<8x128xf32>
    %cst_37 = arith.constant 1.000000e+00 : f32
    %124 = vector.broadcast %cst_37 : f32 to vector<8x128xf32>
    %125 = arith.addf %124, %123 : vector<8x128xf32>
    %126 = arith.divf %124, %125 : vector<8x128xf32>
    %127 = vector.extract_strided_slice %95 {offsets = [0, 128], sizes = [8, 128], strides = [1, 1]} : vector<8x512xf32> to vector<8x128xf32>
    %128 = arith.negf %127 : vector<8x128xf32>
    %129 = math.exp %128 : vector<8x128xf32>
    %cst_38 = arith.constant 1.000000e+00 : f32
    %130 = vector.broadcast %cst_38 : f32 to vector<8x128xf32>
    %131 = arith.addf %130, %129 : vector<8x128xf32>
    %132 = arith.divf %130, %131 : vector<8x128xf32>
    %133 = vector.extract_strided_slice %95 {offsets = [0, 256], sizes = [8, 128], strides = [1, 1]} : vector<8x512xf32> to vector<8x128xf32>
    %134 = math.tanh %133 : vector<8x128xf32>
    %135 = vector.extract_strided_slice %95 {offsets = [0, 384], sizes = [8, 128], strides = [1, 1]} : vector<8x512xf32> to vector<8x128xf32>
    %136 = arith.negf %135 : vector<8x128xf32>
    %137 = math.exp %136 : vector<8x128xf32>
    %cst_39 = arith.constant 1.000000e+00 : f32
    %138 = vector.broadcast %cst_39 : f32 to vector<8x128xf32>
    %139 = arith.addf %138, %137 : vector<8x128xf32>
    %140 = arith.divf %138, %139 : vector<8x128xf32>
    %141 = arith.mulf %132, %76 : vector<8x128xf32>
    %142 = arith.mulf %126, %134 : vector<8x128xf32>
    %143 = arith.addf %141, %142 : vector<8x128xf32>
    %144 = math.tanh %143 : vector<8x128xf32>
    %145 = arith.mulf %140, %144 : vector<8x128xf32>
    %146 = arith.maximumf %79, %120 : vector<8x128xf32>
    %147 = arith.maximumf %80, %145 : vector<8x128xf32>
    %c2_i32 = arith.constant 2 : i32
    %148 = arith.index_cast %c2_i32 : i32 to index
    %c0_40 = arith.constant 0 : index
    %c0_41 = arith.constant 0 : index
    %149 = vector.load %arg10[%148, %c0_40, %c0_41] : memref<8x8x1024xf32, #tpu.memory_space<vmem>>, vector<1x8x1024xf32>
    %150 = vector.shape_cast %149 : vector<1x8x1024xf32> to vector<8x1024xf32>
    %c7_i32_42 = arith.constant 7 : i32
    %151 = arith.subi %c7_i32_42, %c2_i32 : i32
    %152 = arith.index_cast %151 : i32 to index
    %c0_43 = arith.constant 0 : index
    %c0_44 = arith.constant 0 : index
    %153 = vector.load %arg10[%152, %c0_43, %c0_44] : memref<8x8x1024xf32, #tpu.memory_space<vmem>>, vector<1x8x1024xf32>
    %154 = vector.shape_cast %153 : vector<1x8x1024xf32> to vector<8x1024xf32>
    %155 = vector.extract_strided_slice %150 {offsets = [0, 0], sizes = [8, 512], strides = [1, 1]} : vector<8x1024xf32> to vector<8x512xf32>
    %156 = arith.truncf %120 : vector<8x128xf32> to vector<8x128xbf16>
    %cst_45 = arith.constant dense<0.000000e+00> : vector<8x512xf32>
    %157 = tpu.matmul %156, %10, %cst_45 {dimension_numbers = #tpu.dot_dimension_numbers<[1], [0], [0], [1], [0, 0, 1, 1], [], []>} : vector<8x128xbf16>, vector<128x512xbf16>, vector<8x512xf32> -> vector<8x512xf32>
    %158 = arith.addf %155, %157 : vector<8x512xf32>
    %159 = vector.extract_strided_slice %154 {offsets = [0, 512], sizes = [8, 512], strides = [1, 1]} : vector<8x1024xf32> to vector<8x512xf32>
    %160 = arith.truncf %145 : vector<8x128xf32> to vector<8x128xbf16>
    %cst_46 = arith.constant dense<0.000000e+00> : vector<8x512xf32>
    %161 = tpu.matmul %160, %11, %cst_46 {dimension_numbers = #tpu.dot_dimension_numbers<[1], [0], [0], [1], [0, 0, 1, 1], [], []>} : vector<8x128xbf16>, vector<128x512xbf16>, vector<8x512xf32> -> vector<8x512xf32>
    %162 = arith.addf %159, %161 : vector<8x512xf32>
    %163 = vector.extract_strided_slice %158 {offsets = [0, 0], sizes = [8, 128], strides = [1, 1]} : vector<8x512xf32> to vector<8x128xf32>
    %164 = arith.negf %163 : vector<8x128xf32>
    %165 = math.exp %164 : vector<8x128xf32>
    %cst_47 = arith.constant 1.000000e+00 : f32
    %166 = vector.broadcast %cst_47 : f32 to vector<8x128xf32>
    %167 = arith.addf %166, %165 : vector<8x128xf32>
    %168 = arith.divf %166, %167 : vector<8x128xf32>
    %169 = vector.extract_strided_slice %158 {offsets = [0, 128], sizes = [8, 128], strides = [1, 1]} : vector<8x512xf32> to vector<8x128xf32>
    %170 = arith.negf %169 : vector<8x128xf32>
    %171 = math.exp %170 : vector<8x128xf32>
    %cst_48 = arith.constant 1.000000e+00 : f32
    %172 = vector.broadcast %cst_48 : f32 to vector<8x128xf32>
    %173 = arith.addf %172, %171 : vector<8x128xf32>
    %174 = arith.divf %172, %173 : vector<8x128xf32>
    %175 = vector.extract_strided_slice %158 {offsets = [0, 256], sizes = [8, 128], strides = [1, 1]} : vector<8x512xf32> to vector<8x128xf32>
    %176 = math.tanh %175 : vector<8x128xf32>
    %177 = vector.extract_strided_slice %158 {offsets = [0, 384], sizes = [8, 128], strides = [1, 1]} : vector<8x512xf32> to vector<8x128xf32>
    %178 = arith.negf %177 : vector<8x128xf32>
    %179 = math.exp %178 : vector<8x128xf32>
    %cst_49 = arith.constant 1.000000e+00 : f32
    %180 = vector.broadcast %cst_49 : f32 to vector<8x128xf32>
    %181 = arith.addf %180, %179 : vector<8x128xf32>
    %182 = arith.divf %180, %181 : vector<8x128xf32>
    %183 = arith.mulf %174, %118 : vector<8x128xf32>
    %184 = arith.mulf %168, %176 : vector<8x128xf32>
    %185 = arith.addf %183, %184 : vector<8x128xf32>
    %186 = math.tanh %185 : vector<8x128xf32>
    %187 = arith.mulf %182, %186 : vector<8x128xf32>
    %188 = vector.extract_strided_slice %162 {offsets = [0, 0], sizes = [8, 128], strides = [1, 1]} : vector<8x512xf32> to vector<8x128xf32>
    %189 = arith.negf %188 : vector<8x128xf32>
    %190 = math.exp %189 : vector<8x128xf32>
    %cst_50 = arith.constant 1.000000e+00 : f32
    %191 = vector.broadcast %cst_50 : f32 to vector<8x128xf32>
    %192 = arith.addf %191, %190 : vector<8x128xf32>
    %193 = arith.divf %191, %192 : vector<8x128xf32>
    %194 = vector.extract_strided_slice %162 {offsets = [0, 128], sizes = [8, 128], strides = [1, 1]} : vector<8x512xf32> to vector<8x128xf32>
    %195 = arith.negf %194 : vector<8x128xf32>
    %196 = math.exp %195 : vector<8x128xf32>
    %cst_51 = arith.constant 1.000000e+00 : f32
    %197 = vector.broadcast %cst_51 : f32 to vector<8x128xf32>
    %198 = arith.addf %197, %196 : vector<8x128xf32>
    %199 = arith.divf %197, %198 : vector<8x128xf32>
    %200 = vector.extract_strided_slice %162 {offsets = [0, 256], sizes = [8, 128], strides = [1, 1]} : vector<8x512xf32> to vector<8x128xf32>
    %201 = math.tanh %200 : vector<8x128xf32>
    %202 = vector.extract_strided_slice %162 {offsets = [0, 384], sizes = [8, 128], strides = [1, 1]} : vector<8x512xf32> to vector<8x128xf32>
    %203 = arith.negf %202 : vector<8x128xf32>
    %204 = math.exp %203 : vector<8x128xf32>
    %cst_52 = arith.constant 1.000000e+00 : f32
    %205 = vector.broadcast %cst_52 : f32 to vector<8x128xf32>
    %206 = arith.addf %205, %204 : vector<8x128xf32>
    %207 = arith.divf %205, %206 : vector<8x128xf32>
    %208 = arith.mulf %199, %143 : vector<8x128xf32>
    %209 = arith.mulf %193, %201 : vector<8x128xf32>
    %210 = arith.addf %208, %209 : vector<8x128xf32>
    %211 = math.tanh %210 : vector<8x128xf32>
    %212 = arith.mulf %207, %211 : vector<8x128xf32>
    %213 = arith.maximumf %146, %187 : vector<8x128xf32>
    %214 = arith.maximumf %147, %212 : vector<8x128xf32>
    %c3_i32 = arith.constant 3 : i32
    %215 = arith.index_cast %c3_i32 : i32 to index
    %c0_53 = arith.constant 0 : index
    %c0_54 = arith.constant 0 : index
    %216 = vector.load %arg10[%215, %c0_53, %c0_54] : memref<8x8x1024xf32, #tpu.memory_space<vmem>>, vector<1x8x1024xf32>
    %217 = vector.shape_cast %216 : vector<1x8x1024xf32> to vector<8x1024xf32>
    %c7_i32_55 = arith.constant 7 : i32
    %218 = arith.subi %c7_i32_55, %c3_i32 : i32
    %219 = arith.index_cast %218 : i32 to index
    %c0_56 = arith.constant 0 : index
    %c0_57 = arith.constant 0 : index
    %220 = vector.load %arg10[%219, %c0_56, %c0_57] : memref<8x8x1024xf32, #tpu.memory_space<vmem>>, vector<1x8x1024xf32>
    %221 = vector.shape_cast %220 : vector<1x8x1024xf32> to vector<8x1024xf32>
    %222 = vector.extract_strided_slice %217 {offsets = [0, 0], sizes = [8, 512], strides = [1, 1]} : vector<8x1024xf32> to vector<8x512xf32>
    %223 = arith.truncf %187 : vector<8x128xf32> to vector<8x128xbf16>
    %cst_58 = arith.constant dense<0.000000e+00> : vector<8x512xf32>
    %224 = tpu.matmul %223, %10, %cst_58 {dimension_numbers = #tpu.dot_dimension_numbers<[1], [0], [0], [1], [0, 0, 1, 1], [], []>} : vector<8x128xbf16>, vector<128x512xbf16>, vector<8x512xf32> -> vector<8x512xf32>
    %225 = arith.addf %222, %224 : vector<8x512xf32>
    %226 = vector.extract_strided_slice %221 {offsets = [0, 512], sizes = [8, 512], strides = [1, 1]} : vector<8x1024xf32> to vector<8x512xf32>
    %227 = arith.truncf %212 : vector<8x128xf32> to vector<8x128xbf16>
    %cst_59 = arith.constant dense<0.000000e+00> : vector<8x512xf32>
    %228 = tpu.matmul %227, %11, %cst_59 {dimension_numbers = #tpu.dot_dimension_numbers<[1], [0], [0], [1], [0, 0, 1, 1], [], []>} : vector<8x128xbf16>, vector<128x512xbf16>, vector<8x512xf32> -> vector<8x512xf32>
    %229 = arith.addf %226, %228 : vector<8x512xf32>
    %230 = vector.extract_strided_slice %225 {offsets = [0, 0], sizes = [8, 128], strides = [1, 1]} : vector<8x512xf32> to vector<8x128xf32>
    %231 = arith.negf %230 : vector<8x128xf32>
    %232 = math.exp %231 : vector<8x128xf32>
    %cst_60 = arith.constant 1.000000e+00 : f32
    %233 = vector.broadcast %cst_60 : f32 to vector<8x128xf32>
    %234 = arith.addf %233, %232 : vector<8x128xf32>
    %235 = arith.divf %233, %234 : vector<8x128xf32>
    %236 = vector.extract_strided_slice %225 {offsets = [0, 128], sizes = [8, 128], strides = [1, 1]} : vector<8x512xf32> to vector<8x128xf32>
    %237 = arith.negf %236 : vector<8x128xf32>
    %238 = math.exp %237 : vector<8x128xf32>
    %cst_61 = arith.constant 1.000000e+00 : f32
    %239 = vector.broadcast %cst_61 : f32 to vector<8x128xf32>
    %240 = arith.addf %239, %238 : vector<8x128xf32>
    %241 = arith.divf %239, %240 : vector<8x128xf32>
    %242 = vector.extract_strided_slice %225 {offsets = [0, 256], sizes = [8, 128], strides = [1, 1]} : vector<8x512xf32> to vector<8x128xf32>
    %243 = math.tanh %242 : vector<8x128xf32>
    %244 = vector.extract_strided_slice %225 {offsets = [0, 384], sizes = [8, 128], strides = [1, 1]} : vector<8x512xf32> to vector<8x128xf32>
    %245 = arith.negf %244 : vector<8x128xf32>
    %246 = math.exp %245 : vector<8x128xf32>
    %cst_62 = arith.constant 1.000000e+00 : f32
    %247 = vector.broadcast %cst_62 : f32 to vector<8x128xf32>
    %248 = arith.addf %247, %246 : vector<8x128xf32>
    %249 = arith.divf %247, %248 : vector<8x128xf32>
    %250 = arith.mulf %241, %185 : vector<8x128xf32>
    %251 = arith.mulf %235, %243 : vector<8x128xf32>
    %252 = arith.addf %250, %251 : vector<8x128xf32>
    %253 = math.tanh %252 : vector<8x128xf32>
    %254 = arith.mulf %249, %253 : vector<8x128xf32>
    %255 = vector.extract_strided_slice %229 {offsets = [0, 0], sizes = [8, 128], strides = [1, 1]} : vector<8x512xf32> to vector<8x128xf32>
    %256 = arith.negf %255 : vector<8x128xf32>
    %257 = math.exp %256 : vector<8x128xf32>
    %cst_63 = arith.constant 1.000000e+00 : f32
    %258 = vector.broadcast %cst_63 : f32 to vector<8x128xf32>
    %259 = arith.addf %258, %257 : vector<8x128xf32>
    %260 = arith.divf %258, %259 : vector<8x128xf32>
    %261 = vector.extract_strided_slice %229 {offsets = [0, 128], sizes = [8, 128], strides = [1, 1]} : vector<8x512xf32> to vector<8x128xf32>
    %262 = arith.negf %261 : vector<8x128xf32>
    %263 = math.exp %262 : vector<8x128xf32>
    %cst_64 = arith.constant 1.000000e+00 : f32
    %264 = vector.broadcast %cst_64 : f32 to vector<8x128xf32>
    %265 = arith.addf %264, %263 : vector<8x128xf32>
    %266 = arith.divf %264, %265 : vector<8x128xf32>
    %267 = vector.extract_strided_slice %229 {offsets = [0, 256], sizes = [8, 128], strides = [1, 1]} : vector<8x512xf32> to vector<8x128xf32>
    %268 = math.tanh %267 : vector<8x128xf32>
    %269 = vector.extract_strided_slice %229 {offsets = [0, 384], sizes = [8, 128], strides = [1, 1]} : vector<8x512xf32> to vector<8x128xf32>
    %270 = arith.negf %269 : vector<8x128xf32>
    %271 = math.exp %270 : vector<8x128xf32>
    %cst_65 = arith.constant 1.000000e+00 : f32
    %272 = vector.broadcast %cst_65 : f32 to vector<8x128xf32>
    %273 = arith.addf %272, %271 : vector<8x128xf32>
    %274 = arith.divf %272, %273 : vector<8x128xf32>
    %275 = arith.mulf %266, %210 : vector<8x128xf32>
    %276 = arith.mulf %260, %268 : vector<8x128xf32>
    %277 = arith.addf %275, %276 : vector<8x128xf32>
    %278 = math.tanh %277 : vector<8x128xf32>
    %279 = arith.mulf %274, %278 : vector<8x128xf32>
    %280 = arith.maximumf %213, %254 : vector<8x128xf32>
    %281 = arith.maximumf %214, %279 : vector<8x128xf32>
    %c4_i32 = arith.constant 4 : i32
    %282 = arith.index_cast %c4_i32 : i32 to index
    %c0_66 = arith.constant 0 : index
    %c0_67 = arith.constant 0 : index
    %283 = vector.load %arg10[%282, %c0_66, %c0_67] : memref<8x8x1024xf32, #tpu.memory_space<vmem>>, vector<1x8x1024xf32>
    %284 = vector.shape_cast %283 : vector<1x8x1024xf32> to vector<8x1024xf32>
    %c7_i32_68 = arith.constant 7 : i32
    %285 = arith.subi %c7_i32_68, %c4_i32 : i32
    %286 = arith.index_cast %285 : i32 to index
    %c0_69 = arith.constant 0 : index
    %c0_70 = arith.constant 0 : index
    %287 = vector.load %arg10[%286, %c0_69, %c0_70] : memref<8x8x1024xf32, #tpu.memory_space<vmem>>, vector<1x8x1024xf32>
    %288 = vector.shape_cast %287 : vector<1x8x1024xf32> to vector<8x1024xf32>
    %289 = vector.extract_strided_slice %284 {offsets = [0, 0], sizes = [8, 512], strides = [1, 1]} : vector<8x1024xf32> to vector<8x512xf32>
    %290 = arith.truncf %254 : vector<8x128xf32> to vector<8x128xbf16>
    %cst_71 = arith.constant dense<0.000000e+00> : vector<8x512xf32>
    %291 = tpu.matmul %290, %10, %cst_71 {dimension_numbers = #tpu.dot_dimension_numbers<[1], [0], [0], [1], [0, 0, 1, 1], [], []>} : vector<8x128xbf16>, vector<128x512xbf16>, vector<8x512xf32> -> vector<8x512xf32>
    %292 = arith.addf %289, %291 : vector<8x512xf32>
    %293 = vector.extract_strided_slice %288 {offsets = [0, 512], sizes = [8, 512], strides = [1, 1]} : vector<8x1024xf32> to vector<8x512xf32>
    %294 = arith.truncf %279 : vector<8x128xf32> to vector<8x128xbf16>
    %cst_72 = arith.constant dense<0.000000e+00> : vector<8x512xf32>
    %295 = tpu.matmul %294, %11, %cst_72 {dimension_numbers = #tpu.dot_dimension_numbers<[1], [0], [0], [1], [0, 0, 1, 1], [], []>} : vector<8x128xbf16>, vector<128x512xbf16>, vector<8x512xf32> -> vector<8x512xf32>
    %296 = arith.addf %293, %295 : vector<8x512xf32>
    %297 = vector.extract_strided_slice %292 {offsets = [0, 0], sizes = [8, 128], strides = [1, 1]} : vector<8x512xf32> to vector<8x128xf32>
    %298 = arith.negf %297 : vector<8x128xf32>
    %299 = math.exp %298 : vector<8x128xf32>
    %cst_73 = arith.constant 1.000000e+00 : f32
    %300 = vector.broadcast %cst_73 : f32 to vector<8x128xf32>
    %301 = arith.addf %300, %299 : vector<8x128xf32>
    %302 = arith.divf %300, %301 : vector<8x128xf32>
    %303 = vector.extract_strided_slice %292 {offsets = [0, 128], sizes = [8, 128], strides = [1, 1]} : vector<8x512xf32> to vector<8x128xf32>
    %304 = arith.negf %303 : vector<8x128xf32>
    %305 = math.exp %304 : vector<8x128xf32>
    %cst_74 = arith.constant 1.000000e+00 : f32
    %306 = vector.broadcast %cst_74 : f32 to vector<8x128xf32>
    %307 = arith.addf %306, %305 : vector<8x128xf32>
    %308 = arith.divf %306, %307 : vector<8x128xf32>
    %309 = vector.extract_strided_slice %292 {offsets = [0, 256], sizes = [8, 128], strides = [1, 1]} : vector<8x512xf32> to vector<8x128xf32>
    %310 = math.tanh %309 : vector<8x128xf32>
    %311 = vector.extract_strided_slice %292 {offsets = [0, 384], sizes = [8, 128], strides = [1, 1]} : vector<8x512xf32> to vector<8x128xf32>
    %312 = arith.negf %311 : vector<8x128xf32>
    %313 = math.exp %312 : vector<8x128xf32>
    %cst_75 = arith.constant 1.000000e+00 : f32
    %314 = vector.broadcast %cst_75 : f32 to vector<8x128xf32>
    %315 = arith.addf %314, %313 : vector<8x128xf32>
    %316 = arith.divf %314, %315 : vector<8x128xf32>
    %317 = arith.mulf %308, %252 : vector<8x128xf32>
    %318 = arith.mulf %302, %310 : vector<8x128xf32>
    %319 = arith.addf %317, %318 : vector<8x128xf32>
    %320 = math.tanh %319 : vector<8x128xf32>
    %321 = arith.mulf %316, %320 : vector<8x128xf32>
    %322 = vector.extract_strided_slice %296 {offsets = [0, 0], sizes = [8, 128], strides = [1, 1]} : vector<8x512xf32> to vector<8x128xf32>
    %323 = arith.negf %322 : vector<8x128xf32>
    %324 = math.exp %323 : vector<8x128xf32>
    %cst_76 = arith.constant 1.000000e+00 : f32
    %325 = vector.broadcast %cst_76 : f32 to vector<8x128xf32>
    %326 = arith.addf %325, %324 : vector<8x128xf32>
    %327 = arith.divf %325, %326 : vector<8x128xf32>
    %328 = vector.extract_strided_slice %296 {offsets = [0, 128], sizes = [8, 128], strides = [1, 1]} : vector<8x512xf32> to vector<8x128xf32>
    %329 = arith.negf %328 : vector<8x128xf32>
    %330 = math.exp %329 : vector<8x128xf32>
    %cst_77 = arith.constant 1.000000e+00 : f32
    %331 = vector.broadcast %cst_77 : f32 to vector<8x128xf32>
    %332 = arith.addf %331, %330 : vector<8x128xf32>
    %333 = arith.divf %331, %332 : vector<8x128xf32>
    %334 = vector.extract_strided_slice %296 {offsets = [0, 256], sizes = [8, 128], strides = [1, 1]} : vector<8x512xf32> to vector<8x128xf32>
    %335 = math.tanh %334 : vector<8x128xf32>
    %336 = vector.extract_strided_slice %296 {offsets = [0, 384], sizes = [8, 128], strides = [1, 1]} : vector<8x512xf32> to vector<8x128xf32>
    %337 = arith.negf %336 : vector<8x128xf32>
    %338 = math.exp %337 : vector<8x128xf32>
    %cst_78 = arith.constant 1.000000e+00 : f32
    %339 = vector.broadcast %cst_78 : f32 to vector<8x128xf32>
    %340 = arith.addf %339, %338 : vector<8x128xf32>
    %341 = arith.divf %339, %340 : vector<8x128xf32>
    %342 = arith.mulf %333, %277 : vector<8x128xf32>
    %343 = arith.mulf %327, %335 : vector<8x128xf32>
    %344 = arith.addf %342, %343 : vector<8x128xf32>
    %345 = math.tanh %344 : vector<8x128xf32>
    %346 = arith.mulf %341, %345 : vector<8x128xf32>
    %347 = arith.maximumf %280, %321 : vector<8x128xf32>
    %348 = arith.maximumf %281, %346 : vector<8x128xf32>
    %c5_i32 = arith.constant 5 : i32
    %349 = arith.index_cast %c5_i32 : i32 to index
    %c0_79 = arith.constant 0 : index
    %c0_80 = arith.constant 0 : index
    %350 = vector.load %arg10[%349, %c0_79, %c0_80] : memref<8x8x1024xf32, #tpu.memory_space<vmem>>, vector<1x8x1024xf32>
    %351 = vector.shape_cast %350 : vector<1x8x1024xf32> to vector<8x1024xf32>
    %c7_i32_81 = arith.constant 7 : i32
    %352 = arith.subi %c7_i32_81, %c5_i32 : i32
    %353 = arith.index_cast %352 : i32 to index
    %c0_82 = arith.constant 0 : index
    %c0_83 = arith.constant 0 : index
    %354 = vector.load %arg10[%353, %c0_82, %c0_83] : memref<8x8x1024xf32, #tpu.memory_space<vmem>>, vector<1x8x1024xf32>
    %355 = vector.shape_cast %354 : vector<1x8x1024xf32> to vector<8x1024xf32>
    %356 = vector.extract_strided_slice %351 {offsets = [0, 0], sizes = [8, 512], strides = [1, 1]} : vector<8x1024xf32> to vector<8x512xf32>
    %357 = arith.truncf %321 : vector<8x128xf32> to vector<8x128xbf16>
    %cst_84 = arith.constant dense<0.000000e+00> : vector<8x512xf32>
    %358 = tpu.matmul %357, %10, %cst_84 {dimension_numbers = #tpu.dot_dimension_numbers<[1], [0], [0], [1], [0, 0, 1, 1], [], []>} : vector<8x128xbf16>, vector<128x512xbf16>, vector<8x512xf32> -> vector<8x512xf32>
    %359 = arith.addf %356, %358 : vector<8x512xf32>
    %360 = vector.extract_strided_slice %355 {offsets = [0, 512], sizes = [8, 512], strides = [1, 1]} : vector<8x1024xf32> to vector<8x512xf32>
    %361 = arith.truncf %346 : vector<8x128xf32> to vector<8x128xbf16>
    %cst_85 = arith.constant dense<0.000000e+00> : vector<8x512xf32>
    %362 = tpu.matmul %361, %11, %cst_85 {dimension_numbers = #tpu.dot_dimension_numbers<[1], [0], [0], [1], [0, 0, 1, 1], [], []>} : vector<8x128xbf16>, vector<128x512xbf16>, vector<8x512xf32> -> vector<8x512xf32>
    %363 = arith.addf %360, %362 : vector<8x512xf32>
    %364 = vector.extract_strided_slice %359 {offsets = [0, 0], sizes = [8, 128], strides = [1, 1]} : vector<8x512xf32> to vector<8x128xf32>
    %365 = arith.negf %364 : vector<8x128xf32>
    %366 = math.exp %365 : vector<8x128xf32>
    %cst_86 = arith.constant 1.000000e+00 : f32
    %367 = vector.broadcast %cst_86 : f32 to vector<8x128xf32>
    %368 = arith.addf %367, %366 : vector<8x128xf32>
    %369 = arith.divf %367, %368 : vector<8x128xf32>
    %370 = vector.extract_strided_slice %359 {offsets = [0, 128], sizes = [8, 128], strides = [1, 1]} : vector<8x512xf32> to vector<8x128xf32>
    %371 = arith.negf %370 : vector<8x128xf32>
    %372 = math.exp %371 : vector<8x128xf32>
    %cst_87 = arith.constant 1.000000e+00 : f32
    %373 = vector.broadcast %cst_87 : f32 to vector<8x128xf32>
    %374 = arith.addf %373, %372 : vector<8x128xf32>
    %375 = arith.divf %373, %374 : vector<8x128xf32>
    %376 = vector.extract_strided_slice %359 {offsets = [0, 256], sizes = [8, 128], strides = [1, 1]} : vector<8x512xf32> to vector<8x128xf32>
    %377 = math.tanh %376 : vector<8x128xf32>
    %378 = vector.extract_strided_slice %359 {offsets = [0, 384], sizes = [8, 128], strides = [1, 1]} : vector<8x512xf32> to vector<8x128xf32>
    %379 = arith.negf %378 : vector<8x128xf32>
    %380 = math.exp %379 : vector<8x128xf32>
    %cst_88 = arith.constant 1.000000e+00 : f32
    %381 = vector.broadcast %cst_88 : f32 to vector<8x128xf32>
    %382 = arith.addf %381, %380 : vector<8x128xf32>
    %383 = arith.divf %381, %382 : vector<8x128xf32>
    %384 = arith.mulf %375, %319 : vector<8x128xf32>
    %385 = arith.mulf %369, %377 : vector<8x128xf32>
    %386 = arith.addf %384, %385 : vector<8x128xf32>
    %387 = math.tanh %386 : vector<8x128xf32>
    %388 = arith.mulf %383, %387 : vector<8x128xf32>
    %389 = vector.extract_strided_slice %363 {offsets = [0, 0], sizes = [8, 128], strides = [1, 1]} : vector<8x512xf32> to vector<8x128xf32>
    %390 = arith.negf %389 : vector<8x128xf32>
    %391 = math.exp %390 : vector<8x128xf32>
    %cst_89 = arith.constant 1.000000e+00 : f32
    %392 = vector.broadcast %cst_89 : f32 to vector<8x128xf32>
    %393 = arith.addf %392, %391 : vector<8x128xf32>
    %394 = arith.divf %392, %393 : vector<8x128xf32>
    %395 = vector.extract_strided_slice %363 {offsets = [0, 128], sizes = [8, 128], strides = [1, 1]} : vector<8x512xf32> to vector<8x128xf32>
    %396 = arith.negf %395 : vector<8x128xf32>
    %397 = math.exp %396 : vector<8x128xf32>
    %cst_90 = arith.constant 1.000000e+00 : f32
    %398 = vector.broadcast %cst_90 : f32 to vector<8x128xf32>
    %399 = arith.addf %398, %397 : vector<8x128xf32>
    %400 = arith.divf %398, %399 : vector<8x128xf32>
    %401 = vector.extract_strided_slice %363 {offsets = [0, 256], sizes = [8, 128], strides = [1, 1]} : vector<8x512xf32> to vector<8x128xf32>
    %402 = math.tanh %401 : vector<8x128xf32>
    %403 = vector.extract_strided_slice %363 {offsets = [0, 384], sizes = [8, 128], strides = [1, 1]} : vector<8x512xf32> to vector<8x128xf32>
    %404 = arith.negf %403 : vector<8x128xf32>
    %405 = math.exp %404 : vector<8x128xf32>
    %cst_91 = arith.constant 1.000000e+00 : f32
    %406 = vector.broadcast %cst_91 : f32 to vector<8x128xf32>
    %407 = arith.addf %406, %405 : vector<8x128xf32>
    %408 = arith.divf %406, %407 : vector<8x128xf32>
    %409 = arith.mulf %400, %344 : vector<8x128xf32>
    %410 = arith.mulf %394, %402 : vector<8x128xf32>
    %411 = arith.addf %409, %410 : vector<8x128xf32>
    %412 = math.tanh %411 : vector<8x128xf32>
    %413 = arith.mulf %408, %412 : vector<8x128xf32>
    %414 = arith.maximumf %347, %388 : vector<8x128xf32>
    %415 = arith.maximumf %348, %413 : vector<8x128xf32>
    %c6_i32 = arith.constant 6 : i32
    %416 = arith.index_cast %c6_i32 : i32 to index
    %c0_92 = arith.constant 0 : index
    %c0_93 = arith.constant 0 : index
    %417 = vector.load %arg10[%416, %c0_92, %c0_93] : memref<8x8x1024xf32, #tpu.memory_space<vmem>>, vector<1x8x1024xf32>
    %418 = vector.shape_cast %417 : vector<1x8x1024xf32> to vector<8x1024xf32>
    %c7_i32_94 = arith.constant 7 : i32
    %419 = arith.subi %c7_i32_94, %c6_i32 : i32
    %420 = arith.index_cast %419 : i32 to index
    %c0_95 = arith.constant 0 : index
    %c0_96 = arith.constant 0 : index
    %421 = vector.load %arg10[%420, %c0_95, %c0_96] : memref<8x8x1024xf32, #tpu.memory_space<vmem>>, vector<1x8x1024xf32>
    %422 = vector.shape_cast %421 : vector<1x8x1024xf32> to vector<8x1024xf32>
    %423 = vector.extract_strided_slice %418 {offsets = [0, 0], sizes = [8, 512], strides = [1, 1]} : vector<8x1024xf32> to vector<8x512xf32>
    %424 = arith.truncf %388 : vector<8x128xf32> to vector<8x128xbf16>
    %cst_97 = arith.constant dense<0.000000e+00> : vector<8x512xf32>
    %425 = tpu.matmul %424, %10, %cst_97 {dimension_numbers = #tpu.dot_dimension_numbers<[1], [0], [0], [1], [0, 0, 1, 1], [], []>} : vector<8x128xbf16>, vector<128x512xbf16>, vector<8x512xf32> -> vector<8x512xf32>
    %426 = arith.addf %423, %425 : vector<8x512xf32>
    %427 = vector.extract_strided_slice %422 {offsets = [0, 512], sizes = [8, 512], strides = [1, 1]} : vector<8x1024xf32> to vector<8x512xf32>
    %428 = arith.truncf %413 : vector<8x128xf32> to vector<8x128xbf16>
    %cst_98 = arith.constant dense<0.000000e+00> : vector<8x512xf32>
    %429 = tpu.matmul %428, %11, %cst_98 {dimension_numbers = #tpu.dot_dimension_numbers<[1], [0], [0], [1], [0, 0, 1, 1], [], []>} : vector<8x128xbf16>, vector<128x512xbf16>, vector<8x512xf32> -> vector<8x512xf32>
    %430 = arith.addf %427, %429 : vector<8x512xf32>
    %431 = vector.extract_strided_slice %426 {offsets = [0, 0], sizes = [8, 128], strides = [1, 1]} : vector<8x512xf32> to vector<8x128xf32>
    %432 = arith.negf %431 : vector<8x128xf32>
    %433 = math.exp %432 : vector<8x128xf32>
    %cst_99 = arith.constant 1.000000e+00 : f32
    %434 = vector.broadcast %cst_99 : f32 to vector<8x128xf32>
    %435 = arith.addf %434, %433 : vector<8x128xf32>
    %436 = arith.divf %434, %435 : vector<8x128xf32>
    %437 = vector.extract_strided_slice %426 {offsets = [0, 128], sizes = [8, 128], strides = [1, 1]} : vector<8x512xf32> to vector<8x128xf32>
    %438 = arith.negf %437 : vector<8x128xf32>
    %439 = math.exp %438 : vector<8x128xf32>
    %cst_100 = arith.constant 1.000000e+00 : f32
    %440 = vector.broadcast %cst_100 : f32 to vector<8x128xf32>
    %441 = arith.addf %440, %439 : vector<8x128xf32>
    %442 = arith.divf %440, %441 : vector<8x128xf32>
    %443 = vector.extract_strided_slice %426 {offsets = [0, 256], sizes = [8, 128], strides = [1, 1]} : vector<8x512xf32> to vector<8x128xf32>
    %444 = math.tanh %443 : vector<8x128xf32>
    %445 = vector.extract_strided_slice %426 {offsets = [0, 384], sizes = [8, 128], strides = [1, 1]} : vector<8x512xf32> to vector<8x128xf32>
    %446 = arith.negf %445 : vector<8x128xf32>
    %447 = math.exp %446 : vector<8x128xf32>
    %cst_101 = arith.constant 1.000000e+00 : f32
    %448 = vector.broadcast %cst_101 : f32 to vector<8x128xf32>
    %449 = arith.addf %448, %447 : vector<8x128xf32>
    %450 = arith.divf %448, %449 : vector<8x128xf32>
    %451 = arith.mulf %442, %386 : vector<8x128xf32>
    %452 = arith.mulf %436, %444 : vector<8x128xf32>
    %453 = arith.addf %451, %452 : vector<8x128xf32>
    %454 = math.tanh %453 : vector<8x128xf32>
    %455 = arith.mulf %450, %454 : vector<8x128xf32>
    %456 = vector.extract_strided_slice %430 {offsets = [0, 0], sizes = [8, 128], strides = [1, 1]} : vector<8x512xf32> to vector<8x128xf32>
    %457 = arith.negf %456 : vector<8x128xf32>
    %458 = math.exp %457 : vector<8x128xf32>
    %cst_102 = arith.constant 1.000000e+00 : f32
    %459 = vector.broadcast %cst_102 : f32 to vector<8x128xf32>
    %460 = arith.addf %459, %458 : vector<8x128xf32>
    %461 = arith.divf %459, %460 : vector<8x128xf32>
    %462 = vector.extract_strided_slice %430 {offsets = [0, 128], sizes = [8, 128], strides = [1, 1]} : vector<8x512xf32> to vector<8x128xf32>
    %463 = arith.negf %462 : vector<8x128xf32>
    %464 = math.exp %463 : vector<8x128xf32>
    %cst_103 = arith.constant 1.000000e+00 : f32
    %465 = vector.broadcast %cst_103 : f32 to vector<8x128xf32>
    %466 = arith.addf %465, %464 : vector<8x128xf32>
    %467 = arith.divf %465, %466 : vector<8x128xf32>
    %468 = vector.extract_strided_slice %430 {offsets = [0, 256], sizes = [8, 128], strides = [1, 1]} : vector<8x512xf32> to vector<8x128xf32>
    %469 = math.tanh %468 : vector<8x128xf32>
    %470 = vector.extract_strided_slice %430 {offsets = [0, 384], sizes = [8, 128], strides = [1, 1]} : vector<8x512xf32> to vector<8x128xf32>
    %471 = arith.negf %470 : vector<8x128xf32>
    %472 = math.exp %471 : vector<8x128xf32>
    %cst_104 = arith.constant 1.000000e+00 : f32
    %473 = vector.broadcast %cst_104 : f32 to vector<8x128xf32>
    %474 = arith.addf %473, %472 : vector<8x128xf32>
    %475 = arith.divf %473, %474 : vector<8x128xf32>
    %476 = arith.mulf %467, %411 : vector<8x128xf32>
    %477 = arith.mulf %461, %469 : vector<8x128xf32>
    %478 = arith.addf %476, %477 : vector<8x128xf32>
    %479 = math.tanh %478 : vector<8x128xf32>
    %480 = arith.mulf %475, %479 : vector<8x128xf32>
    %481 = arith.maximumf %414, %455 : vector<8x128xf32>
    %482 = arith.maximumf %415, %480 : vector<8x128xf32>
    %c7_i32_105 = arith.constant 7 : i32
    %483 = arith.index_cast %c7_i32_105 : i32 to index
    %c0_106 = arith.constant 0 : index
    %c0_107 = arith.constant 0 : index
    %484 = vector.load %arg10[%483, %c0_106, %c0_107] : memref<8x8x1024xf32, #tpu.memory_space<vmem>>, vector<1x8x1024xf32>
    %485 = vector.shape_cast %484 : vector<1x8x1024xf32> to vector<8x1024xf32>
    %c7_i32_108 = arith.constant 7 : i32
    %486 = arith.subi %c7_i32_108, %c7_i32_105 : i32
    %487 = arith.index_cast %486 : i32 to index
    %c0_109 = arith.constant 0 : index
    %c0_110 = arith.constant 0 : index
    %488 = vector.load %arg10[%487, %c0_109, %c0_110] : memref<8x8x1024xf32, #tpu.memory_space<vmem>>, vector<1x8x1024xf32>
    %489 = vector.shape_cast %488 : vector<1x8x1024xf32> to vector<8x1024xf32>
    %490 = vector.extract_strided_slice %485 {offsets = [0, 0], sizes = [8, 512], strides = [1, 1]} : vector<8x1024xf32> to vector<8x512xf32>
    %491 = arith.truncf %455 : vector<8x128xf32> to vector<8x128xbf16>
    %cst_111 = arith.constant dense<0.000000e+00> : vector<8x512xf32>
    %492 = tpu.matmul %491, %10, %cst_111 {dimension_numbers = #tpu.dot_dimension_numbers<[1], [0], [0], [1], [0, 0, 1, 1], [], []>} : vector<8x128xbf16>, vector<128x512xbf16>, vector<8x512xf32> -> vector<8x512xf32>
    %493 = arith.addf %490, %492 : vector<8x512xf32>
    %494 = vector.extract_strided_slice %489 {offsets = [0, 512], sizes = [8, 512], strides = [1, 1]} : vector<8x1024xf32> to vector<8x512xf32>
    %495 = arith.truncf %480 : vector<8x128xf32> to vector<8x128xbf16>
    %cst_112 = arith.constant dense<0.000000e+00> : vector<8x512xf32>
    %496 = tpu.matmul %495, %11, %cst_112 {dimension_numbers = #tpu.dot_dimension_numbers<[1], [0], [0], [1], [0, 0, 1, 1], [], []>} : vector<8x128xbf16>, vector<128x512xbf16>, vector<8x512xf32> -> vector<8x512xf32>
    %497 = arith.addf %494, %496 : vector<8x512xf32>
    %498 = vector.extract_strided_slice %493 {offsets = [0, 0], sizes = [8, 128], strides = [1, 1]} : vector<8x512xf32> to vector<8x128xf32>
    %499 = arith.negf %498 : vector<8x128xf32>
    %500 = math.exp %499 : vector<8x128xf32>
    %cst_113 = arith.constant 1.000000e+00 : f32
    %501 = vector.broadcast %cst_113 : f32 to vector<8x128xf32>
    %502 = arith.addf %501, %500 : vector<8x128xf32>
    %503 = arith.divf %501, %502 : vector<8x128xf32>
    %504 = vector.extract_strided_slice %493 {offsets = [0, 128], sizes = [8, 128], strides = [1, 1]} : vector<8x512xf32> to vector<8x128xf32>
    %505 = arith.negf %504 : vector<8x128xf32>
    %506 = math.exp %505 : vector<8x128xf32>
    %cst_114 = arith.constant 1.000000e+00 : f32
    %507 = vector.broadcast %cst_114 : f32 to vector<8x128xf32>
    %508 = arith.addf %507, %506 : vector<8x128xf32>
    %509 = arith.divf %507, %508 : vector<8x128xf32>
    %510 = vector.extract_strided_slice %493 {offsets = [0, 256], sizes = [8, 128], strides = [1, 1]} : vector<8x512xf32> to vector<8x128xf32>
    %511 = math.tanh %510 : vector<8x128xf32>
    %512 = vector.extract_strided_slice %493 {offsets = [0, 384], sizes = [8, 128], strides = [1, 1]} : vector<8x512xf32> to vector<8x128xf32>
    %513 = arith.negf %512 : vector<8x128xf32>
    %514 = math.exp %513 : vector<8x128xf32>
    %cst_115 = arith.constant 1.000000e+00 : f32
    %515 = vector.broadcast %cst_115 : f32 to vector<8x128xf32>
    %516 = arith.addf %515, %514 : vector<8x128xf32>
    %517 = arith.divf %515, %516 : vector<8x128xf32>
    %518 = arith.mulf %509, %453 : vector<8x128xf32>
    %519 = arith.mulf %503, %511 : vector<8x128xf32>
    %520 = arith.addf %518, %519 : vector<8x128xf32>
    %521 = math.tanh %520 : vector<8x128xf32>
    %522 = arith.mulf %517, %521 : vector<8x128xf32>
    %523 = vector.extract_strided_slice %497 {offsets = [0, 0], sizes = [8, 128], strides = [1, 1]} : vector<8x512xf32> to vector<8x128xf32>
    %524 = arith.negf %523 : vector<8x128xf32>
    %525 = math.exp %524 : vector<8x128xf32>
    %cst_116 = arith.constant 1.000000e+00 : f32
    %526 = vector.broadcast %cst_116 : f32 to vector<8x128xf32>
    %527 = arith.addf %526, %525 : vector<8x128xf32>
    %528 = arith.divf %526, %527 : vector<8x128xf32>
    %529 = vector.extract_strided_slice %497 {offsets = [0, 128], sizes = [8, 128], strides = [1, 1]} : vector<8x512xf32> to vector<8x128xf32>
    %530 = arith.negf %529 : vector<8x128xf32>
    %531 = math.exp %530 : vector<8x128xf32>
    %cst_117 = arith.constant 1.000000e+00 : f32
    %532 = vector.broadcast %cst_117 : f32 to vector<8x128xf32>
    %533 = arith.addf %532, %531 : vector<8x128xf32>
    %534 = arith.divf %532, %533 : vector<8x128xf32>
    %535 = vector.extract_strided_slice %497 {offsets = [0, 256], sizes = [8, 128], strides = [1, 1]} : vector<8x512xf32> to vector<8x128xf32>
    %536 = math.tanh %535 : vector<8x128xf32>
    %537 = vector.extract_strided_slice %497 {offsets = [0, 384], sizes = [8, 128], strides = [1, 1]} : vector<8x512xf32> to vector<8x128xf32>
    %538 = arith.negf %537 : vector<8x128xf32>
    %539 = math.exp %538 : vector<8x128xf32>
    %cst_118 = arith.constant 1.000000e+00 : f32
    %540 = vector.broadcast %cst_118 : f32 to vector<8x128xf32>
    %541 = arith.addf %540, %539 : vector<8x128xf32>
    %542 = arith.divf %540, %541 : vector<8x128xf32>
    %543 = arith.mulf %534, %478 : vector<8x128xf32>
    %544 = arith.mulf %528, %536 : vector<8x128xf32>
    %545 = arith.addf %543, %544 : vector<8x128xf32>
    %546 = math.tanh %545 : vector<8x128xf32>
    %547 = arith.mulf %542, %546 : vector<8x128xf32>
    %548 = arith.maximumf %481, %522 : vector<8x128xf32>
    %549 = arith.maximumf %482, %547 : vector<8x128xf32>
    %c8_i32 = arith.constant 8 : i32
    %550 = arith.truncf %548 : vector<8x128xf32> to vector<8x128xbf16>
    %c0_119 = arith.constant 0 : index
    %c0_120 = arith.constant 0 : index
    %551 = vector.load %arg6[%c0_119, %c0_120] : memref<128x128xbf16, #tpu.memory_space<vmem>>, vector<128x128xbf16>
    %cst_121 = arith.constant dense<0.000000e+00> : vector<8x128xf32>
    %552 = tpu.matmul %550, %551, %cst_121 {dimension_numbers = #tpu.dot_dimension_numbers<[1], [0], [0], [1], [0, 0, 1, 1], [], []>} : vector<8x128xbf16>, vector<128x128xbf16>, vector<8x128xf32> -> vector<8x128xf32>
    %553 = arith.truncf %549 : vector<8x128xf32> to vector<8x128xbf16>
    %c0_122 = arith.constant 0 : index
    %c0_123 = arith.constant 0 : index
    %554 = vector.load %arg7[%c0_122, %c0_123] : memref<128x128xbf16, #tpu.memory_space<vmem>>, vector<128x128xbf16>
    %cst_124 = arith.constant dense<0.000000e+00> : vector<8x128xf32>
    %555 = tpu.matmul %553, %554, %cst_124 {dimension_numbers = #tpu.dot_dimension_numbers<[1], [0], [0], [1], [0, 0, 1, 1], [], []>} : vector<8x128xbf16>, vector<128x128xbf16>, vector<8x128xf32> -> vector<8x128xf32>
    %556 = arith.addf %552, %555 : vector<8x128xf32>
    %c0_125 = arith.constant 0 : index
    %c0_126 = arith.constant 0 : index
    %557 = vector.load %arg8[%c0_125, %c0_126] : memref<1x128xf32, #tpu.memory_space<vmem>>, vector<1x128xf32>
    %558 = vector.broadcast %557 : vector<1x128xf32> to vector<8x128xf32>
    %559 = arith.addf %556, %558 : vector<8x128xf32>
    %c0_127 = arith.constant 0 : index
    %c0_128 = arith.constant 0 : index
    %560 = vector.load %arg9[%c0_127, %c0_128] : memref<8x128xf32, #tpu.memory_space<vmem>>, vector<8x128xf32>
    tpu.vector_store %arg9[%c0_127, %c0_128], %559 {strides = array<i32>} : memref<8x128xf32, #tpu.memory_space<vmem>>, vector<8x128xf32>,
    return
  }
  func.func @transform_0(%arg0: i32) -> (i32, i32, i32) {
    %c0_i32 = arith.constant 0 : i32
    %c0_i32_0 = arith.constant 0 : i32
    %c0_i32_1 = arith.constant 0 : i32
    return %c0_i32, %arg0, %c0_i32_0 : i32, i32, i32
  }
  func.func @transform_1(%arg0: i32) -> (i32, i32) {
    %c0_i32 = arith.constant 0 : i32
    %c0_i32_0 = arith.constant 0 : i32
    %c0_i32_1 = arith.constant 0 : i32
    return %c0_i32, %c0_i32_0 : i32, i32
  }
  func.func @transform_2(%arg0: i32) -> (i32, i32) {
    %c0_i32 = arith.constant 0 : i32
    %c0_i32_0 = arith.constant 0 : i32
    %c0_i32_1 = arith.constant 0 : i32
    return %c0_i32, %c0_i32_0 : i32, i32
  }
  func.func @transform_3(%arg0: i32) -> (i32, i32) {
    %c0_i32 = arith.constant 0 : i32
    %c0_i32_0 = arith.constant 0 : i32
    %c0_i32_1 = arith.constant 0 : i32
    return %c0_i32, %c0_i32_0 : i32, i32
  }
  func.func @transform_4(%arg0: i32) -> (i32, i32) {
    %c0_i32 = arith.constant 0 : i32
    %c0_i32_0 = arith.constant 0 : i32
    %c0_i32_1 = arith.constant 0 : i32
    return %c0_i32, %c0_i32_0 : i32, i32
  }
  func.func @transform_5(%arg0: i32) -> (i32, i32) {
    %c0_i32 = arith.constant 0 : i32
    %c0_i32_0 = arith.constant 0 : i32
    %c0_i32_1 = arith.constant 0 : i32
    return %c0_i32, %c0_i32_0 : i32, i32
  }
  func.func @transform_6(%arg0: i32) -> (i32, i32) {
    %c0_i32 = arith.constant 0 : i32
    %c0_i32_0 = arith.constant 0 : i32
    %c0_i32_1 = arith.constant 0 : i32
    return %c0_i32, %c0_i32_0 : i32, i32
  }
  func.func @transform_7(%arg0: i32) -> (i32, i32) {
    %c0_i32 = arith.constant 0 : i32
    %c0_i32_0 = arith.constant 0 : i32
    %c0_i32_1 = arith.constant 0 : i32
    return %c0_i32, %c0_i32_0 : i32, i32
  }
  func.func @transform_8(%arg0: i32) -> (i32, i32) {
    %c0_i32 = arith.constant 0 : i32
    %c0_i32_0 = arith.constant 0 : i32
    return %arg0, %c0_i32 : i32, i32
  }
}

</mosaic_0001>

<llo_original>
// kernel: tpu_custom_call.1
$region0: #{tpu_custom_call.1}
  #allocation0 [shape = 'u32[]', space=smem, size = 0x4, offset = 0x4, fixed_abs, tag = 'smem constant byte address 0x4 - core index']
  #allocation1 [shape = 'u32[144,128]{1,0:T(1,128)}', space=vmem, size = 0x12000, scoped, tag = 'internal scratch']
  #allocation2 [shape = 'f32[8,8,1024]{2,1,0:T(8,128)}', space=vmem, size = 0x40000, scoped, tag = 'scratch operand']
  %s0 = inlined_call_operand.hbm [shape: f32[8,8,32], index: 0, kind: input, shape index: {}]
  %s1 = inlined_call_operand.hbm [shape: bf16[32,1024], index: 1, kind: input, shape index: {}]
  %s2 = inlined_call_operand.hbm [shape: f32[1,1024], index: 2, kind: input, shape index: {}]
  %s3 = inlined_call_operand.hbm [shape: bf16[128,512], index: 3, kind: input, shape index: {}]
  %s4 = inlined_call_operand.hbm [shape: bf16[128,512], index: 4, kind: input, shape index: {}]
  %s5 = inlined_call_operand.hbm [shape: bf16[128,128], index: 5, kind: input, shape index: {}]
  %s6 = inlined_call_operand.hbm [shape: bf16[128,128], index: 6, kind: input, shape index: {}]
  %s7 = inlined_call_operand.vmem [shape: f32[1,128], index: 7, kind: input, shape index: {}]
  %s8 = inlined_call_operand.hbm [shape: f32[8,128], index: 8, kind: output, shape index: {}]
  %s9 = sld [smem:[#allocation0]]
  $region70: #{tpu_custom_call.1} parent=0
    _
  %s11 = ssub.s32 1, %s9
  %s12 = scalar_select 0, %s11, %s9
  $region1: #{tpu_custom_call.1} parent=0
    #allocation3 [shape = 'u8[32768]{0}', space=vmem, size = 0x8000, scoped, tag = 'input window, operand 0, single buffered']
    #allocation4 [shape = 's32[1]{0}', space=sflag, size = 0x4, scoped, tag = 'scoped memory for tpu_custom_call.1']
    #allocation5 [shape = 's32[1]{0}', space=sflag, size = 0x4, scoped, tag = 'scoped memory for tpu_custom_call.1']
    #allocation6 [shape = 'u8[65536]{0}', space=vmem, size = 0x10000, scoped, tag = 'input window, operand 1, single buffered']
    #allocation7 [shape = 's32[1]{0}', space=sflag, size = 0x4, scoped, tag = 'scoped memory for tpu_custom_call.1']
    #allocation8 [shape = 'u8[4096]{0}', space=vmem, size = 0x1000, scoped, tag = 'input window, operand 2, single buffered']
    #allocation9 [shape = 'u8[131072]{0}', space=vmem, size = 0x20000, scoped, tag = 'input window, operand 3, single buffered']
    #allocation10 [shape = 's32[1]{0}', space=sflag, size = 0x4, scoped, tag = 'scoped memory for tpu_custom_call.1']
    #allocation11 [shape = 'u8[131072]{0}', space=vmem, size = 0x20000, scoped, tag = 'input window, operand 4, single buffered']
    #allocation12 [shape = 'u8[32768]{0}', space=vmem, size = 0x8000, scoped, tag = 'input window, operand 5, single buffered']
    #allocation13 [shape = 's32[1]{0}', space=sflag, size = 0x4, scoped, tag = 'scoped memory for tpu_custom_call.1']
    #allocation14 [shape = 'u8[32768]{0}', space=vmem, size = 0x8000, scoped, tag = 'input window, operand 6, single buffered']
    #allocation15 [shape = 'u8[4096]{0}', space=vmem, size = 0x1000, scoped, tag = 'output window, operand 0, single buffered']
    %13 = vsyncpa [#allocation4], 0
    %14 = vsyncpa [#allocation7], 0
    %15 = vsyncpa [#allocation10], 0
    %16 = vsyncpa [#allocation13], 0
    %17 = vsyncpa [#allocation5], 0
    // Predicated region
    $region2: #{tpu_custom_call.1} parent=1 // pred_check
      _
    $region3: #{tpu_custom_call.1} parent=1 // pred_check_branch
      %19 = sbr.rel (0) target = $region5
    $region4: #{tpu_custom_call.1} parent=1 // pred_region
      %s21 = ssub.s32 1024, 1024
      %22 = vsyncadd [#allocation4], %s21
      %s23 = sshll.u32 [#allocation3], 4
      %s24 = int_to_ptr.vmem [resolvable:$true] %s23
      %29 = dma.hbm_to_vmem [thread:$0]  %s0, 1024, %s24, [#allocation4], 128, 128, 8
    $region5: #{tpu_custom_call.1} parent=1 // pred_fallthru
      _
    // Predicated region
    $region6: #{tpu_custom_call.1} parent=1 // pred_check
      _
    $region7: #{tpu_custom_call.1} parent=1 // pred_check_branch
      %31 = sbr.rel (0) target = $region9
    $region8: #{tpu_custom_call.1} parent=1 // pred_region
      %s33 = ssub.s32 2048, 2048
      %34 = vsyncadd [#allocation7], %s33
      %s35 = sshll.u32 [#allocation6], 4
      %s36 = int_to_ptr.vmem [resolvable:$true] %s35
      %41 = dma.hbm_to_vmem [thread:$0]  %s1, 2048, %s36, [#allocation7], 512, 512, 32
    $region9: #{tpu_custom_call.1} parent=1 // pred_fallthru
      _
    // Predicated region
    $region10: #{tpu_custom_call.1} parent=1 // pred_check
      _
    $region11: #{tpu_custom_call.1} parent=1 // pred_check_branch
      %43 = sbr.rel (0) target = $region13
    $region12: #{tpu_custom_call.1} parent=1 // pred_region
      %s45 = ssub.s32 128, 128
      %46 = vsyncadd [#allocation7], %s45
      %s48 = sshll.u32 [#allocation8], 4
      %s49 = int_to_ptr.vmem [resolvable:$true] %s48
      %51 = dma.hbm_to_vmem [thread:$0]  %s2, 128, %s49, [#allocation7]
    $region13: #{tpu_custom_call.1} parent=1 // pred_fallthru
      _
    // Predicated region
    $region14: #{tpu_custom_call.1} parent=1 // pred_check
      _
    $region15: #{tpu_custom_call.1} parent=1 // pred_check_branch
      %53 = sbr.rel (0) target = $region17
    $region16: #{tpu_custom_call.1} parent=1 // pred_region
      %s55 = ssub.s32 4096, 4096
      %56 = vsyncadd [#allocation10], %s55
      %s57 = sshll.u32 [#allocation9], 4
      %s58 = int_to_ptr.vmem [resolvable:$true] %s57
      %63 = dma.hbm_to_vmem [thread:$0]  %s3, 4096, %s58, [#allocation10], 256, 256, 16
    $region17: #{tpu_custom_call.1} parent=1 // pred_fallthru
      _
    // Predicated region
    $region18: #{tpu_custom_call.1} parent=1 // pred_check
      _
    $region19: #{tpu_custom_call.1} parent=1 // pred_check_branch
      %65 = sbr.rel (0) target = $region21
    $region20: #{tpu_custom_call.1} parent=1 // pred_region
      %s67 = ssub.s32 4096, 4096
      %68 = vsyncadd [#allocation10], %s67
      %s69 = sshll.u32 [#allocation11], 4
      %s70 = int_to_ptr.vmem [resolvable:$true] %s69
      %75 = dma.hbm_to_vmem [thread:$0]  %s4, 4096, %s70, [#allocation10], 256, 256, 16
    $region21: #{tpu_custom_call.1} parent=1 // pred_fallthru
      _
    // Predicated region
    $region22: #{tpu_custom_call.1} parent=1 // pred_check
      _
    $region23: #{tpu_custom_call.1} parent=1 // pred_check_branch
      %77 = sbr.rel (0) target = $region25
    $region24: #{tpu_custom_call.1} parent=1 // pred_region
      %s79 = ssub.s32 1024, 1024
      %80 = vsyncadd [#allocation13], %s79
      %s81 = sshll.u32 [#allocation12], 4
      %s82 = int_to_ptr.vmem [resolvable:$true] %s81
      %87 = dma.hbm_to_vmem [thread:$0]  %s5, 1024, %s82, [#allocation13], 64, 64, 4
    $region25: #{tpu_custom_call.1} parent=1 // pred_fallthru
      _
    // Predicated region
    $region26: #{tpu_custom_call.1} parent=1 // pred_check
      _
    $region27: #{tpu_custom_call.1} parent=1 // pred_check_branch
      %89 = sbr.rel (0) target = $region29
    $region28: #{tpu_custom_call.1} parent=1 // pred_region
      %s91 = ssub.s32 1024, 1024
      %92 = vsyncadd [#allocation13], %s91
      %s93 = sshll.u32 [#allocation14], 4
      %s94 = int_to_ptr.vmem [resolvable:$true] %s93
      %99 = dma.hbm_to_vmem [thread:$0]  %s6, 1024, %s94, [#allocation13], 64, 64, 4
    $region29: #{tpu_custom_call.1} parent=1 // pred_fallthru
      _
    // Predicated region
    $region30: #{tpu_custom_call.1} parent=1 // pred_check
      _
    $region31: #{tpu_custom_call.1} parent=1 // pred_check_branch
      %101 = sbr.rel (0) target = $region33
    $region32: #{tpu_custom_call.1} parent=1 // pred_region
      _
    $region33: #{tpu_custom_call.1} parent=1 // pred_fallthru
      _
    // Predicated region
    $region34: #{tpu_custom_call.1} parent=1 // pred_check
      _
    $region35: #{tpu_custom_call.1} parent=1 // pred_check_branch
      %103 = sbr.rel (0) target = $region37
    $region36: #{tpu_custom_call.1} parent=1 // pred_region
      %104 = dma.done [#allocation4], 1024
    $region37: #{tpu_custom_call.1} parent=1 // pred_fallthru
      _
    // Predicated region
    $region38: #{tpu_custom_call.1} parent=1 // pred_check
      _
    $region39: #{tpu_custom_call.1} parent=1 // pred_check_branch
      %106 = sbr.rel (0) target = $region41
    $region40: #{tpu_custom_call.1} parent=1 // pred_region
      %107 = dma.done [#allocation7], 2048
    $region41: #{tpu_custom_call.1} parent=1 // pred_fallthru
      _
    // Predicated region
    $region42: #{tpu_custom_call.1} parent=1 // pred_check
      _
    $region43: #{tpu_custom_call.1} parent=1 // pred_check_branch
      %109 = sbr.rel (0) target = $region45
    $region44: #{tpu_custom_call.1} parent=1 // pred_region
      %110 = dma.done [#allocation7], 128
    $region45: #{tpu_custom_call.1} parent=1 // pred_fallthru
      _
    // Predicated region
    $region46: #{tpu_custom_call.1} parent=1 // pred_check
      _
    $region47: #{tpu_custom_call.1} parent=1 // pred_check_branch
      %112 = sbr.rel (0) target = $region49
    $region48: #{tpu_custom_call.1} parent=1 // pred_region
      %113 = dma.done [#allocation10], 4096
    $region49: #{tpu_custom_call.1} parent=1 // pred_fallthru
      _
    // Predicated region
    $region50: #{tpu_custom_call.1} parent=1 // pred_check
      _
    $region51: #{tpu_custom_call.1} parent=1 // pred_check_branch
      %115 = sbr.rel (0) target = $region53
    $region52: #{tpu_custom_call.1} parent=1 // pred_region
      %116 = dma.done [#allocation10], 4096
    $region53: #{tpu_custom_call.1} parent=1 // pred_fallthru
      _
    // Predicated region
    $region54: #{tpu_custom_call.1} parent=1 // pred_check
      _
    $region55: #{tpu_custom_call.1} parent=1 // pred_check_branch
      %118 = sbr.rel (0) target = $region57
    $region56: #{tpu_custom_call.1} parent=1 // pred_region
      %119 = dma.done [#allocation13], 1024
    $region57: #{tpu_custom_call.1} parent=1 // pred_fallthru
      _
    // Predicated region
    $region58: #{tpu_custom_call.1} parent=1 // pred_check
      _
    $region59: #{tpu_custom_call.1} parent=1 // pred_check_branch
      %121 = sbr.rel (0) target = $region61
    $region60: #{tpu_custom_call.1} parent=1 // pred_region
      %122 = dma.done [#allocation13], 1024
    $region61: #{tpu_custom_call.1} parent=1 // pred_fallthru
      _
    %v124 = vld [vmem:[#allocation3] sm:$0xff]
    %v125 = vld [vmem:[#allocation3 + $0x8] sm:$0xff]
    %v126 = vld [vmem:[#allocation3 + $0x10] sm:$0xff]
    %v127 = vld [vmem:[#allocation3 + $0x18] sm:$0xff]
    %v128 = vld [vmem:[#allocation3 + $0x20] sm:$0xff]
    %v129 = vld [vmem:[#allocation3 + $0x28] sm:$0xff]
    %v130 = vld [vmem:[#allocation3 + $0x30] sm:$0xff]
    %v131 = vld [vmem:[#allocation3 + $0x38] sm:$0xff]
    %v132 = vpack.c.bf16 %v125, %v124
    %v133 = vpack.c.bf16 %v127, %v126
    %v134 = vpack.c.bf16 %v129, %v128
    %v135 = vpack.c.bf16 %v131, %v130
    %v136 = vld [vmem:[#allocation6] sm:$0xff]
    %v137 = vld [vmem:[#allocation6 + $0x8] sm:$0xff]
    %v138 = vld [vmem:[#allocation6 + $0x10] sm:$0xff]
    %v139 = vld [vmem:[#allocation6 + $0x18] sm:$0xff]
    %v140 = vld [vmem:[#allocation6 + $0x20] sm:$0xff]
    %v141 = vld [vmem:[#allocation6 + $0x28] sm:$0xff]
    %v142 = vld [vmem:[#allocation6 + $0x30] sm:$0xff]
    %v143 = vld [vmem:[#allocation6 + $0x38] sm:$0xff]
    %v144 = vld [vmem:[#allocation6 + $0x40] sm:$0xff]
    %v145 = vld [vmem:[#allocation6 + $0x48] sm:$0xff]
    %v146 = vld [vmem:[#allocation6 + $0x50] sm:$0xff]
    %v147 = vld [vmem:[#allocation6 + $0x58] sm:$0xff]
    %v148 = vld [vmem:[#allocation6 + $0x60] sm:$0xff]
    %v149 = vld [vmem:[#allocation6 + $0x68] sm:$0xff]
    %v150 = vld [vmem:[#allocation6 + $0x70] sm:$0xff]
    %v151 = vld [vmem:[#allocation6 + $0x78] sm:$0xff]
    %v152 = vld [vmem:[#allocation8] sm:$0xff]
    %v154 = vlaneseq
    %v155 = vshrl.u32 %v154, 7
    %v156 = vsub.s32 0, %v155
    %v157 = vrot.slane %v152, %v156
    %v158 = vlaneseq
    %v159 = vshrl.u32 %v158, 7
    %v160 = vsub.s32 1, %v159
    %v161 = vrot.slane %v152, %v160
    %v162 = vlaneseq
    %v163 = vshrl.u32 %v162, 7
    %v164 = vsub.s32 2, %v163
    %v165 = vrot.slane %v152, %v164
    %v166 = vlaneseq
    %v167 = vshrl.u32 %v166, 7
    %v168 = vsub.s32 3, %v167
    %v169 = vrot.slane %v152, %v168
    %v170 = vlaneseq
    %v171 = vshrl.u32 %v170, 7
    %v172 = vsub.s32 4, %v171
    %v173 = vrot.slane %v152, %v172
    %v174 = vlaneseq
    %v175 = vshrl.u32 %v174, 7
    %v176 = vsub.s32 5, %v175
    %v177 = vrot.slane %v152, %v176
    %v178 = vlaneseq
    %v179 = vshrl.u32 %v178, 7
    %v180 = vsub.s32 6, %v179
    %v181 = vrot.slane %v152, %v180
    %v182 = vlaneseq
    %v183 = vshrl.u32 %v182, 7
    %v184 = vsub.s32 7, %v183
    %v185 = vrot.slane %v152, %v184
    %v210 = vunpack.c.l.b16 %v136
    %v211 = vunpack.c.h.b16 %v136
    %v212 = vunpack.c.l.b16 %v137
    %v213 = vunpack.c.h.b16 %v137
    %v214 = vunpack.c.l.b16 %v138
    %v215 = vunpack.c.h.b16 %v138
    %v216 = vunpack.c.l.b16 %v139
    %v217 = vunpack.c.h.b16 %v139
    %v218 = vunpack.c.l.b16 %v140
    %v219 = vunpack.c.h.b16 %v140
    %v220 = vunpack.c.l.b16 %v141
    %v221 = vunpack.c.h.b16 %v141
    %v222 = vunpack.c.l.b16 %v142
    %v223 = vunpack.c.h.b16 %v142
    %v224 = vunpack.c.l.b16 %v143
    %v225 = vunpack.c.h.b16 %v143
    %v226 = vunpack.c.l.b16 %v144
    %v227 = vunpack.c.h.b16 %v144
    %v228 = vunpack.c.l.b16 %v145
    %v229 = vunpack.c.h.b16 %v145
    %v230 = vunpack.c.l.b16 %v146
    %v231 = vunpack.c.h.b16 %v146
    %v232 = vunpack.c.l.b16 %v147
    %v233 = vunpack.c.h.b16 %v147
    %v234 = vunpack.c.l.b16 %v148
    %v235 = vunpack.c.h.b16 %v148
    %v236 = vunpack.c.l.b16 %v149
    %v237 = vunpack.c.h.b16 %v149
    %v238 = vunpack.c.l.b16 %v150
    %v239 = vunpack.c.h.b16 %v150
    %v240 = vunpack.c.l.b16 %v151
    %v241 = vunpack.c.h.b16 %v151
    %v242 = vpack.c.b16 %v218, %v210
    %v243 = vpack.c.b16 %v219, %v211
    %v244 = vpack.c.b16 %v220, %v212
    %v245 = vpack.c.b16 %v221, %v213
    %v246 = vpack.c.b16 %v222, %v214
    %v247 = vpack.c.b16 %v223, %v215
    %v248 = vpack.c.b16 %v224, %v216
    %v249 = vpack.c.b16 %v225, %v217
    %v250 = vpack.c.b16 %v234, %v226
    %v251 = vpack.c.b16 %v235, %v227
    %v252 = vpack.c.b16 %v236, %v228
    %v253 = vpack.c.b16 %v237, %v229
    %v254 = vpack.c.b16 %v238, %v230
    %v255 = vpack.c.b16 %v239, %v231
    %v256 = vpack.c.b16 %v240, %v232
    %v257 = vpack.c.b16 %v241, %v233
    %vm274 = vcmask 261120
    %v276 = vsel %vm274, %v132, 0
    %v279 = vsel %vm274, %v133, 0
    %v282 = vsel %vm274, %v134, 0
    %v285 = vsel %vm274, %v135, 0
    %287 = vmatprep.subr.bf16.mxu0 0
    %288 = vmatpush1.bf16.msra.mxu0 0
    %289 = vmatprep.subr.bf16.mxu0 0
    %290 = vmatpush1.bf16.msra.mxu0 0
    %291 = vmatprep.subr.bf16.mxu0 0
    %292 = vmatpush1.bf16.msra.mxu0 0
    %293 = vmatprep.subr.bf16.mxu0 0
    %294 = vmatpush1.bf16.msra.mxu0 0
    %295 = vmatprep.subr.bf16.mxu0 0
    %296 = vmatpush1.bf16.msra.mxu0 0
    %297 = vmatprep.subr.bf16.mxu0 0
    %298 = vmatpush1.bf16.msra.mxu0 0
    %299 = vmatprep.subr.bf16.mxu0 %v251
    %300 = vmatpush1.bf16.msra.mxu0 %v250
    %301 = vmatprep.subr.bf16.mxu0 %v243
    %302 = vmatpush1.bf16.msra.mxu0 %v242
    %303 = vmatprep.subr.bf16.mxu0 0
    %304 = vmatpush2.bf16.msra.mxu0 0
    %305 = vmatprep.subr.bf16.mxu0 0
    %306 = vmatpush2.bf16.msra.mxu0 0
    %307 = vmatprep.subr.bf16.mxu0 0
    %308 = vmatpush2.bf16.msra.mxu0 0
    %309 = vmatprep.subr.bf16.mxu0 0
    %310 = vmatpush2.bf16.msra.mxu0 0
    %311 = vmatprep.subr.bf16.mxu0 0
    %312 = vmatpush2.bf16.msra.mxu0 0
    %313 = vmatprep.subr.bf16.mxu0 0
    %314 = vmatpush2.bf16.msra.mxu0 0
    %315 = vmatprep.subr.bf16.mxu0 0
    %316 = vmatpush2.bf16.msra.mxu0 0
    %317 = vmatprep.subr.bf16.mxu0 0
    %318 = vmatpush2.bf16.msra.mxu0 0
    %319 = vmatprep.mubr.bf16.mxu0 0
    %320 = vmatmul.mubr.bf16.gmra.mxu0 %v276
    %v321 = vpop.f32.mrf.mxu0
    %v322 = vadd.f32 %v157, %v321
    %v323 = vpop.f32.mrf.mxu0
    %v324 = vadd.f32 %v161, %v323
    %v325 = vpop.f32.mrf.mxu0
    %v326 = vadd.f32 %v157, %v325
    %v327 = vpop.f32.mrf.mxu0
    %v328 = vadd.f32 %v161, %v327
    %329 = vmatprep.mubr.bf16.mxu0 0
    %330 = vmatmul.mubr.bf16.gmra.mxu0 %v279
    %v331 = vpop.f32.mrf.mxu0
    %v332 = vadd.f32 %v157, %v331
    %v333 = vpop.f32.mrf.mxu0
    %v334 = vadd.f32 %v161, %v333
    %v335 = vpop.f32.mrf.mxu0
    %v336 = vadd.f32 %v157, %v335
    %v337 = vpop.f32.mrf.mxu0
    %v338 = vadd.f32 %v161, %v337
    %339 = vmatprep.mubr.bf16.mxu0 0
    %340 = vmatmul.mubr.bf16.gmra.mxu0 %v282
    %v341 = vpop.f32.mrf.mxu0
    %v342 = vadd.f32 %v157, %v341
    %v343 = vpop.f32.mrf.mxu0
    %v344 = vadd.f32 %v161, %v343
    %v345 = vpop.f32.mrf.mxu0
    %v346 = vadd.f32 %v157, %v345
    %v347 = vpop.f32.mrf.mxu0
    %v348 = vadd.f32 %v161, %v347
    %349 = vmatprep.mubr.bf16.mxu0 0
    %350 = vmatmul.mubr.bf16.gmra.mxu0 %v285
    %v351 = vpop.f32.mrf.mxu0
    %v352 = vadd.f32 %v157, %v351
    %v353 = vpop.f32.mrf.mxu0
    %v354 = vadd.f32 %v161, %v353
    %v355 = vpop.f32.mrf.mxu0
    %v356 = vadd.f32 %v157, %v355
    %v357 = vpop.f32.mrf.mxu0
    %v358 = vadd.f32 %v161, %v357
    %359 = vdwg.mxu0
    %360 = vmatprep.subr.bf16.mxu0 0
    %361 = vmatpush1.bf16.msra.mxu0 0
    %362 = vmatprep.subr.bf16.mxu0 0
    %363 = vmatpush1.bf16.msra.mxu0 0
    %364 = vmatprep.subr.bf16.mxu0 0
    %365 = vmatpush1.bf16.msra.mxu0 0
    %366 = vmatprep.subr.bf16.mxu0 0
    %367 = vmatpush1.bf16.msra.mxu0 0
    %368 = vmatprep.subr.bf16.mxu0 0
    %369 = vmatpush1.bf16.msra.mxu0 0
    %370 = vmatprep.subr.bf16.mxu0 0
    %371 = vmatpush1.bf16.msra.mxu0 0
    %372 = vmatprep.subr.bf16.mxu0 %v253
    %373 = vmatpush1.bf16.msra.mxu0 %v252
    %374 = vmatprep.subr.bf16.mxu0 %v245
    %375 = vmatpush1.bf16.msra.mxu0 %v244
    %376 = vmatprep.subr.bf16.mxu0 0
    %377 = vmatpush2.bf16.msra.mxu0 0
    %378 = vmatprep.subr.bf16.mxu0 0
    %379 = vmatpush2.bf16.msra.mxu0 0
    %380 = vmatprep.subr.bf16.mxu0 0
    %381 = vmatpush2.bf16.msra.mxu0 0
    %382 = vmatprep.subr.bf16.mxu0 0
    %383 = vmatpush2.bf16.msra.mxu0 0
    %384 = vmatprep.subr.bf16.mxu0 0
    %385 = vmatpush2.bf16.msra.mxu0 0
    %386 = vmatprep.subr.bf16.mxu0 0
    %387 = vmatpush2.bf16.msra.mxu0 0
    %388 = vmatprep.subr.bf16.mxu0 0
    %389 = vmatpush2.bf16.msra.mxu0 0
    %390 = vmatprep.subr.bf16.mxu0 0
    %391 = vmatpush2.bf16.msra.mxu0 0
    %392 = vmatprep.mubr.bf16.mxu0 0
    %393 = vmatmul.mubr.bf16.gmra.mxu0 %v276
    %v394 = vpop.f32.mrf.mxu0
    %v395 = vadd.f32 %v165, %v394
    %v396 = vpop.f32.mrf.mxu0
    %v397 = vadd.f32 %v169, %v396
    %v398 = vpop.f32.mrf.mxu0
    %v399 = vadd.f32 %v165, %v398
    %v400 = vpop.f32.mrf.mxu0
    %v401 = vadd.f32 %v169, %v400
    %402 = vmatprep.mubr.bf16.mxu0 0
    %403 = vmatmul.mubr.bf16.gmra.mxu0 %v279
    %v404 = vpop.f32.mrf.mxu0
    %v405 = vadd.f32 %v165, %v404
    %v406 = vpop.f32.mrf.mxu0
    %v407 = vadd.f32 %v169, %v406
    %v408 = vpop.f32.mrf.mxu0
    %v409 = vadd.f32 %v165, %v408
    %v410 = vpop.f32.mrf.mxu0
    %v411 = vadd.f32 %v169, %v410
    %412 = vmatprep.mubr.bf16.mxu0 0
    %413 = vmatmul.mubr.bf16.gmra.mxu0 %v282
    %v414 = vpop.f32.mrf.mxu0
    %v415 = vadd.f32 %v165, %v414
    %v416 = vpop.f32.mrf.mxu0
    %v417 = vadd.f32 %v169, %v416
    %v418 = vpop.f32.mrf.mxu0
    %v419 = vadd.f32 %v165, %v418
    %v420 = vpop.f32.mrf.mxu0
    %v421 = vadd.f32 %v169, %v420
    %422 = vmatprep.mubr.bf16.mxu0 0
    %423 = vmatmul.mubr.bf16.gmra.mxu0 %v285
    %v424 = vpop.f32.mrf.mxu0
    %v425 = vadd.f32 %v165, %v424
    %v426 = vpop.f32.mrf.mxu0
    %v427 = vadd.f32 %v169, %v426
    %v428 = vpop.f32.mrf.mxu0
    %v429 = vadd.f32 %v165, %v428
    %v430 = vpop.f32.mrf.mxu0
    %v431 = vadd.f32 %v169, %v430
    %432 = vdwg.mxu0
    %433 = vmatprep.subr.bf16.mxu0 0
    %434 = vmatpush1.bf16.msra.mxu0 0
    %435 = vmatprep.subr.bf16.mxu0 0
    %436 = vmatpush1.bf16.msra.mxu0 0
    %437 = vmatprep.subr.bf16.mxu0 0
    %438 = vmatpush1.bf16.msra.mxu0 0
    %439 = vmatprep.subr.bf16.mxu0 0
    %440 = vmatpush1.bf16.msra.mxu0 0
    %441 = vmatprep.subr.bf16.mxu0 0
    %442 = vmatpush1.bf16.msra.mxu0 0
    %443 = vmatprep.subr.bf16.mxu0 0
    %444 = vmatpush1.bf16.msra.mxu0 0
    %445 = vmatprep.subr.bf16.mxu0 %v255
    %446 = vmatpush1.bf16.msra.mxu0 %v254
    %447 = vmatprep.subr.bf16.mxu0 %v247
    %448 = vmatpush1.bf16.msra.mxu0 %v246
    %449 = vmatprep.subr.bf16.mxu0 0
    %450 = vmatpush2.bf16.msra.mxu0 0
    %451 = vmatprep.subr.bf16.mxu0 0
    %452 = vmatpush2.bf16.msra.mxu0 0
    %453 = vmatprep.subr.bf16.mxu0 0
    %454 = vmatpush2.bf16.msra.mxu0 0
    %455 = vmatprep.subr.bf16.mxu0 0
    %456 = vmatpush2.bf16.msra.mxu0 0
    %457 = vmatprep.subr.bf16.mxu0 0
    %458 = vmatpush2.bf16.msra.mxu0 0
    %459 = vmatprep.subr.bf16.mxu0 0
    %460 = vmatpush2.bf16.msra.mxu0 0
    %461 = vmatprep.subr.bf16.mxu0 0
    %462 = vmatpush2.bf16.msra.mxu0 0
    %463 = vmatprep.subr.bf16.mxu0 0
    %464 = vmatpush2.bf16.msra.mxu0 0
    %465 = vmatprep.mubr.bf16.mxu0 0
    %466 = vmatmul.mubr.bf16.gmra.mxu0 %v276
    %v467 = vpop.f32.mrf.mxu0
    %v468 = vadd.f32 %v173, %v467
    %v469 = vpop.f32.mrf.mxu0
    %v470 = vadd.f32 %v177, %v469
    %v471 = vpop.f32.mrf.mxu0
    %v472 = vadd.f32 %v173, %v471
    %v473 = vpop.f32.mrf.mxu0
    %v474 = vadd.f32 %v177, %v473
    %475 = vmatprep.mubr.bf16.mxu0 0
    %476 = vmatmul.mubr.bf16.gmra.mxu0 %v279
    %v477 = vpop.f32.mrf.mxu0
    %v478 = vadd.f32 %v173, %v477
    %v479 = vpop.f32.mrf.mxu0
    %v480 = vadd.f32 %v177, %v479
    %v481 = vpop.f32.mrf.mxu0
    %v482 = vadd.f32 %v173, %v481
    %v483 = vpop.f32.mrf.mxu0
    %v484 = vadd.f32 %v177, %v483
    %485 = vmatprep.mubr.bf16.mxu0 0
    %486 = vmatmul.mubr.bf16.gmra.mxu0 %v282
    %v487 = vpop.f32.mrf.mxu0
    %v488 = vadd.f32 %v173, %v487
    %v489 = vpop.f32.mrf.mxu0
    %v490 = vadd.f32 %v177, %v489
    %v491 = vpop.f32.mrf.mxu0
    %v492 = vadd.f32 %v173, %v491
    %v493 = vpop.f32.mrf.mxu0
    %v494 = vadd.f32 %v177, %v493
    %495 = vmatprep.mubr.bf16.mxu0 0
    %496 = vmatmul.mubr.bf16.gmra.mxu0 %v285
    %v497 = vpop.f32.mrf.mxu0
    %v498 = vadd.f32 %v173, %v497
    %v499 = vpop.f32.mrf.mxu0
    %v500 = vadd.f32 %v177, %v499
    %v501 = vpop.f32.mrf.mxu0
    %v502 = vadd.f32 %v173, %v501
    %v503 = vpop.f32.mrf.mxu0
    %v504 = vadd.f32 %v177, %v503
    %505 = vdwg.mxu0
    %506 = vmatprep.subr.bf16.mxu0 0
    %507 = vmatpush1.bf16.msra.mxu0 0
    %508 = vmatprep.subr.bf16.mxu0 0
    %509 = vmatpush1.bf16.msra.mxu0 0
    %510 = vmatprep.subr.bf16.mxu0 0
    %511 = vmatpush1.bf16.msra.mxu0 0
    %512 = vmatprep.subr.bf16.mxu0 0
    %513 = vmatpush1.bf16.msra.mxu0 0
    %514 = vmatprep.subr.bf16.mxu0 0
    %515 = vmatpush1.bf16.msra.mxu0 0
    %516 = vmatprep.subr.bf16.mxu0 0
    %517 = vmatpush1.bf16.msra.mxu0 0
    %518 = vmatprep.subr.bf16.mxu0 %v257
    %519 = vmatpush1.bf16.msra.mxu0 %v256
    %520 = vmatprep.subr.bf16.mxu0 %v249
    %521 = vmatpush1.bf16.msra.mxu0 %v248
    %522 = vmatprep.subr.bf16.mxu0 0
    %523 = vmatpush2.bf16.msra.mxu0 0
    %524 = vmatprep.subr.bf16.mxu0 0
    %525 = vmatpush2.bf16.msra.mxu0 0
    %526 = vmatprep.subr.bf16.mxu0 0
    %527 = vmatpush2.bf16.msra.mxu0 0
    %528 = vmatprep.subr.bf16.mxu0 0
    %529 = vmatpush2.bf16.msra.mxu0 0
    %530 = vmatprep.subr.bf16.mxu0 0
    %531 = vmatpush2.bf16.msra.mxu0 0
    %532 = vmatprep.subr.bf16.mxu0 0
    %533 = vmatpush2.bf16.msra.mxu0 0
    %534 = vmatprep.subr.bf16.mxu0 0
    %535 = vmatpush2.bf16.msra.mxu0 0
    %536 = vmatprep.subr.bf16.mxu0 0
    %537 = vmatpush2.bf16.msra.mxu0 0
    %538 = vmatprep.mubr.bf16.mxu0 0
    %539 = vmatmul.mubr.bf16.gmra.mxu0 %v276
    %v540 = vpop.f32.mrf.mxu0
    %v541 = vadd.f32 %v181, %v540
    %v542 = vpop.f32.mrf.mxu0
    %v543 = vadd.f32 %v185, %v542
    %v544 = vpop.f32.mrf.mxu0
    %v545 = vadd.f32 %v181, %v544
    %v546 = vpop.f32.mrf.mxu0
    %v547 = vadd.f32 %v185, %v546
    %548 = vmatprep.mubr.bf16.mxu0 0
    %549 = vmatmul.mubr.bf16.gmra.mxu0 %v279
    %v550 = vpop.f32.mrf.mxu0
    %v551 = vadd.f32 %v181, %v550
    %v552 = vpop.f32.mrf.mxu0
    %v553 = vadd.f32 %v185, %v552
    %v554 = vpop.f32.mrf.mxu0
    %v555 = vadd.f32 %v181, %v554
    %v556 = vpop.f32.mrf.mxu0
    %v557 = vadd.f32 %v185, %v556
    %558 = vmatprep.mubr.bf16.mxu0 0
    %559 = vmatmul.mubr.bf16.gmra.mxu0 %v282
    %v560 = vpop.f32.mrf.mxu0
    %v561 = vadd.f32 %v181, %v560
    %v562 = vpop.f32.mrf.mxu0
    %v563 = vadd.f32 %v185, %v562
    %v564 = vpop.f32.mrf.mxu0
    %v565 = vadd.f32 %v181, %v564
    %v566 = vpop.f32.mrf.mxu0
    %v567 = vadd.f32 %v185, %v566
    %568 = vmatprep.mubr.bf16.mxu0 0
    %569 = vmatmul.mubr.bf16.gmra.mxu0 %v285
    %v570 = vpop.f32.mrf.mxu0
    %v571 = vadd.f32 %v181, %v570
    %v572 = vpop.f32.mrf.mxu0
    %v573 = vadd.f32 %v185, %v572
    %v574 = vpop.f32.mrf.mxu0
    %v575 = vadd.f32 %v181, %v574
    %v576 = vpop.f32.mrf.mxu0
    %v577 = vadd.f32 %v185, %v576
    %578 = vdwg.mxu0
    %579 = vst [vmem:[#allocation2] sm:$0xff] %v322
    %580 = vst [vmem:[#allocation2 + $0x8] sm:$0xff] %v324
    %581 = vst [vmem:[#allocation2 + $0x10] sm:$0xff] %v395
    %582 = vst [vmem:[#allocation2 + $0x18] sm:$0xff] %v397
    %583 = vst [vmem:[#allocation2 + $0x20] sm:$0xff] %v468
    %584 = vst [vmem:[#allocation2 + $0x28] sm:$0xff] %v470
    %585 = vst [vmem:[#allocation2 + $0x30] sm:$0xff] %v541
    %586 = vst [vmem:[#allocation2 + $0x38] sm:$0xff] %v543
    %587 = vst [vmem:[#allocation2 + $0x40] sm:$0xff] %v326
    %588 = vst [vmem:[#allocation2 + $0x48] sm:$0xff] %v328
    %589 = vst [vmem:[#allocation2 + $0x50] sm:$0xff] %v399
    %590 = vst [vmem:[#allocation2 + $0x58] sm:$0xff] %v401
    %591 = vst [vmem:[#allocation2 + $0x60] sm:$0xff] %v472
    %592 = vst [vmem:[#allocation2 + $0x68] sm:$0xff] %v474
    %593 = vst [vmem:[#allocation2 + $0x70] sm:$0xff] %v545
    %594 = vst [vmem:[#allocation2 + $0x78] sm:$0xff] %v547
    %595 = vst [vmem:[#allocation2 + $0x80] sm:$0xff] %v332
    %596 = vst [vmem:[#allocation2 + $0x88] sm:$0xff] %v334
    %597 = vst [vmem:[#allocation2 + $0x90] sm:$0xff] %v405
    %598 = vst [vmem:[#allocation2 + $0x98] sm:$0xff] %v407
    %599 = vst [vmem:[#allocation2 + $0xa0] sm:$0xff] %v478
    %600 = vst [vmem:[#allocation2 + $0xa8] sm:$0xff] %v480
    %601 = vst [vmem:[#allocation2 + $0xb0] sm:$0xff] %v551
    %602 = vst [vmem:[#allocation2 + $0xb8] sm:$0xff] %v553
    %603 = vst [vmem:[#allocation2 + $0xc0] sm:$0xff] %v336
    %604 = vst [vmem:[#allocation2 + $0xc8] sm:$0xff] %v338
    %605 = vst [vmem:[#allocation2 + $0xd0] sm:$0xff] %v409
    %606 = vst [vmem:[#allocation2 + $0xd8] sm:$0xff] %v411
    %607 = vst [vmem:[#allocation2 + $0xe0] sm:$0xff] %v482
    %608 = vst [vmem:[#allocation2 + $0xe8] sm:$0xff] %v484
    %609 = vst [vmem:[#allocation2 + $0xf0] sm:$0xff] %v555
    %610 = vst [vmem:[#allocation2 + $0xf8] sm:$0xff] %v557
    %611 = vst [vmem:[#allocation2 + $0x100] sm:$0xff] %v342
    %612 = vst [vmem:[#allocation2 + $0x108] sm:$0xff] %v344
    %613 = vst [vmem:[#allocation2 + $0x110] sm:$0xff] %v415
    %614 = vst [vmem:[#allocation2 + $0x118] sm:$0xff] %v417
    %615 = vst [vmem:[#allocation2 + $0x120] sm:$0xff] %v488
    %616 = vst [vmem:[#allocation2 + $0x128] sm:$0xff] %v490
    %617 = vst [vmem:[#allocation2 + $0x130] sm:$0xff] %v561
    %618 = vst [vmem:[#allocation2 + $0x138] sm:$0xff] %v563
    %619 = vst [vmem:[#allocation2 + $0x140] sm:$0xff] %v346
    %620 = vst [vmem:[#allocation2 + $0x148] sm:$0xff] %v348
    %621 = vst [vmem:[#allocation2 + $0x150] sm:$0xff] %v419
    %622 = vst [vmem:[#allocation2 + $0x158] sm:$0xff] %v421
    %623 = vst [vmem:[#allocation2 + $0x160] sm:$0xff] %v492
    %624 = vst [vmem:[#allocation2 + $0x168] sm:$0xff] %v494
    %625 = vst [vmem:[#allocation2 + $0x170] sm:$0xff] %v565
    %626 = vst [vmem:[#allocation2 + $0x178] sm:$0xff] %v567
    %627 = vst [vmem:[#allocation2 + $0x180] sm:$0xff] %v352
    %628 = vst [vmem:[#allocation2 + $0x188] sm:$0xff] %v354
    %629 = vst [vmem:[#allocation2 + $0x190] sm:$0xff] %v425
    %630 = vst [vmem:[#allocation2 + $0x198] sm:$0xff] %v427
    %631 = vst [vmem:[#allocation2 + $0x1a0] sm:$0xff] %v498
    %632 = vst [vmem:[#allocation2 + $0x1a8] sm:$0xff] %v500
    %633 = vst [vmem:[#allocation2 + $0x1b0] sm:$0xff] %v571
    %634 = vst [vmem:[#allocation2 + $0x1b8] sm:$0xff] %v573
    %635 = vst [vmem:[#allocation2 + $0x1c0] sm:$0xff] %v356
    %636 = vst [vmem:[#allocation2 + $0x1c8] sm:$0xff] %v358
    %637 = vst [vmem:[#allocation2 + $0x1d0] sm:$0xff] %v429
    %638 = vst [vmem:[#allocation2 + $0x1d8] sm:$0xff] %v431
    %639 = vst [vmem:[#allocation2 + $0x1e0] sm:$0xff] %v502
    %640 = vst [vmem:[#allocation2 + $0x1e8] sm:$0xff] %v504
    %641 = vst [vmem:[#allocation2 + $0x1f0] sm:$0xff] %v575
    %642 = vst [vmem:[#allocation2 + $0x1f8] sm:$0xff] %v577
    %v643 = vld [vmem:[#allocation9] sm:$0xff]
    %v644 = vld [vmem:[#allocation9 + $0x8] sm:$0xff]
    %v645 = vld [vmem:[#allocation9 + $0x10] sm:$0xff]
    %v646 = vld [vmem:[#allocation9 + $0x18] sm:$0xff]
    %v647 = vld [vmem:[#allocation9 + $0x20] sm:$0xff]
    %v648 = vld [vmem:[#allocation9 + $0x28] sm:$0xff]
    %v649 = vld [vmem:[#allocation9 + $0x30] sm:$0xff]
    %v650 = vld [vmem:[#allocation9 + $0x38] sm:$0xff]
    %v651 = vld [vmem:[#allocation9 + $0x40] sm:$0xff]
    %v652 = vld [vmem:[#allocation9 + $0x48] sm:$0xff]
    %v653 = vld [vmem:[#allocation9 + $0x50] sm:$0xff]
    %v654 = vld [vmem:[#allocation9 + $0x58] sm:$0xff]
    %v655 = vld [vmem:[#allocation9 + $0x60] sm:$0xff]
    %v656 = vld [vmem:[#allocation9 + $0x68] sm:$0xff]
    %v657 = vld [vmem:[#allocation9 + $0x70] sm:$0xff]
    %v658 = vld [vmem:[#allocation9 + $0x78] sm:$0xff]
    %v659 = vld [vmem:[#allocation9 + $0x80] sm:$0xff]
    %v660 = vld [vmem:[#allocation9 + $0x88] sm:$0xff]
    %v661 = vld [vmem:[#allocation9 + $0x90] sm:$0xff]
    %v662 = vld [vmem:[#allocation9 + $0x98] sm:$0xff]
    %v663 = vld [vmem:[#allocation9 + $0xa0] sm:$0xff]
    %v664 = vld [vmem:[#allocation9 + $0xa8] sm:$0xff]
    %v665 = vld [vmem:[#allocation9 + $0xb0] sm:$0xff]
    %v666 = vld [vmem:[#allocation9 + $0xb8] sm:$0xff]
    %v667 = vld [vmem:[#allocation9 + $0xc0] sm:$0xff]
    %v668 = vld [vmem:[#allocation9 + $0xc8] sm:$0xff]
    %v669 = vld [vmem:[#allocation9 + $0xd0] sm:$0xff]
    %v670 = vld [vmem:[#allocation9 + $0xd8] sm:$0xff]
    %v671 = vld [vmem:[#allocation9 + $0xe0] sm:$0xff]
    %v672 = vld [vmem:[#allocation9 + $0xe8] sm:$0xff]
    %v673 = vld [vmem:[#allocation9 + $0xf0] sm:$0xff]
    %v674 = vld [vmem:[#allocation9 + $0xf8] sm:$0xff]
    %v675 = vld [vmem:[#allocation11] sm:$0xff]
    %v676 = vld [vmem:[#allocation11 + $0x8] sm:$0xff]
    %v677 = vld [vmem:[#allocation11 + $0x10] sm:$0xff]
    %v678 = vld [vmem:[#allocation11 + $0x18] sm:$0xff]
    %v679 = vld [vmem:[#allocation11 + $0x20] sm:$0xff]
    %v680 = vld [vmem:[#allocation11 + $0x28] sm:$0xff]
    %v681 = vld [vmem:[#allocation11 + $0x30] sm:$0xff]
    %v682 = vld [vmem:[#allocation11 + $0x38] sm:$0xff]
    %v683 = vld [vmem:[#allocation11 + $0x40] sm:$0xff]
    %v684 = vld [vmem:[#allocation11 + $0x48] sm:$0xff]
    %v685 = vld [vmem:[#allocation11 + $0x50] sm:$0xff]
    %v686 = vld [vmem:[#allocation11 + $0x58] sm:$0xff]
    %v687 = vld [vmem:[#allocation11 + $0x60] sm:$0xff]
    %v688 = vld [vmem:[#allocation11 + $0x68] sm:$0xff]
    %v689 = vld [vmem:[#allocation11 + $0x70] sm:$0xff]
    %v690 = vld [vmem:[#allocation11 + $0x78] sm:$0xff]
    %v691 = vld [vmem:[#allocation11 + $0x80] sm:$0xff]
    %v692 = vld [vmem:[#allocation11 + $0x88] sm:$0xff]
    %v693 = vld [vmem:[#allocation11 + $0x90] sm:$0xff]
    %v694 = vld [vmem:[#allocation11 + $0x98] sm:$0xff]
    %v695 = vld [vmem:[#allocation11 + $0xa0] sm:$0xff]
    %v696 = vld [vmem:[#allocation11 + $0xa8] sm:$0xff]
    %v697 = vld [vmem:[#allocation11 + $0xb0] sm:$0xff]
    %v698 = vld [vmem:[#allocation11 + $0xb8] sm:$0xff]
    %v699 = vld [vmem:[#allocation11 + $0xc0] sm:$0xff]
    %v700 = vld [vmem:[#allocation11 + $0xc8] sm:$0xff]
    %v701 = vld [vmem:[#allocation11 + $0xd0] sm:$0xff]
    %v702 = vld [vmem:[#allocation11 + $0xd8] sm:$0xff]
    %v703 = vld [vmem:[#allocation11 + $0xe0] sm:$0xff]
    %v704 = vld [vmem:[#allocation11 + $0xe8] sm:$0xff]
    %v705 = vld [vmem:[#allocation11 + $0xf0] sm:$0xff]
    %v706 = vld [vmem:[#allocation11 + $0xf8] sm:$0xff]
    %v707 = vld [vmem:[#allocation2] sm:$0xff]
    %v708 = vld [vmem:[#allocation2 + $0x8] sm:$0xff]
    %v709 = vld [vmem:[#allocation2 + $0x10] sm:$0xff]
    %v710 = vld [vmem:[#allocation2 + $0x18] sm:$0xff]
    %v711 = vld [vmem:[#allocation2 + $0x20] sm:$0xff]
    %v712 = vld [vmem:[#allocation2 + $0x28] sm:$0xff]
    %v713 = vld [vmem:[#allocation2 + $0x30] sm:$0xff]
    %v714 = vld [vmem:[#allocation2 + $0x38] sm:$0xff]
    %s715 = scalar_lea.vmem [#allocation2], 448
    %v716 = vld [vmem:[%s715] sm:$0xff]
    %v717 = vld [vmem:[%s715 + $0x8] sm:$0xff]
    %v718 = vld [vmem:[%s715 + $0x10] sm:$0xff]
    %v719 = vld [vmem:[%s715 + $0x18] sm:$0xff]
    %v720 = vld [vmem:[%s715 + $0x20] sm:$0xff]
    %v721 = vld [vmem:[%s715 + $0x28] sm:$0xff]
    %v722 = vld [vmem:[%s715 + $0x30] sm:$0xff]
    %v723 = vld [vmem:[%s715 + $0x38] sm:$0xff]
    %v756 = vunpack.c.l.b16 %v643
    %v757 = vunpack.c.h.b16 %v643
    %v758 = vunpack.c.l.b16 %v644
    %v759 = vunpack.c.h.b16 %v644
    %v760 = vunpack.c.l.b16 %v645
    %v761 = vunpack.c.h.b16 %v645
    %v762 = vunpack.c.l.b16 %v646
    %v763 = vunpack.c.h.b16 %v646
    %v764 = vunpack.c.l.b16 %v647
    %v765 = vunpack.c.h.b16 %v647
    %v766 = vunpack.c.l.b16 %v648
    %v767 = vunpack.c.h.b16 %v648
    %v768 = vunpack.c.l.b16 %v649
    %v769 = vunpack.c.h.b16 %v649
    %v770 = vunpack.c.l.b16 %v650
    %v771 = vunpack.c.h.b16 %v650
    %v772 = vunpack.c.l.b16 %v651
    %v773 = vunpack.c.h.b16 %v651
    %v774 = vunpack.c.l.b16 %v652
    %v775 = vunpack.c.h.b16 %v652
    %v776 = vunpack.c.l.b16 %v653
    %v777 = vunpack.c.h.b16 %v653
    %v778 = vunpack.c.l.b16 %v654
    %v779 = vunpack.c.h.b16 %v654
    %v780 = vunpack.c.l.b16 %v655
    %v781 = vunpack.c.h.b16 %v655
    %v782 = vunpack.c.l.b16 %v656
    %v783 = vunpack.c.h.b16 %v656
    %v784 = vunpack.c.l.b16 %v657
    %v785 = vunpack.c.h.b16 %v657
    %v786 = vunpack.c.l.b16 %v658
    %v787 = vunpack.c.h.b16 %v658
    %v788 = vunpack.c.l.b16 %v659
    %v789 = vunpack.c.h.b16 %v659
    %v790 = vunpack.c.l.b16 %v660
    %v791 = vunpack.c.h.b16 %v660
    %v792 = vunpack.c.l.b16 %v661
    %v793 = vunpack.c.h.b16 %v661
    %v794 = vunpack.c.l.b16 %v662
    %v795 = vunpack.c.h.b16 %v662
    %v796 = vunpack.c.l.b16 %v663
    %v797 = vunpack.c.h.b16 %v663
    %v798 = vunpack.c.l.b16 %v664
    %v799 = vunpack.c.h.b16 %v664
    %v800 = vunpack.c.l.b16 %v665
    %v801 = vunpack.c.h.b16 %v665
    %v802 = vunpack.c.l.b16 %v666
    %v803 = vunpack.c.h.b16 %v666
    %v804 = vunpack.c.l.b16 %v667
    %v805 = vunpack.c.h.b16 %v667
    %v806 = vunpack.c.l.b16 %v668
    %v807 = vunpack.c.h.b16 %v668
    %v808 = vunpack.c.l.b16 %v669
    %v809 = vunpack.c.h.b16 %v669
    %v810 = vunpack.c.l.b16 %v670
    %v811 = vunpack.c.h.b16 %v670
    %v812 = vunpack.c.l.b16 %v671
    %v813 = vunpack.c.h.b16 %v671
    %v814 = vunpack.c.l.b16 %v672
    %v815 = vunpack.c.h.b16 %v672
    %v816 = vunpack.c.l.b16 %v673
    %v817 = vunpack.c.h.b16 %v673
    %v818 = vunpack.c.l.b16 %v674
    %v819 = vunpack.c.h.b16 %v674
    %v820 = vpack.c.b16 %v760, %v756
    %v821 = vpack.c.b16 %v761, %v757
    %v822 = vpack.c.b16 %v762, %v758
    %v823 = vpack.c.b16 %v763, %v759
    %v824 = vpack.c.b16 %v768, %v764
    %v825 = vpack.c.b16 %v769, %v765
    %v826 = vpack.c.b16 %v770, %v766
    %v827 = vpack.c.b16 %v771, %v767
    %v828 = vpack.c.b16 %v776, %v772
    %v829 = vpack.c.b16 %v777, %v773
    %v830 = vpack.c.b16 %v778, %v774
    %v831 = vpack.c.b16 %v779, %v775
    %v832 = vpack.c.b16 %v784, %v780
    %v833 = vpack.c.b16 %v785, %v781
    %v834 = vpack.c.b16 %v786, %v782
    %v835 = vpack.c.b16 %v787, %v783
    %v836 = vpack.c.b16 %v792, %v788
    %v837 = vpack.c.b16 %v793, %v789
    %v838 = vpack.c.b16 %v794, %v790
    %v839 = vpack.c.b16 %v795, %v791
    %v840 = vpack.c.b16 %v800, %v796
    %v841 = vpack.c.b16 %v801, %v797
    %v842 = vpack.c.b16 %v802, %v798
    %v843 = vpack.c.b16 %v803, %v799
    %v844 = vpack.c.b16 %v808, %v804
    %v845 = vpack.c.b16 %v809, %v805
    %v846 = vpack.c.b16 %v810, %v806
    %v847 = vpack.c.b16 %v811, %v807
    %v848 = vpack.c.b16 %v816, %v812
    %v849 = vpack.c.b16 %v817, %v813
    %v850 = vpack.c.b16 %v818, %v814
    %v851 = vpack.c.b16 %v819, %v815
    %884 = vmatprep.subr.bf16.mxu0 %v849
    %885 = vmatpush1.bf16.msra.mxu0 %v848
    %886 = vmatprep.subr.bf16.mxu0 %v845
    %887 = vmatpush1.bf16.msra.mxu0 %v844
    %888 = vmatprep.subr.bf16.mxu0 %v841
    %889 = vmatpush1.bf16.msra.mxu0 %v840
    %890 = vmatprep.subr.bf16.mxu0 %v837
    %891 = vmatpush1.bf16.msra.mxu0 %v836
    %892 = vmatprep.subr.bf16.mxu0 %v833
    %893 = vmatpush1.bf16.msra.mxu0 %v832
    %894 = vmatprep.subr.bf16.mxu0 %v829
    %895 = vmatpush1.bf16.msra.mxu0 %v828
    %896 = vmatprep.subr.bf16.mxu0 %v825
    %897 = vmatpush1.bf16.msra.mxu0 %v824
    %898 = vmatprep.subr.bf16.mxu0 %v821
    %899 = vmatpush1.bf16.msra.mxu0 %v820
    %900 = vmatprep.subr.bf16.mxu0 0
    %901 = vmatpush2.bf16.msra.mxu0 0
    %902 = vmatprep.subr.bf16.mxu0 0
    %903 = vmatpush2.bf16.msra.mxu0 0
    %904 = vmatprep.subr.bf16.mxu0 0
    %905 = vmatpush2.bf16.msra.mxu0 0
    %906 = vmatprep.subr.bf16.mxu0 0
    %907 = vmatpush2.bf16.msra.mxu0 0
    %908 = vmatprep.subr.bf16.mxu0 0
    %909 = vmatpush2.bf16.msra.mxu0 0
    %910 = vmatprep.subr.bf16.mxu0 0
    %911 = vmatpush2.bf16.msra.mxu0 0
    %912 = vmatprep.subr.bf16.mxu0 0
    %913 = vmatpush2.bf16.msra.mxu0 0
    %914 = vmatprep.subr.bf16.mxu0 0
    %915 = vmatpush2.bf16.msra.mxu0 0
    %916 = vmatprep.mubr.bf16.mxu0 0
    %917 = vmatmul.mubr.bf16.gmra.mxu0 0
    %v918 = vpop.f32.mrf.mxu0
    %v919 = vadd.f32 0.0, %v918
    %v920 = vpop.f32.mrf.mxu0
    %v921 = vadd.f32 0.0, %v920
    %v922 = vpop.f32.mrf.mxu0
    %v923 = vpop.f32.mrf.mxu0
    %924 = vdwg.mxu0
    %925 = vmatprep.subr.bf16.mxu0 %v851
    %926 = vmatpush1.bf16.msra.mxu0 %v850
    %927 = vmatprep.subr.bf16.mxu0 %v847
    %928 = vmatpush1.bf16.msra.mxu0 %v846
    %929 = vmatprep.subr.bf16.mxu0 %v843
    %930 = vmatpush1.bf16.msra.mxu0 %v842
    %931 = vmatprep.subr.bf16.mxu0 %v839
    %932 = vmatpush1.bf16.msra.mxu0 %v838
    %933 = vmatprep.subr.bf16.mxu0 %v835
    %934 = vmatpush1.bf16.msra.mxu0 %v834
    %935 = vmatprep.subr.bf16.mxu0 %v831
    %936 = vmatpush1.bf16.msra.mxu0 %v830
    %937 = vmatprep.subr.bf16.mxu0 %v827
    %938 = vmatpush1.bf16.msra.mxu0 %v826
    %939 = vmatprep.subr.bf16.mxu0 %v823
    %940 = vmatpush1.bf16.msra.mxu0 %v822
    %941 = vmatprep.subr.bf16.mxu0 0
    %942 = vmatpush2.bf16.msra.mxu0 0
    %943 = vmatprep.subr.bf16.mxu0 0
    %944 = vmatpush2.bf16.msra.mxu0 0
    %945 = vmatprep.subr.bf16.mxu0 0
    %946 = vmatpush2.bf16.msra.mxu0 0
    %947 = vmatprep.subr.bf16.mxu0 0
    %948 = vmatpush2.bf16.msra.mxu0 0
    %949 = vmatprep.subr.bf16.mxu0 0
    %950 = vmatpush2.bf16.msra.mxu0 0
    %951 = vmatprep.subr.bf16.mxu0 0
    %952 = vmatpush2.bf16.msra.mxu0 0
    %953 = vmatprep.subr.bf16.mxu0 0
    %954 = vmatpush2.bf16.msra.mxu0 0
    %955 = vmatprep.subr.bf16.mxu0 0
    %956 = vmatpush2.bf16.msra.mxu0 0
    %957 = vmatprep.mubr.bf16.mxu0 0
    %958 = vmatmul.mubr.bf16.gmra.mxu0 0
    %v959 = vpop.f32.mrf.mxu0
    %v960 = vadd.f32 0.0, %v959
    %v961 = vpop.f32.mrf.mxu0
    %v962 = vadd.f32 0.0, %v961
    %v963 = vpop.f32.mrf.mxu0
    %v964 = vpop.f32.mrf.mxu0
    %965 = vdwg.mxu0
    %v966 = vadd.f32 %v707, %v919
    %v967 = vadd.f32 %v708, %v921
    %v968 = vadd.f32 %v709, %v960
    %v969 = vadd.f32 %v710, %v962
    %v1002 = vunpack.c.l.b16 %v675
    %v1003 = vunpack.c.h.b16 %v675
    %v1004 = vunpack.c.l.b16 %v676
    %v1005 = vunpack.c.h.b16 %v676
    %v1006 = vunpack.c.l.b16 %v677
    %v1007 = vunpack.c.h.b16 %v677
    %v1008 = vunpack.c.l.b16 %v678
    %v1009 = vunpack.c.h.b16 %v678
    %v1010 = vunpack.c.l.b16 %v679
    %v1011 = vunpack.c.h.b16 %v679
    %v1012 = vunpack.c.l.b16 %v680
    %v1013 = vunpack.c.h.b16 %v680
    %v1014 = vunpack.c.l.b16 %v681
    %v1015 = vunpack.c.h.b16 %v681
    %v1016 = vunpack.c.l.b16 %v682
    %v1017 = vunpack.c.h.b16 %v682
    %v1018 = vunpack.c.l.b16 %v683
    %v1019 = vunpack.c.h.b16 %v683
    %v1020 = vunpack.c.l.b16 %v684
    %v1021 = vunpack.c.h.b16 %v684
    %v1022 = vunpack.c.l.b16 %v685
    %v1023 = vunpack.c.h.b16 %v685
    %v1024 = vunpack.c.l.b16 %v686
    %v1025 = vunpack.c.h.b16 %v686
    %v1026 = vunpack.c.l.b16 %v687
    %v1027 = vunpack.c.h.b16 %v687
    %v1028 = vunpack.c.l.b16 %v688
    %v1029 = vunpack.c.h.b16 %v688
    %v1030 = vunpack.c.l.b16 %v689
    %v1031 = vunpack.c.h.b16 %v689
    %v1032 = vunpack.c.l.b16 %v690
    %v1033 = vunpack.c.h.b16 %v690
    %v1034 = vunpack.c.l.b16 %v691
    %v1035 = vunpack.c.h.b16 %v691
    %v1036 = vunpack.c.l.b16 %v692
    %v1037 = vunpack.c.h.b16 %v692
    %v1038 = vunpack.c.l.b16 %v693
    %v1039 = vunpack.c.h.b16 %v693
    %v1040 = vunpack.c.l.b16 %v694
    %v1041 = vunpack.c.h.b16 %v694
    %v1042 = vunpack.c.l.b16 %v695
    %v1043 = vunpack.c.h.b16 %v695
    %v1044 = vunpack.c.l.b16 %v696
    %v1045 = vunpack.c.h.b16 %v696
    %v1046 = vunpack.c.l.b16 %v697
    %v1047 = vunpack.c.h.b16 %v697
    %v1048 = vunpack.c.l.b16 %v698
    %v1049 = vunpack.c.h.b16 %v698
    %v1050 = vunpack.c.l.b16 %v699
    %v1051 = vunpack.c.h.b16 %v699
    %v1052 = vunpack.c.l.b16 %v700
    %v1053 = vunpack.c.h.b16 %v700
    %v1054 = vunpack.c.l.b16 %v701
    %v1055 = vunpack.c.h.b16 %v701
    %v1056 = vunpack.c.l.b16 %v702
    %v1057 = vunpack.c.h.b16 %v702
    %v1058 = vunpack.c.l.b16 %v703
    %v1059 = vunpack.c.h.b16 %v703
    %v1060 = vunpack.c.l.b16 %v704
    %v1061 = vunpack.c.h.b16 %v704
    %v1062 = vunpack.c.l.b16 %v705
    %v1063 = vunpack.c.h.b16 %v705
    %v1064 = vunpack.c.l.b16 %v706
    %v1065 = vunpack.c.h.b16 %v706
    %v1066 = vpack.c.b16 %v1006, %v1002
    %v1067 = vpack.c.b16 %v1007, %v1003
    %v1068 = vpack.c.b16 %v1008, %v1004
    %v1069 = vpack.c.b16 %v1009, %v1005
    %v1070 = vpack.c.b16 %v1014, %v1010
    %v1071 = vpack.c.b16 %v1015, %v1011
    %v1072 = vpack.c.b16 %v1016, %v1012
    %v1073 = vpack.c.b16 %v1017, %v1013
    %v1074 = vpack.c.b16 %v1022, %v1018
    %v1075 = vpack.c.b16 %v1023, %v1019
    %v1076 = vpack.c.b16 %v1024, %v1020
    %v1077 = vpack.c.b16 %v1025, %v1021
    %v1078 = vpack.c.b16 %v1030, %v1026
    %v1079 = vpack.c.b16 %v1031, %v1027
    %v1080 = vpack.c.b16 %v1032, %v1028
    %v1081 = vpack.c.b16 %v1033, %v1029
    %v1082 = vpack.c.b16 %v1038, %v1034
    %v1083 = vpack.c.b16 %v1039, %v1035
    %v1084 = vpack.c.b16 %v1040, %v1036
    %v1085 = vpack.c.b16 %v1041, %v1037
    %v1086 = vpack.c.b16 %v1046, %v1042
    %v1087 = vpack.c.b16 %v1047, %v1043
    %v1088 = vpack.c.b16 %v1048, %v1044
    %v1089 = vpack.c.b16 %v1049, %v1045
    %v1090 = vpack.c.b16 %v1054, %v1050
    %v1091 = vpack.c.b16 %v1055, %v1051
    %v1092 = vpack.c.b16 %v1056, %v1052
    %v1093 = vpack.c.b16 %v1057, %v1053
    %v1094 = vpack.c.b16 %v1062, %v1058
    %v1095 = vpack.c.b16 %v1063, %v1059
    %v1096 = vpack.c.b16 %v1064, %v1060
    %v1097 = vpack.c.b16 %v1065, %v1061
    %1130 = vmatprep.subr.bf16.mxu0 %v1095
    %1131 = vmatpush1.bf16.msra.mxu0 %v1094
    %1132 = vmatprep.subr.bf16.mxu0 %v1091
    %1133 = vmatpush1.bf16.msra.mxu0 %v1090
    %1134 = vmatprep.subr.bf16.mxu0 %v1087
    %1135 = vmatpush1.bf16.msra.mxu0 %v1086
    %1136 = vmatprep.subr.bf16.mxu0 %v1083
    %1137 = vmatpush1.bf16.msra.mxu0 %v1082
    %1138 = vmatprep.subr.bf16.mxu0 %v1079
    %1139 = vmatpush1.bf16.msra.mxu0 %v1078
    %1140 = vmatprep.subr.bf16.mxu0 %v1075
    %1141 = vmatpush1.bf16.msra.mxu0 %v1074
    %1142 = vmatprep.subr.bf16.mxu0 %v1071
    %1143 = vmatpush1.bf16.msra.mxu0 %v1070
    %1144 = vmatprep.subr.bf16.mxu0 %v1067
    %1145 = vmatpush1.bf16.msra.mxu0 %v1066
    %1146 = vmatprep.subr.bf16.mxu0 0
    %1147 = vmatpush2.bf16.msra.mxu0 0
    %1148 = vmatprep.subr.bf16.mxu0 0
    %1149 = vmatpush2.bf16.msra.mxu0 0
    %1150 = vmatprep.subr.bf16.mxu0 0
    %1151 = vmatpush2.bf16.msra.mxu0 0
    %1152 = vmatprep.subr.bf16.mxu0 0
    %1153 = vmatpush2.bf16.msra.mxu0 0
    %1154 = vmatprep.subr.bf16.mxu0 0
    %1155 = vmatpush2.bf16.msra.mxu0 0
    %1156 = vmatprep.subr.bf16.mxu0 0
    %1157 = vmatpush2.bf16.msra.mxu0 0
    %1158 = vmatprep.subr.bf16.mxu0 0
    %1159 = vmatpush2.bf16.msra.mxu0 0
    %1160 = vmatprep.subr.bf16.mxu0 0
    %1161 = vmatpush2.bf16.msra.mxu0 0
    %1162 = vmatprep.mubr.bf16.mxu0 0
    %1163 = vmatmul.mubr.bf16.gmra.mxu0 0
    %v1164 = vpop.f32.mrf.mxu0
    %v1165 = vadd.f32 0.0, %v1164
    %v1166 = vpop.f32.mrf.mxu0
    %v1167 = vadd.f32 0.0, %v1166
    %v1168 = vpop.f32.mrf.mxu0
    %v1169 = vpop.f32.mrf.mxu0
    %1170 = vdwg.mxu0
    %1171 = vmatprep.subr.bf16.mxu0 %v1097
    %1172 = vmatpush1.bf16.msra.mxu0 %v1096
    %1173 = vmatprep.subr.bf16.mxu0 %v1093
    %1174 = vmatpush1.bf16.msra.mxu0 %v1092
    %1175 = vmatprep.subr.bf16.mxu0 %v1089
    %1176 = vmatpush1.bf16.msra.mxu0 %v1088
    %1177 = vmatprep.subr.bf16.mxu0 %v1085
    %1178 = vmatpush1.bf16.msra.mxu0 %v1084
    %1179 = vmatprep.subr.bf16.mxu0 %v1081
    %1180 = vmatpush1.bf16.msra.mxu0 %v1080
    %1181 = vmatprep.subr.bf16.mxu0 %v1077
    %1182 = vmatpush1.bf16.msra.mxu0 %v1076
    %1183 = vmatprep.subr.bf16.mxu0 %v1073
    %1184 = vmatpush1.bf16.msra.mxu0 %v1072
    %1185 = vmatprep.subr.bf16.mxu0 %v1069
    %1186 = vmatpush1.bf16.msra.mxu0 %v1068
    %1187 = vmatprep.subr.bf16.mxu0 0
    %1188 = vmatpush2.bf16.msra.mxu0 0
    %1189 = vmatprep.subr.bf16.mxu0 0
    %1190 = vmatpush2.bf16.msra.mxu0 0
    %1191 = vmatprep.subr.bf16.mxu0 0
    %1192 = vmatpush2.bf16.msra.mxu0 0
    %1193 = vmatprep.subr.bf16.mxu0 0
    %1194 = vmatpush2.bf16.msra.mxu0 0
    %1195 = vmatprep.subr.bf16.mxu0 0
    %1196 = vmatpush2.bf16.msra.mxu0 0
    %1197 = vmatprep.subr.bf16.mxu0 0
    %1198 = vmatpush2.bf16.msra.mxu0 0
    %1199 = vmatprep.subr.bf16.mxu0 0
    %1200 = vmatpush2.bf16.msra.mxu0 0
    %1201 = vmatprep.subr.bf16.mxu0 0
    %1202 = vmatpush2.bf16.msra.mxu0 0
    %1203 = vmatprep.mubr.bf16.mxu0 0
    %1204 = vmatmul.mubr.bf16.gmra.mxu0 0
    %v1205 = vpop.f32.mrf.mxu0
    %v1206 = vadd.f32 0.0, %v1205
    %v1207 = vpop.f32.mrf.mxu0
    %v1208 = vadd.f32 0.0, %v1207
    %v1209 = vpop.f32.mrf.mxu0
    %v1210 = vpop.f32.mrf.mxu0
    %1211 = vdwg.mxu0
    %v1212 = vadd.f32 %v720, %v1165
    %v1213 = vadd.f32 %v721, %v1167
    %v1214 = vadd.f32 %v722, %v1206
    %v1215 = vadd.f32 %v723, %v1208
    %v1216 = vxor.u32 %v966, 2147483648
    %v1217 = vmul.f32 %v1216, 1.442695
    %v1218 = vpow.pop %v1217
    %v1219 = vadd.f32 %v1218, 1.0
    %v1220 = vrcp.pop %v1219
    %v1221 = vmul.f32 1.0, %v1220
    %v1222 = vxor.u32 %v967, 2147483648
    %v1223 = vmul.f32 %v1222, 1.442695
    %v1224 = vpow.pop %v1223
    %v1225 = vadd.f32 %v1224, 1.0
    %v1226 = vrcp.pop %v1225
    %v1227 = vmul.f32 1.0, %v1226
    %v1228 = vtanh.pop %v968
    %v1229 = vxor.u32 %v969, 2147483648
    %v1230 = vmul.f32 %v1229, 1.442695
    %v1231 = vpow.pop %v1230
    %v1232 = vadd.f32 %v1231, 1.0
    %v1233 = vrcp.pop %v1232
    %v1234 = vmul.f32 1.0, %v1233
    %v1235 = vmul.f32 %v1227, 0.0
    %v1236 = vmul.f32 %v1221, %v1228
    %v1237 = vadd.f32 %v1235, %v1236
    %v1238 = vtanh.pop %v1237
    %v1239 = vmul.f32 %v1234, %v1238
    %v1240 = vxor.u32 %v1212, 2147483648
    %v1241 = vmul.f32 %v1240, 1.442695
    %v1242 = vpow.pop %v1241
    %v1243 = vadd.f32 %v1242, 1.0
    %v1244 = vrcp.pop %v1243
    %v1245 = vmul.f32 1.0, %v1244
    %v1246 = vxor.u32 %v1213, 2147483648
    %v1247 = vmul.f32 %v1246, 1.442695
    %v1248 = vpow.pop %v1247
    %v1249 = vadd.f32 %v1248, 1.0
    %v1250 = vrcp.pop %v1249
    %v1251 = vmul.f32 1.0, %v1250
    %v1252 = vtanh.pop %v1214
    %v1253 = vxor.u32 %v1215, 2147483648
    %v1254 = vmul.f32 %v1253, 1.442695
    %v1255 = vpow.pop %v1254
    %v1256 = vadd.f32 %v1255, 1.0
    %v1257 = vrcp.pop %v1256
    %v1258 = vmul.f32 1.0, %v1257
    %v1259 = vmul.f32 %v1251, 0.0
    %v1260 = vmul.f32 %v1245, %v1252
    %v1261 = vadd.f32 %v1259, %v1260
    %v1262 = vtanh.pop %v1261
    %v1263 = vmul.f32 %v1258, %v1262
    %s1264 = scalar_lea.vmem [#allocation2], 64
    %v1265 = vld [vmem:[%s1264] sm:$0xff]
    %v1266 = vld [vmem:[%s1264 + $0x8] sm:$0xff]
    %v1267 = vld [vmem:[%s1264 + $0x10] sm:$0xff]
    %v1268 = vld [vmem:[%s1264 + $0x18] sm:$0xff]
    %v1269 = vld [vmem:[%s1264 + $0x20] sm:$0xff]
    %v1270 = vld [vmem:[%s1264 + $0x28] sm:$0xff]
    %v1271 = vld [vmem:[%s1264 + $0x30] sm:$0xff]
    %v1272 = vld [vmem:[%s1264 + $0x38] sm:$0xff]
    %s1273 = scalar_lea.vmem [#allocation2], 384
    %v1274 = vld [vmem:[%s1273] sm:$0xff]
    %v1275 = vld [vmem:[%s1273 + $0x8] sm:$0xff]
    %v1276 = vld [vmem:[%s1273 + $0x10] sm:$0xff]
    %v1277 = vld [vmem:[%s1273 + $0x18] sm:$0xff]
    %v1278 = vld [vmem:[%s1273 + $0x20] sm:$0xff]
    %v1279 = vld [vmem:[%s1273 + $0x28] sm:$0xff]
    %v1280 = vld [vmem:[%s1273 + $0x30] sm:$0xff]
    %v1281 = vld [vmem:[%s1273 + $0x38] sm:$0xff]
    %v1282 = vpack.c.bf16 %v1239, %v1239
    %1283 = vmatprep.subr.bf16.mxu0 %v849
    %1284 = vmatpush1.bf16.msra.mxu0 %v848
    %1285 = vmatprep.subr.bf16.mxu0 %v845
    %1286 = vmatpush1.bf16.msra.mxu0 %v844
    %1287 = vmatprep.subr.bf16.mxu0 %v841
    %1288 = vmatpush1.bf16.msra.mxu0 %v840
    %1289 = vmatprep.subr.bf16.mxu0 %v837
    %1290 = vmatpush1.bf16.msra.mxu0 %v836
    %1291 = vmatprep.subr.bf16.mxu0 %v833
    %1292 = vmatpush1.bf16.msra.mxu0 %v832
    %1293 = vmatprep.subr.bf16.mxu0 %v829
    %1294 = vmatpush1.bf16.msra.mxu0 %v828
    %1295 = vmatprep.subr.bf16.mxu0 %v825
    %1296 = vmatpush1.bf16.msra.mxu0 %v824
    %1297 = vmatprep.subr.bf16.mxu0 %v821
    %1298 = vmatpush1.bf16.msra.mxu0 %v820
    %1299 = vmatprep.subr.bf16.mxu0 0
    %1300 = vmatpush2.bf16.msra.mxu0 0
    %1301 = vmatprep.subr.bf16.mxu0 0
    %1302 = vmatpush2.bf16.msra.mxu0 0
    %1303 = vmatprep.subr.bf16.mxu0 0
    %1304 = vmatpush2.bf16.msra.mxu0 0
    %1305 = vmatprep.subr.bf16.mxu0 0
    %1306 = vmatpush2.bf16.msra.mxu0 0
    %1307 = vmatprep.subr.bf16.mxu0 0
    %1308 = vmatpush2.bf16.msra.mxu0 0
    %1309 = vmatprep.subr.bf16.mxu0 0
    %1310 = vmatpush2.bf16.msra.mxu0 0
    %1311 = vmatprep.subr.bf16.mxu0 0
    %1312 = vmatpush2.bf16.msra.mxu0 0
    %1313 = vmatprep.subr.bf16.mxu0 0
    %1314 = vmatpush2.bf16.msra.mxu0 0
    %1315 = vmatprep.mubr.bf16.mxu0 0
    %1316 = vmatmul.mubr.bf16.gmra.mxu0 %v1282
    %v1317 = vpop.f32.mrf.mxu0
    %v1318 = vadd.f32 0.0, %v1317
    %v1319 = vpop.f32.mrf.mxu0
    %v1320 = vadd.f32 0.0, %v1319
    %v1321 = vpop.f32.mrf.mxu0
    %v1322 = vpop.f32.mrf.mxu0
    %1323 = vdwg.mxu0
    %1324 = vmatprep.subr.bf16.mxu0 %v851
    %1325 = vmatpush1.bf16.msra.mxu0 %v850
    %1326 = vmatprep.subr.bf16.mxu0 %v847
    %1327 = vmatpush1.bf16.msra.mxu0 %v846
    %1328 = vmatprep.subr.bf16.mxu0 %v843
    %1329 = vmatpush1.bf16.msra.mxu0 %v842
    %1330 = vmatprep.subr.bf16.mxu0 %v839
    %1331 = vmatpush1.bf16.msra.mxu0 %v838
    %1332 = vmatprep.subr.bf16.mxu0 %v835
    %1333 = vmatpush1.bf16.msra.mxu0 %v834
    %1334 = vmatprep.subr.bf16.mxu0 %v831
    %1335 = vmatpush1.bf16.msra.mxu0 %v830
    %1336 = vmatprep.subr.bf16.mxu0 %v827
    %1337 = vmatpush1.bf16.msra.mxu0 %v826
    %1338 = vmatprep.subr.bf16.mxu0 %v823
    %1339 = vmatpush1.bf16.msra.mxu0 %v822
    %1340 = vmatprep.subr.bf16.mxu0 0
    %1341 = vmatpush2.bf16.msra.mxu0 0
    %1342 = vmatprep.subr.bf16.mxu0 0
    %1343 = vmatpush2.bf16.msra.mxu0 0
    %1344 = vmatprep.subr.bf16.mxu0 0
    %1345 = vmatpush2.bf16.msra.mxu0 0
    %1346 = vmatprep.subr.bf16.mxu0 0
    %1347 = vmatpush2.bf16.msra.mxu0 0
    %1348 = vmatprep.subr.bf16.mxu0 0
    %1349 = vmatpush2.bf16.msra.mxu0 0
    %1350 = vmatprep.subr.bf16.mxu0 0
    %1351 = vmatpush2.bf16.msra.mxu0 0
    %1352 = vmatprep.subr.bf16.mxu0 0
    %1353 = vmatpush2.bf16.msra.mxu0 0
    %1354 = vmatprep.subr.bf16.mxu0 0
    %1355 = vmatpush2.bf16.msra.mxu0 0
    %1356 = vmatprep.mubr.bf16.mxu0 0
    %1357 = vmatmul.mubr.bf16.gmra.mxu0 %v1282
    %v1358 = vpop.f32.mrf.mxu0
    %v1359 = vadd.f32 0.0, %v1358
    %v1360 = vpop.f32.mrf.mxu0
    %v1361 = vadd.f32 0.0, %v1360
    %v1362 = vpop.f32.mrf.mxu0
    %v1363 = vpop.f32.mrf.mxu0
    %1364 = vdwg.mxu0
    %v1365 = vadd.f32 %v1265, %v1318
    %v1366 = vadd.f32 %v1266, %v1320
    %v1367 = vadd.f32 %v1267, %v1359
    %v1368 = vadd.f32 %v1268, %v1361
    %v1369 = vpack.c.bf16 %v1263, %v1263
    %1370 = vmatprep.subr.bf16.mxu0 %v1095
    %1371 = vmatpush1.bf16.msra.mxu0 %v1094
    %1372 = vmatprep.subr.bf16.mxu0 %v1091
    %1373 = vmatpush1.bf16.msra.mxu0 %v1090
    %1374 = vmatprep.subr.bf16.mxu0 %v1087
    %1375 = vmatpush1.bf16.msra.mxu0 %v1086
    %1376 = vmatprep.subr.bf16.mxu0 %v1083
    %1377 = vmatpush1.bf16.msra.mxu0 %v1082
    %1378 = vmatprep.subr.bf16.mxu0 %v1079
    %1379 = vmatpush1.bf16.msra.mxu0 %v1078
    %1380 = vmatprep.subr.bf16.mxu0 %v1075
    %1381 = vmatpush1.bf16.msra.mxu0 %v1074
    %1382 = vmatprep.subr.bf16.mxu0 %v1071
    %1383 = vmatpush1.bf16.msra.mxu0 %v1070
    %1384 = vmatprep.subr.bf16.mxu0 %v1067
    %1385 = vmatpush1.bf16.msra.mxu0 %v1066
    %1386 = vmatprep.subr.bf16.mxu0 0
    %1387 = vmatpush2.bf16.msra.mxu0 0
    %1388 = vmatprep.subr.bf16.mxu0 0
    %1389 = vmatpush2.bf16.msra.mxu0 0
    %1390 = vmatprep.subr.bf16.mxu0 0
    %1391 = vmatpush2.bf16.msra.mxu0 0
    %1392 = vmatprep.subr.bf16.mxu0 0
    %1393 = vmatpush2.bf16.msra.mxu0 0
    %1394 = vmatprep.subr.bf16.mxu0 0
    %1395 = vmatpush2.bf16.msra.mxu0 0
    %1396 = vmatprep.subr.bf16.mxu0 0
    %1397 = vmatpush2.bf16.msra.mxu0 0
    %1398 = vmatprep.subr.bf16.mxu0 0
    %1399 = vmatpush2.bf16.msra.mxu0 0
    %1400 = vmatprep.subr.bf16.mxu0 0
    %1401 = vmatpush2.bf16.msra.mxu0 0
    %1402 = vmatprep.mubr.bf16.mxu0 0
    %1403 = vmatmul.mubr.bf16.gmra.mxu0 %v1369
    %v1404 = vpop.f32.mrf.mxu0
    %v1405 = vadd.f32 0.0, %v1404
    %v1406 = vpop.f32.mrf.mxu0
    %v1407 = vadd.f32 0.0, %v1406
    %v1408 = vpop.f32.mrf.mxu0
    %v1409 = vpop.f32.mrf.mxu0
    %1410 = vdwg.mxu0
    %1411 = vmatprep.subr.bf16.mxu0 %v1097
    %1412 = vmatpush1.bf16.msra.mxu0 %v1096
    %1413 = vmatprep.subr.bf16.mxu0 %v1093
    %1414 = vmatpush1.bf16.msra.mxu0 %v1092
    %1415 = vmatprep.subr.bf16.mxu0 %v1089
    %1416 = vmatpush1.bf16.msra.mxu0 %v1088
    %1417 = vmatprep.subr.bf16.mxu0 %v1085
    %1418 = vmatpush1.bf16.msra.mxu0 %v1084
    %1419 = vmatprep.subr.bf16.mxu0 %v1081
    %1420 = vmatpush1.bf16.msra.mxu0 %v1080
    %1421 = vmatprep.subr.bf16.mxu0 %v1077
    %1422 = vmatpush1.bf16.msra.mxu0 %v1076
    %1423 = vmatprep.subr.bf16.mxu0 %v1073
    %1424 = vmatpush1.bf16.msra.mxu0 %v1072
    %1425 = vmatprep.subr.bf16.mxu0 %v1069
    %1426 = vmatpush1.bf16.msra.mxu0 %v1068
    %1427 = vmatprep.subr.bf16.mxu0 0
    %1428 = vmatpush2.bf16.msra.mxu0 0
    %1429 = vmatprep.subr.bf16.mxu0 0
    %1430 = vmatpush2.bf16.msra.mxu0 0
    %1431 = vmatprep.subr.bf16.mxu0 0
    %1432 = vmatpush2.bf16.msra.mxu0 0
    %1433 = vmatprep.subr.bf16.mxu0 0
    %1434 = vmatpush2.bf16.msra.mxu0 0
    %1435 = vmatprep.subr.bf16.mxu0 0
    %1436 = vmatpush2.bf16.msra.mxu0 0
    %1437 = vmatprep.subr.bf16.mxu0 0
    %1438 = vmatpush2.bf16.msra.mxu0 0
    %1439 = vmatprep.subr.bf16.mxu0 0
    %1440 = vmatpush2.bf16.msra.mxu0 0
    %1441 = vmatprep.subr.bf16.mxu0 0
    %1442 = vmatpush2.bf16.msra.mxu0 0
    %1443 = vmatprep.mubr.bf16.mxu0 0
    %1444 = vmatmul.mubr.bf16.gmra.mxu0 %v1369
    %v1445 = vpop.f32.mrf.mxu0
    %v1446 = vadd.f32 0.0, %v1445
    %v1447 = vpop.f32.mrf.mxu0
    %v1448 = vadd.f32 0.0, %v1447
    %v1449 = vpop.f32.mrf.mxu0
    %v1450 = vpop.f32.mrf.mxu0
    %1451 = vdwg.mxu0
    %v1452 = vadd.f32 %v1278, %v1405
    %v1453 = vadd.f32 %v1279, %v1407
    %v1454 = vadd.f32 %v1280, %v1446
    %v1455 = vadd.f32 %v1281, %v1448
    %v1456 = vxor.u32 %v1365, 2147483648
    %v1457 = vmul.f32 %v1456, 1.442695
    %v1458 = vpow.pop %v1457
    %v1459 = vadd.f32 %v1458, 1.0
    %v1460 = vrcp.pop %v1459
    %v1461 = vmul.f32 1.0, %v1460
    %v1462 = vxor.u32 %v1366, 2147483648
    %v1463 = vmul.f32 %v1462, 1.442695
    %v1464 = vpow.pop %v1463
    %v1465 = vadd.f32 %v1464, 1.0
    %v1466 = vrcp.pop %v1465
    %v1467 = vmul.f32 1.0, %v1466
    %v1468 = vtanh.pop %v1367
    %v1469 = vxor.u32 %v1368, 2147483648
    %v1470 = vmul.f32 %v1469, 1.442695
    %v1471 = vpow.pop %v1470
    %v1472 = vadd.f32 %v1471, 1.0
    %v1473 = vrcp.pop %v1472
    %v1474 = vmul.f32 1.0, %v1473
    %v1475 = vmul.f32 %v1467, %v1237
    %v1476 = vmul.f32 %v1461, %v1468
    %v1477 = vadd.f32 %v1475, %v1476
    %v1478 = vtanh.pop %v1477
    %v1479 = vmul.f32 %v1474, %v1478
    %v1480 = vxor.u32 %v1452, 2147483648
    %v1481 = vmul.f32 %v1480, 1.442695
    %v1482 = vpow.pop %v1481
    %v1483 = vadd.f32 %v1482, 1.0
    %v1484 = vrcp.pop %v1483
    %v1485 = vmul.f32 1.0, %v1484
    %v1486 = vxor.u32 %v1453, 2147483648
    %v1487 = vmul.f32 %v1486, 1.442695
    %v1488 = vpow.pop %v1487
    %v1489 = vadd.f32 %v1488, 1.0
    %v1490 = vrcp.pop %v1489
    %v1491 = vmul.f32 1.0, %v1490
    %v1492 = vtanh.pop %v1454
    %v1493 = vxor.u32 %v1455, 2147483648
    %v1494 = vmul.f32 %v1493, 1.442695
    %v1495 = vpow.pop %v1494
    %v1496 = vadd.f32 %v1495, 1.0
    %v1497 = vrcp.pop %v1496
    %v1498 = vmul.f32 1.0, %v1497
    %v1499 = vmul.f32 %v1491, %v1261
    %v1500 = vmul.f32 %v1485, %v1492
    %v1501 = vadd.f32 %v1499, %v1500
    %v1502 = vtanh.pop %v1501
    %v1503 = vmul.f32 %v1498, %v1502
    %v1504 = vmax.f32 %v1239, %v1479
    %v1505 = vmax.f32 %v1263, %v1503
    %s1506 = scalar_lea.vmem [#allocation2], 128
    %v1507 = vld [vmem:[%s1506] sm:$0xff]
    %v1508 = vld [vmem:[%s1506 + $0x8] sm:$0xff]
    %v1509 = vld [vmem:[%s1506 + $0x10] sm:$0xff]
    %v1510 = vld [vmem:[%s1506 + $0x18] sm:$0xff]
    %v1511 = vld [vmem:[%s1506 + $0x20] sm:$0xff]
    %v1512 = vld [vmem:[%s1506 + $0x28] sm:$0xff]
    %v1513 = vld [vmem:[%s1506 + $0x30] sm:$0xff]
    %v1514 = vld [vmem:[%s1506 + $0x38] sm:$0xff]
    %s1515 = scalar_lea.vmem [#allocation2], 320
    %v1516 = vld [vmem:[%s1515] sm:$0xff]
    %v1517 = vld [vmem:[%s1515 + $0x8] sm:$0xff]
    %v1518 = vld [vmem:[%s1515 + $0x10] sm:$0xff]
    %v1519 = vld [vmem:[%s1515 + $0x18] sm:$0xff]
    %v1520 = vld [vmem:[%s1515 + $0x20] sm:$0xff]
    %v1521 = vld [vmem:[%s1515 + $0x28] sm:$0xff]
    %v1522 = vld [vmem:[%s1515 + $0x30] sm:$0xff]
    %v1523 = vld [vmem:[%s1515 + $0x38] sm:$0xff]
    %v1524 = vpack.c.bf16 %v1479, %v1479
    %1525 = vmatprep.subr.bf16.mxu0 %v849
    %1526 = vmatpush1.bf16.msra.mxu0 %v848
    %1527 = vmatprep.subr.bf16.mxu0 %v845
    %1528 = vmatpush1.bf16.msra.mxu0 %v844
    %1529 = vmatprep.subr.bf16.mxu0 %v841
    %1530 = vmatpush1.bf16.msra.mxu0 %v840
    %1531 = vmatprep.subr.bf16.mxu0 %v837
    %1532 = vmatpush1.bf16.msra.mxu0 %v836
    %1533 = vmatprep.subr.bf16.mxu0 %v833
    %1534 = vmatpush1.bf16.msra.mxu0 %v832
    %1535 = vmatprep.subr.bf16.mxu0 %v829
    %1536 = vmatpush1.bf16.msra.mxu0 %v828
    %1537 = vmatprep.subr.bf16.mxu0 %v825
    %1538 = vmatpush1.bf16.msra.mxu0 %v824
    %1539 = vmatprep.subr.bf16.mxu0 %v821
    %1540 = vmatpush1.bf16.msra.mxu0 %v820
    %1541 = vmatprep.subr.bf16.mxu0 0
    %1542 = vmatpush2.bf16.msra.mxu0 0
    %1543 = vmatprep.subr.bf16.mxu0 0
    %1544 = vmatpush2.bf16.msra.mxu0 0
    %1545 = vmatprep.subr.bf16.mxu0 0
    %1546 = vmatpush2.bf16.msra.mxu0 0
    %1547 = vmatprep.subr.bf16.mxu0 0
    %1548 = vmatpush2.bf16.msra.mxu0 0
    %1549 = vmatprep.subr.bf16.mxu0 0
    %1550 = vmatpush2.bf16.msra.mxu0 0
    %1551 = vmatprep.subr.bf16.mxu0 0
    %1552 = vmatpush2.bf16.msra.mxu0 0
    %1553 = vmatprep.subr.bf16.mxu0 0
    %1554 = vmatpush2.bf16.msra.mxu0 0
    %1555 = vmatprep.subr.bf16.mxu0 0
    %1556 = vmatpush2.bf16.msra.mxu0 0
    %1557 = vmatprep.mubr.bf16.mxu0 0
    %1558 = vmatmul.mubr.bf16.gmra.mxu0 %v1524
    %v1559 = vpop.f32.mrf.mxu0
    %v1560 = vadd.f32 0.0, %v1559
    %v1561 = vpop.f32.mrf.mxu0
    %v1562 = vadd.f32 0.0, %v1561
    %v1563 = vpop.f32.mrf.mxu0
    %v1564 = vpop.f32.mrf.mxu0
    %1565 = vdwg.mxu0
    %1566 = vmatprep.subr.bf16.mxu0 %v851
    %1567 = vmatpush1.bf16.msra.mxu0 %v850
    %1568 = vmatprep.subr.bf16.mxu0 %v847
    %1569 = vmatpush1.bf16.msra.mxu0 %v846
    %1570 = vmatprep.subr.bf16.mxu0 %v843
    %1571 = vmatpush1.bf16.msra.mxu0 %v842
    %1572 = vmatprep.subr.bf16.mxu0 %v839
    %1573 = vmatpush1.bf16.msra.mxu0 %v838
    %1574 = vmatprep.subr.bf16.mxu0 %v835
    %1575 = vmatpush1.bf16.msra.mxu0 %v834
    %1576 = vmatprep.subr.bf16.mxu0 %v831
    %1577 = vmatpush1.bf16.msra.mxu0 %v830
    %1578 = vmatprep.subr.bf16.mxu0 %v827
    %1579 = vmatpush1.bf16.msra.mxu0 %v826
    %1580 = vmatprep.subr.bf16.mxu0 %v823
    %1581 = vmatpush1.bf16.msra.mxu0 %v822
    %1582 = vmatprep.subr.bf16.mxu0 0
    %1583 = vmatpush2.bf16.msra.mxu0 0
    %1584 = vmatprep.subr.bf16.mxu0 0
    %1585 = vmatpush2.bf16.msra.mxu0 0
    %1586 = vmatprep.subr.bf16.mxu0 0
    %1587 = vmatpush2.bf16.msra.mxu0 0
    %1588 = vmatprep.subr.bf16.mxu0 0
    %1589 = vmatpush2.bf16.msra.mxu0 0
    %1590 = vmatprep.subr.bf16.mxu0 0
    %1591 = vmatpush2.bf16.msra.mxu0 0
    %1592 = vmatprep.subr.bf16.mxu0 0
    %1593 = vmatpush2.bf16.msra.mxu0 0
    %1594 = vmatprep.subr.bf16.mxu0 0
    %1595 = vmatpush2.bf16.msra.mxu0 0
    %1596 = vmatprep.subr.bf16.mxu0 0
    %1597 = vmatpush2.bf16.msra.mxu0 0
    %1598 = vmatprep.mubr.bf16.mxu0 0
    %1599 = vmatmul.mubr.bf16.gmra.mxu0 %v1524
    %v1600 = vpop.f32.mrf.mxu0
    %v1601 = vadd.f32 0.0, %v1600
    %v1602 = vpop.f32.mrf.mxu0
    %v1603 = vadd.f32 0.0, %v1602
    %v1604 = vpop.f32.mrf.mxu0
    %v1605 = vpop.f32.mrf.mxu0
    %1606 = vdwg.mxu0
    %v1607 = vadd.f32 %v1507, %v1560
    %v1608 = vadd.f32 %v1508, %v1562
    %v1609 = vadd.f32 %v1509, %v1601
    %v1610 = vadd.f32 %v1510, %v1603
    %v1611 = vpack.c.bf16 %v1503, %v1503
    %1612 = vmatprep.subr.bf16.mxu0 %v1095
    %1613 = vmatpush1.bf16.msra.mxu0 %v1094
    %1614 = vmatprep.subr.bf16.mxu0 %v1091
    %1615 = vmatpush1.bf16.msra.mxu0 %v1090
    %1616 = vmatprep.subr.bf16.mxu0 %v1087
    %1617 = vmatpush1.bf16.msra.mxu0 %v1086
    %1618 = vmatprep.subr.bf16.mxu0 %v1083
    %1619 = vmatpush1.bf16.msra.mxu0 %v1082
    %1620 = vmatprep.subr.bf16.mxu0 %v1079
    %1621 = vmatpush1.bf16.msra.mxu0 %v1078
    %1622 = vmatprep.subr.bf16.mxu0 %v1075
    %1623 = vmatpush1.bf16.msra.mxu0 %v1074
    %1624 = vmatprep.subr.bf16.mxu0 %v1071
    %1625 = vmatpush1.bf16.msra.mxu0 %v1070
    %1626 = vmatprep.subr.bf16.mxu0 %v1067
    %1627 = vmatpush1.bf16.msra.mxu0 %v1066
    %1628 = vmatprep.subr.bf16.mxu0 0
    %1629 = vmatpush2.bf16.msra.mxu0 0
    %1630 = vmatprep.subr.bf16.mxu0 0
    %1631 = vmatpush2.bf16.msra.mxu0 0
    %1632 = vmatprep.subr.bf16.mxu0 0
    %1633 = vmatpush2.bf16.msra.mxu0 0
    %1634 = vmatprep.subr.bf16.mxu0 0
    %1635 = vmatpush2.bf16.msra.mxu0 0
    %1636 = vmatprep.subr.bf16.mxu0 0
    %1637 = vmatpush2.bf16.msra.mxu0 0
    %1638 = vmatprep.subr.bf16.mxu0 0
    %1639 = vmatpush2.bf16.msra.mxu0 0
    %1640 = vmatprep.subr.bf16.mxu0 0
    %1641 = vmatpush2.bf16.msra.mxu0 0
    %1642 = vmatprep.subr.bf16.mxu0 0
    %1643 = vmatpush2.bf16.msra.mxu0 0
    %1644 = vmatprep.mubr.bf16.mxu0 0
    %1645 = vmatmul.mubr.bf16.gmra.mxu0 %v1611
    %v1646 = vpop.f32.mrf.mxu0
    %v1647 = vadd.f32 0.0, %v1646
    %v1648 = vpop.f32.mrf.mxu0
    %v1649 = vadd.f32 0.0, %v1648
    %v1650 = vpop.f32.mrf.mxu0
    %v1651 = vpop.f32.mrf.mxu0
    %1652 = vdwg.mxu0
    %1653 = vmatprep.subr.bf16.mxu0 %v1097
    %1654 = vmatpush1.bf16.msra.mxu0 %v1096
    %1655 = vmatprep.subr.bf16.mxu0 %v1093
    %1656 = vmatpush1.bf16.msra.mxu0 %v1092
    %1657 = vmatprep.subr.bf16.mxu0 %v1089
    %1658 = vmatpush1.bf16.msra.mxu0 %v1088
    %1659 = vmatprep.subr.bf16.mxu0 %v1085
    %1660 = vmatpush1.bf16.msra.mxu0 %v1084
    %1661 = vmatprep.subr.bf16.mxu0 %v1081
    %1662 = vmatpush1.bf16.msra.mxu0 %v1080
    %1663 = vmatprep.subr.bf16.mxu0 %v1077
    %1664 = vmatpush1.bf16.msra.mxu0 %v1076
    %1665 = vmatprep.subr.bf16.mxu0 %v1073
    %1666 = vmatpush1.bf16.msra.mxu0 %v1072
    %1667 = vmatprep.subr.bf16.mxu0 %v1069
    %1668 = vmatpush1.bf16.msra.mxu0 %v1068
    %1669 = vmatprep.subr.bf16.mxu0 0
    %1670 = vmatpush2.bf16.msra.mxu0 0
    %1671 = vmatprep.subr.bf16.mxu0 0
    %1672 = vmatpush2.bf16.msra.mxu0 0
    %1673 = vmatprep.subr.bf16.mxu0 0
    %1674 = vmatpush2.bf16.msra.mxu0 0
    %1675 = vmatprep.subr.bf16.mxu0 0
    %1676 = vmatpush2.bf16.msra.mxu0 0
    %1677 = vmatprep.subr.bf16.mxu0 0
    %1678 = vmatpush2.bf16.msra.mxu0 0
    %1679 = vmatprep.subr.bf16.mxu0 0
    %1680 = vmatpush2.bf16.msra.mxu0 0
    %1681 = vmatprep.subr.bf16.mxu0 0
    %1682 = vmatpush2.bf16.msra.mxu0 0
    %1683 = vmatprep.subr.bf16.mxu0 0
    %1684 = vmatpush2.bf16.msra.mxu0 0
    %1685 = vmatprep.mubr.bf16.mxu0 0
    %1686 = vmatmul.mubr.bf16.gmra.mxu0 %v1611
    %v1687 = vpop.f32.mrf.mxu0
    %v1688 = vadd.f32 0.0, %v1687
    %v1689 = vpop.f32.mrf.mxu0
    %v1690 = vadd.f32 0.0, %v1689
    %v1691 = vpop.f32.mrf.mxu0
    %v1692 = vpop.f32.mrf.mxu0
    %1693 = vdwg.mxu0
    %v1694 = vadd.f32 %v1520, %v1647
    %v1695 = vadd.f32 %v1521, %v1649
    %v1696 = vadd.f32 %v1522, %v1688
    %v1697 = vadd.f32 %v1523, %v1690
    %v1698 = vxor.u32 %v1607, 2147483648
    %v1699 = vmul.f32 %v1698, 1.442695
    %v1700 = vpow.pop %v1699
    %v1701 = vadd.f32 %v1700, 1.0
    %v1702 = vrcp.pop %v1701
    %v1703 = vmul.f32 1.0, %v1702
    %v1704 = vxor.u32 %v1608, 2147483648
    %v1705 = vmul.f32 %v1704, 1.442695
    %v1706 = vpow.pop %v1705
    %v1707 = vadd.f32 %v1706, 1.0
    %v1708 = vrcp.pop %v1707
    %v1709 = vmul.f32 1.0, %v1708
    %v1710 = vtanh.pop %v1609
    %v1711 = vxor.u32 %v1610, 2147483648
    %v1712 = vmul.f32 %v1711, 1.442695
    %v1713 = vpow.pop %v1712
    %v1714 = vadd.f32 %v1713, 1.0
    %v1715 = vrcp.pop %v1714
    %v1716 = vmul.f32 1.0, %v1715
    %v1717 = vmul.f32 %v1709, %v1477
    %v1718 = vmul.f32 %v1703, %v1710
    %v1719 = vadd.f32 %v1717, %v1718
    %v1720 = vtanh.pop %v1719
    %v1721 = vmul.f32 %v1716, %v1720
    %v1722 = vxor.u32 %v1694, 2147483648
    %v1723 = vmul.f32 %v1722, 1.442695
    %v1724 = vpow.pop %v1723
    %v1725 = vadd.f32 %v1724, 1.0
    %v1726 = vrcp.pop %v1725
    %v1727 = vmul.f32 1.0, %v1726
    %v1728 = vxor.u32 %v1695, 2147483648
    %v1729 = vmul.f32 %v1728, 1.442695
    %v1730 = vpow.pop %v1729
    %v1731 = vadd.f32 %v1730, 1.0
    %v1732 = vrcp.pop %v1731
    %v1733 = vmul.f32 1.0, %v1732
    %v1734 = vtanh.pop %v1696
    %v1735 = vxor.u32 %v1697, 2147483648
    %v1736 = vmul.f32 %v1735, 1.442695
    %v1737 = vpow.pop %v1736
    %v1738 = vadd.f32 %v1737, 1.0
    %v1739 = vrcp.pop %v1738
    %v1740 = vmul.f32 1.0, %v1739
    %v1741 = vmul.f32 %v1733, %v1501
    %v1742 = vmul.f32 %v1727, %v1734
    %v1743 = vadd.f32 %v1741, %v1742
    %v1744 = vtanh.pop %v1743
    %v1745 = vmul.f32 %v1740, %v1744
    %v1746 = vmax.f32 %v1504, %v1721
    %v1747 = vmax.f32 %v1505, %v1745
    %s1748 = scalar_lea.vmem [#allocation2], 192
    %v1749 = vld [vmem:[%s1748] sm:$0xff]
    %v1750 = vld [vmem:[%s1748 + $0x8] sm:$0xff]
    %v1751 = vld [vmem:[%s1748 + $0x10] sm:$0xff]
    %v1752 = vld [vmem:[%s1748 + $0x18] sm:$0xff]
    %v1753 = vld [vmem:[%s1748 + $0x20] sm:$0xff]
    %v1754 = vld [vmem:[%s1748 + $0x28] sm:$0xff]
    %v1755 = vld [vmem:[%s1748 + $0x30] sm:$0xff]
    %v1756 = vld [vmem:[%s1748 + $0x38] sm:$0xff]
    %s1757 = scalar_lea.vmem [#allocation2], 256
    %v1758 = vld [vmem:[%s1757] sm:$0xff]
    %v1759 = vld [vmem:[%s1757 + $0x8] sm:$0xff]
    %v1760 = vld [vmem:[%s1757 + $0x10] sm:$0xff]
    %v1761 = vld [vmem:[%s1757 + $0x18] sm:$0xff]
    %v1762 = vld [vmem:[%s1757 + $0x20] sm:$0xff]
    %v1763 = vld [vmem:[%s1757 + $0x28] sm:$0xff]
    %v1764 = vld [vmem:[%s1757 + $0x30] sm:$0xff]
    %v1765 = vld [vmem:[%s1757 + $0x38] sm:$0xff]
    %v1766 = vpack.c.bf16 %v1721, %v1721
    %1767 = vmatprep.subr.bf16.mxu0 %v849
    %1768 = vmatpush1.bf16.msra.mxu0 %v848
    %1769 = vmatprep.subr.bf16.mxu0 %v845
    %1770 = vmatpush1.bf16.msra.mxu0 %v844
    %1771 = vmatprep.subr.bf16.mxu0 %v841
    %1772 = vmatpush1.bf16.msra.mxu0 %v840
    %1773 = vmatprep.subr.bf16.mxu0 %v837
    %1774 = vmatpush1.bf16.msra.mxu0 %v836
    %1775 = vmatprep.subr.bf16.mxu0 %v833
    %1776 = vmatpush1.bf16.msra.mxu0 %v832
    %1777 = vmatprep.subr.bf16.mxu0 %v829
    %1778 = vmatpush1.bf16.msra.mxu0 %v828
    %1779 = vmatprep.subr.bf16.mxu0 %v825
    %1780 = vmatpush1.bf16.msra.mxu0 %v824
    %1781 = vmatprep.subr.bf16.mxu0 %v821
    %1782 = vmatpush1.bf16.msra.mxu0 %v820
    %1783 = vmatprep.subr.bf16.mxu0 0
    %1784 = vmatpush2.bf16.msra.mxu0 0
    %1785 = vmatprep.subr.bf16.mxu0 0
    %1786 = vmatpush2.bf16.msra.mxu0 0
    %1787 = vmatprep.subr.bf16.mxu0 0
    %1788 = vmatpush2.bf16.msra.mxu0 0
    %1789 = vmatprep.subr.bf16.mxu0 0
    %1790 = vmatpush2.bf16.msra.mxu0 0
    %1791 = vmatprep.subr.bf16.mxu0 0
    %1792 = vmatpush2.bf16.msra.mxu0 0
    %1793 = vmatprep.subr.bf16.mxu0 0
    %1794 = vmatpush2.bf16.msra.mxu0 0
    %1795 = vmatprep.subr.bf16.mxu0 0
    %1796 = vmatpush2.bf16.msra.mxu0 0
    %1797 = vmatprep.subr.bf16.mxu0 0
    %1798 = vmatpush2.bf16.msra.mxu0 0
    %1799 = vmatprep.mubr.bf16.mxu0 0
    %1800 = vmatmul.mubr.bf16.gmra.mxu0 %v1766
    %v1801 = vpop.f32.mrf.mxu0
    %v1802 = vadd.f32 0.0, %v1801
    %v1803 = vpop.f32.mrf.mxu0
    %v1804 = vadd.f32 0.0, %v1803
    %v1805 = vpop.f32.mrf.mxu0
    %v1806 = vpop.f32.mrf.mxu0
    %1807 = vdwg.mxu0
    %1808 = vmatprep.subr.bf16.mxu0 %v851
    %1809 = vmatpush1.bf16.msra.mxu0 %v850
    %1810 = vmatprep.subr.bf16.mxu0 %v847
    %1811 = vmatpush1.bf16.msra.mxu0 %v846
    %1812 = vmatprep.subr.bf16.mxu0 %v843
    %1813 = vmatpush1.bf16.msra.mxu0 %v842
    %1814 = vmatprep.subr.bf16.mxu0 %v839
    %1815 = vmatpush1.bf16.msra.mxu0 %v838
    %1816 = vmatprep.subr.bf16.mxu0 %v835
    %1817 = vmatpush1.bf16.msra.mxu0 %v834
    %1818 = vmatprep.subr.bf16.mxu0 %v831
    %1819 = vmatpush1.bf16.msra.mxu0 %v830
    %1820 = vmatprep.subr.bf16.mxu0 %v827
    %1821 = vmatpush1.bf16.msra.mxu0 %v826
    %1822 = vmatprep.subr.bf16.mxu0 %v823
    %1823 = vmatpush1.bf16.msra.mxu0 %v822
    %1824 = vmatprep.subr.bf16.mxu0 0
    %1825 = vmatpush2.bf16.msra.mxu0 0
    %1826 = vmatprep.subr.bf16.mxu0 0
    %1827 = vmatpush2.bf16.msra.mxu0 0
    %1828 = vmatprep.subr.bf16.mxu0 0
    %1829 = vmatpush2.bf16.msra.mxu0 0
    %1830 = vmatprep.subr.bf16.mxu0 0
    %1831 = vmatpush2.bf16.msra.mxu0 0
    %1832 = vmatprep.subr.bf16.mxu0 0
    %1833 = vmatpush2.bf16.msra.mxu0 0
    %1834 = vmatprep.subr.bf16.mxu0 0
    %1835 = vmatpush2.bf16.msra.mxu0 0
    %1836 = vmatprep.subr.bf16.mxu0 0
    %1837 = vmatpush2.bf16.msra.mxu0 0
    %1838 = vmatprep.subr.bf16.mxu0 0
    %1839 = vmatpush2.bf16.msra.mxu0 0
    %1840 = vmatprep.mubr.bf16.mxu0 0
    %1841 = vmatmul.mubr.bf16.gmra.mxu0 %v1766
    %v1842 = vpop.f32.mrf.mxu0
    %v1843 = vadd.f32 0.0, %v1842
    %v1844 = vpop.f32.mrf.mxu0
    %v1845 = vadd.f32 0.0, %v1844
    %v1846 = vpop.f32.mrf.mxu0
    %v1847 = vpop.f32.mrf.mxu0
    %1848 = vdwg.mxu0
    %v1849 = vadd.f32 %v1749, %v1802
    %v1850 = vadd.f32 %v1750, %v1804
    %v1851 = vadd.f32 %v1751, %v1843
    %v1852 = vadd.f32 %v1752, %v1845
    %v1853 = vpack.c.bf16 %v1745, %v1745
    %1854 = vmatprep.subr.bf16.mxu0 %v1095
    %1855 = vmatpush1.bf16.msra.mxu0 %v1094
    %1856 = vmatprep.subr.bf16.mxu0 %v1091
    %1857 = vmatpush1.bf16.msra.mxu0 %v1090
    %1858 = vmatprep.subr.bf16.mxu0 %v1087
    %1859 = vmatpush1.bf16.msra.mxu0 %v1086
    %1860 = vmatprep.subr.bf16.mxu0 %v1083
    %1861 = vmatpush1.bf16.msra.mxu0 %v1082
    %1862 = vmatprep.subr.bf16.mxu0 %v1079
    %1863 = vmatpush1.bf16.msra.mxu0 %v1078
    %1864 = vmatprep.subr.bf16.mxu0 %v1075
    %1865 = vmatpush1.bf16.msra.mxu0 %v1074
    %1866 = vmatprep.subr.bf16.mxu0 %v1071
    %1867 = vmatpush1.bf16.msra.mxu0 %v1070
    %1868 = vmatprep.subr.bf16.mxu0 %v1067
    %1869 = vmatpush1.bf16.msra.mxu0 %v1066
    %1870 = vmatprep.subr.bf16.mxu0 0
    %1871 = vmatpush2.bf16.msra.mxu0 0
    %1872 = vmatprep.subr.bf16.mxu0 0
    %1873 = vmatpush2.bf16.msra.mxu0 0
    %1874 = vmatprep.subr.bf16.mxu0 0
    %1875 = vmatpush2.bf16.msra.mxu0 0
    %1876 = vmatprep.subr.bf16.mxu0 0
    %1877 = vmatpush2.bf16.msra.mxu0 0
    %1878 = vmatprep.subr.bf16.mxu0 0
    %1879 = vmatpush2.bf16.msra.mxu0 0
    %1880 = vmatprep.subr.bf16.mxu0 0
    %1881 = vmatpush2.bf16.msra.mxu0 0
    %1882 = vmatprep.subr.bf16.mxu0 0
    %1883 = vmatpush2.bf16.msra.mxu0 0
    %1884 = vmatprep.subr.bf16.mxu0 0
    %1885 = vmatpush2.bf16.msra.mxu0 0
    %1886 = vmatprep.mubr.bf16.mxu0 0
    %1887 = vmatmul.mubr.bf16.gmra.mxu0 %v1853
    %v1888 = vpop.f32.mrf.mxu0
    %v1889 = vadd.f32 0.0, %v1888
    %v1890 = vpop.f32.mrf.mxu0
    %v1891 = vadd.f32 0.0, %v1890
    %v1892 = vpop.f32.mrf.mxu0
    %v1893 = vpop.f32.mrf.mxu0
    %1894 = vdwg.mxu0
    %1895 = vmatprep.subr.bf16.mxu0 %v1097
    %1896 = vmatpush1.bf16.msra.mxu0 %v1096
    %1897 = vmatprep.subr.bf16.mxu0 %v1093
    %1898 = vmatpush1.bf16.msra.mxu0 %v1092
    %1899 = vmatprep.subr.bf16.mxu0 %v1089
    %1900 = vmatpush1.bf16.msra.mxu0 %v1088
    %1901 = vmatprep.subr.bf16.mxu0 %v1085
    %1902 = vmatpush1.bf16.msra.mxu0 %v1084
    %1903 = vmatprep.subr.bf16.mxu0 %v1081
    %1904 = vmatpush1.bf16.msra.mxu0 %v1080
    %1905 = vmatprep.subr.bf16.mxu0 %v1077
    %1906 = vmatpush1.bf16.msra.mxu0 %v1076
    %1907 = vmatprep.subr.bf16.mxu0 %v1073
    %1908 = vmatpush1.bf16.msra.mxu0 %v1072
    %1909 = vmatprep.subr.bf16.mxu0 %v1069
    %1910 = vmatpush1.bf16.msra.mxu0 %v1068
    %1911 = vmatprep.subr.bf16.mxu0 0
    %1912 = vmatpush2.bf16.msra.mxu0 0
    %1913 = vmatprep.subr.bf16.mxu0 0
    %1914 = vmatpush2.bf16.msra.mxu0 0
    %1915 = vmatprep.subr.bf16.mxu0 0
    %1916 = vmatpush2.bf16.msra.mxu0 0
    %1917 = vmatprep.subr.bf16.mxu0 0
    %1918 = vmatpush2.bf16.msra.mxu0 0
    %1919 = vmatprep.subr.bf16.mxu0 0
    %1920 = vmatpush2.bf16.msra.mxu0 0
    %1921 = vmatprep.subr.bf16.mxu0 0
    %1922 = vmatpush2.bf16.msra.mxu0 0
    %1923 = vmatprep.subr.bf16.mxu0 0
    %1924 = vmatpush2.bf16.msra.mxu0 0
    %1925 = vmatprep.subr.bf16.mxu0 0
    %1926 = vmatpush2.bf16.msra.mxu0 0
    %1927 = vmatprep.mubr.bf16.mxu0 0
    %1928 = vmatmul.mubr.bf16.gmra.mxu0 %v1853
    %v1929 = vpop.f32.mrf.mxu0
    %v1930 = vadd.f32 0.0, %v1929
    %v1931 = vpop.f32.mrf.mxu0
    %v1932 = vadd.f32 0.0, %v1931
    %v1933 = vpop.f32.mrf.mxu0
    %v1934 = vpop.f32.mrf.mxu0
    %1935 = vdwg.mxu0
    %v1936 = vadd.f32 %v1762, %v1889
    %v1937 = vadd.f32 %v1763, %v1891
    %v1938 = vadd.f32 %v1764, %v1930
    %v1939 = vadd.f32 %v1765, %v1932
    %v1940 = vxor.u32 %v1849, 2147483648
    %v1941 = vmul.f32 %v1940, 1.442695
    %v1942 = vpow.pop %v1941
    %v1943 = vadd.f32 %v1942, 1.0
    %v1944 = vrcp.pop %v1943
    %v1945 = vmul.f32 1.0, %v1944
    %v1946 = vxor.u32 %v1850, 2147483648
    %v1947 = vmul.f32 %v1946, 1.442695
    %v1948 = vpow.pop %v1947
    %v1949 = vadd.f32 %v1948, 1.0
    %v1950 = vrcp.pop %v1949
    %v1951 = vmul.f32 1.0, %v1950
    %v1952 = vtanh.pop %v1851
    %v1953 = vxor.u32 %v1852, 2147483648
    %v1954 = vmul.f32 %v1953, 1.442695
    %v1955 = vpow.pop %v1954
    %v1956 = vadd.f32 %v1955, 1.0
    %v1957 = vrcp.pop %v1956
    %v1958 = vmul.f32 1.0, %v1957
    %v1959 = vmul.f32 %v1951, %v1719
    %v1960 = vmul.f32 %v1945, %v1952
    %v1961 = vadd.f32 %v1959, %v1960
    %v1962 = vtanh.pop %v1961
    %v1963 = vmul.f32 %v1958, %v1962
    %v1964 = vxor.u32 %v1936, 2147483648
    %v1965 = vmul.f32 %v1964, 1.442695
    %v1966 = vpow.pop %v1965
    %v1967 = vadd.f32 %v1966, 1.0
    %v1968 = vrcp.pop %v1967
    %v1969 = vmul.f32 1.0, %v1968
    %v1970 = vxor.u32 %v1937, 2147483648
    %v1971 = vmul.f32 %v1970, 1.442695
    %v1972 = vpow.pop %v1971
    %v1973 = vadd.f32 %v1972, 1.0
    %v1974 = vrcp.pop %v1973
    %v1975 = vmul.f32 1.0, %v1974
    %v1976 = vtanh.pop %v1938
    %v1977 = vxor.u32 %v1939, 2147483648
    %v1978 = vmul.f32 %v1977, 1.442695
    %v1979 = vpow.pop %v1978
    %v1980 = vadd.f32 %v1979, 1.0
    %v1981 = vrcp.pop %v1980
    %v1982 = vmul.f32 1.0, %v1981
    %v1983 = vmul.f32 %v1975, %v1743
    %v1984 = vmul.f32 %v1969, %v1976
    %v1985 = vadd.f32 %v1983, %v1984
    %v1986 = vtanh.pop %v1985
    %v1987 = vmul.f32 %v1982, %v1986
    %v1988 = vmax.f32 %v1746, %v1963
    %v1989 = vmax.f32 %v1747, %v1987
    %v1990 = vpack.c.bf16 %v1963, %v1963
    %1991 = vmatprep.subr.bf16.mxu0 %v849
    %1992 = vmatpush1.bf16.msra.mxu0 %v848
    %1993 = vmatprep.subr.bf16.mxu0 %v845
    %1994 = vmatpush1.bf16.msra.mxu0 %v844
    %1995 = vmatprep.subr.bf16.mxu0 %v841
    %1996 = vmatpush1.bf16.msra.mxu0 %v840
    %1997 = vmatprep.subr.bf16.mxu0 %v837
    %1998 = vmatpush1.bf16.msra.mxu0 %v836
    %1999 = vmatprep.subr.bf16.mxu0 %v833
    %2000 = vmatpush1.bf16.msra.mxu0 %v832
    %2001 = vmatprep.subr.bf16.mxu0 %v829
    %2002 = vmatpush1.bf16.msra.mxu0 %v828
    %2003 = vmatprep.subr.bf16.mxu0 %v825
    %2004 = vmatpush1.bf16.msra.mxu0 %v824
    %2005 = vmatprep.subr.bf16.mxu0 %v821
    %2006 = vmatpush1.bf16.msra.mxu0 %v820
    %2007 = vmatprep.subr.bf16.mxu0 0
    %2008 = vmatpush2.bf16.msra.mxu0 0
    %2009 = vmatprep.subr.bf16.mxu0 0
    %2010 = vmatpush2.bf16.msra.mxu0 0
    %2011 = vmatprep.subr.bf16.mxu0 0
    %2012 = vmatpush2.bf16.msra.mxu0 0
    %2013 = vmatprep.subr.bf16.mxu0 0
    %2014 = vmatpush2.bf16.msra.mxu0 0
    %2015 = vmatprep.subr.bf16.mxu0 0
    %2016 = vmatpush2.bf16.msra.mxu0 0
    %2017 = vmatprep.subr.bf16.mxu0 0
    %2018 = vmatpush2.bf16.msra.mxu0 0
    %2019 = vmatprep.subr.bf16.mxu0 0
    %2020 = vmatpush2.bf16.msra.mxu0 0
    %2021 = vmatprep.subr.bf16.mxu0 0
    %2022 = vmatpush2.bf16.msra.mxu0 0
    %2023 = vmatprep.mubr.bf16.mxu0 0
    %2024 = vmatmul.mubr.bf16.gmra.mxu0 %v1990
    %v2025 = vpop.f32.mrf.mxu0
    %v2026 = vadd.f32 0.0, %v2025
    %v2027 = vpop.f32.mrf.mxu0
    %v2028 = vadd.f32 0.0, %v2027
    %v2029 = vpop.f32.mrf.mxu0
    %v2030 = vpop.f32.mrf.mxu0
    %2031 = vdwg.mxu0
    %2032 = vmatprep.subr.bf16.mxu0 %v851
    %2033 = vmatpush1.bf16.msra.mxu0 %v850
    %2034 = vmatprep.subr.bf16.mxu0 %v847
    %2035 = vmatpush1.bf16.msra.mxu0 %v846
    %2036 = vmatprep.subr.bf16.mxu0 %v843
    %2037 = vmatpush1.bf16.msra.mxu0 %v842
    %2038 = vmatprep.subr.bf16.mxu0 %v839
    %2039 = vmatpush1.bf16.msra.mxu0 %v838
    %2040 = vmatprep.subr.bf16.mxu0 %v835
    %2041 = vmatpush1.bf16.msra.mxu0 %v834
    %2042 = vmatprep.subr.bf16.mxu0 %v831
    %2043 = vmatpush1.bf16.msra.mxu0 %v830
    %2044 = vmatprep.subr.bf16.mxu0 %v827
    %2045 = vmatpush1.bf16.msra.mxu0 %v826
    %2046 = vmatprep.subr.bf16.mxu0 %v823
    %2047 = vmatpush1.bf16.msra.mxu0 %v822
    %2048 = vmatprep.subr.bf16.mxu0 0
    %2049 = vmatpush2.bf16.msra.mxu0 0
    %2050 = vmatprep.subr.bf16.mxu0 0
    %2051 = vmatpush2.bf16.msra.mxu0 0
    %2052 = vmatprep.subr.bf16.mxu0 0
    %2053 = vmatpush2.bf16.msra.mxu0 0
    %2054 = vmatprep.subr.bf16.mxu0 0
    %2055 = vmatpush2.bf16.msra.mxu0 0
    %2056 = vmatprep.subr.bf16.mxu0 0
    %2057 = vmatpush2.bf16.msra.mxu0 0
    %2058 = vmatprep.subr.bf16.mxu0 0
    %2059 = vmatpush2.bf16.msra.mxu0 0
    %2060 = vmatprep.subr.bf16.mxu0 0
    %2061 = vmatpush2.bf16.msra.mxu0 0
    %2062 = vmatprep.subr.bf16.mxu0 0
    %2063 = vmatpush2.bf16.msra.mxu0 0
    %2064 = vmatprep.mubr.bf16.mxu0 0
    %2065 = vmatmul.mubr.bf16.gmra.mxu0 %v1990
    %v2066 = vpop.f32.mrf.mxu0
    %v2067 = vadd.f32 0.0, %v2066
    %v2068 = vpop.f32.mrf.mxu0
    %v2069 = vadd.f32 0.0, %v2068
    %v2070 = vpop.f32.mrf.mxu0
    %v2071 = vpop.f32.mrf.mxu0
    %2072 = vdwg.mxu0
    %v2073 = vadd.f32 %v1758, %v2026
    %v2074 = vadd.f32 %v1759, %v2028
    %v2075 = vadd.f32 %v1760, %v2067
    %v2076 = vadd.f32 %v1761, %v2069
    %v2077 = vpack.c.bf16 %v1987, %v1987
    %2078 = vmatprep.subr.bf16.mxu0 %v1095
    %2079 = vmatpush1.bf16.msra.mxu0 %v1094
    %2080 = vmatprep.subr.bf16.mxu0 %v1091
    %2081 = vmatpush1.bf16.msra.mxu0 %v1090
    %2082 = vmatprep.subr.bf16.mxu0 %v1087
    %2083 = vmatpush1.bf16.msra.mxu0 %v1086
    %2084 = vmatprep.subr.bf16.mxu0 %v1083
    %2085 = vmatpush1.bf16.msra.mxu0 %v1082
    %2086 = vmatprep.subr.bf16.mxu0 %v1079
    %2087 = vmatpush1.bf16.msra.mxu0 %v1078
    %2088 = vmatprep.subr.bf16.mxu0 %v1075
    %2089 = vmatpush1.bf16.msra.mxu0 %v1074
    %2090 = vmatprep.subr.bf16.mxu0 %v1071
    %2091 = vmatpush1.bf16.msra.mxu0 %v1070
    %2092 = vmatprep.subr.bf16.mxu0 %v1067
    %2093 = vmatpush1.bf16.msra.mxu0 %v1066
    %2094 = vmatprep.subr.bf16.mxu0 0
    %2095 = vmatpush2.bf16.msra.mxu0 0
    %2096 = vmatprep.subr.bf16.mxu0 0
    %2097 = vmatpush2.bf16.msra.mxu0 0
    %2098 = vmatprep.subr.bf16.mxu0 0
    %2099 = vmatpush2.bf16.msra.mxu0 0
    %2100 = vmatprep.subr.bf16.mxu0 0
    %2101 = vmatpush2.bf16.msra.mxu0 0
    %2102 = vmatprep.subr.bf16.mxu0 0
    %2103 = vmatpush2.bf16.msra.mxu0 0
    %2104 = vmatprep.subr.bf16.mxu0 0
    %2105 = vmatpush2.bf16.msra.mxu0 0
    %2106 = vmatprep.subr.bf16.mxu0 0
    %2107 = vmatpush2.bf16.msra.mxu0 0
    %2108 = vmatprep.subr.bf16.mxu0 0
    %2109 = vmatpush2.bf16.msra.mxu0 0
    %2110 = vmatprep.mubr.bf16.mxu0 0
    %2111 = vmatmul.mubr.bf16.gmra.mxu0 %v2077
    %v2112 = vpop.f32.mrf.mxu0
    %v2113 = vadd.f32 0.0, %v2112
    %v2114 = vpop.f32.mrf.mxu0
    %v2115 = vadd.f32 0.0, %v2114
    %v2116 = vpop.f32.mrf.mxu0
    %v2117 = vpop.f32.mrf.mxu0
    %2118 = vdwg.mxu0
    %2119 = vmatprep.subr.bf16.mxu0 %v1097
    %2120 = vmatpush1.bf16.msra.mxu0 %v1096
    %2121 = vmatprep.subr.bf16.mxu0 %v1093
    %2122 = vmatpush1.bf16.msra.mxu0 %v1092
    %2123 = vmatprep.subr.bf16.mxu0 %v1089
    %2124 = vmatpush1.bf16.msra.mxu0 %v1088
    %2125 = vmatprep.subr.bf16.mxu0 %v1085
    %2126 = vmatpush1.bf16.msra.mxu0 %v1084
    %2127 = vmatprep.subr.bf16.mxu0 %v1081
    %2128 = vmatpush1.bf16.msra.mxu0 %v1080
    %2129 = vmatprep.subr.bf16.mxu0 %v1077
    %2130 = vmatpush1.bf16.msra.mxu0 %v1076
    %2131 = vmatprep.subr.bf16.mxu0 %v1073
    %2132 = vmatpush1.bf16.msra.mxu0 %v1072
    %2133 = vmatprep.subr.bf16.mxu0 %v1069
    %2134 = vmatpush1.bf16.msra.mxu0 %v1068
    %2135 = vmatprep.subr.bf16.mxu0 0
    %2136 = vmatpush2.bf16.msra.mxu0 0
    %2137 = vmatprep.subr.bf16.mxu0 0
    %2138 = vmatpush2.bf16.msra.mxu0 0
    %2139 = vmatprep.subr.bf16.mxu0 0
    %2140 = vmatpush2.bf16.msra.mxu0 0
    %2141 = vmatprep.subr.bf16.mxu0 0
    %2142 = vmatpush2.bf16.msra.mxu0 0
    %2143 = vmatprep.subr.bf16.mxu0 0
    %2144 = vmatpush2.bf16.msra.mxu0 0
    %2145 = vmatprep.subr.bf16.mxu0 0
    %2146 = vmatpush2.bf16.msra.mxu0 0
    %2147 = vmatprep.subr.bf16.mxu0 0
    %2148 = vmatpush2.bf16.msra.mxu0 0
    %2149 = vmatprep.subr.bf16.mxu0 0
    %2150 = vmatpush2.bf16.msra.mxu0 0
    %2151 = vmatprep.mubr.bf16.mxu0 0
    %2152 = vmatmul.mubr.bf16.gmra.mxu0 %v2077
    %v2153 = vpop.f32.mrf.mxu0
    %v2154 = vadd.f32 0.0, %v2153
    %v2155 = vpop.f32.mrf.mxu0
    %v2156 = vadd.f32 0.0, %v2155
    %v2157 = vpop.f32.mrf.mxu0
    %v2158 = vpop.f32.mrf.mxu0
    %2159 = vdwg.mxu0
    %v2160 = vadd.f32 %v1753, %v2113
    %v2161 = vadd.f32 %v1754, %v2115
    %v2162 = vadd.f32 %v1755, %v2154
    %v2163 = vadd.f32 %v1756, %v2156
    %v2164 = vxor.u32 %v2073, 2147483648
    %v2165 = vmul.f32 %v2164, 1.442695
    %v2166 = vpow.pop %v2165
    %v2167 = vadd.f32 %v2166, 1.0
    %v2168 = vrcp.pop %v2167
    %v2169 = vmul.f32 1.0, %v2168
    %v2170 = vxor.u32 %v2074, 2147483648
    %v2171 = vmul.f32 %v2170, 1.442695
    %v2172 = vpow.pop %v2171
    %v2173 = vadd.f32 %v2172, 1.0
    %v2174 = vrcp.pop %v2173
    %v2175 = vmul.f32 1.0, %v2174
    %v2176 = vtanh.pop %v2075
    %v2177 = vxor.u32 %v2076, 2147483648
    %v2178 = vmul.f32 %v2177, 1.442695
    %v2179 = vpow.pop %v2178
    %v2180 = vadd.f32 %v2179, 1.0
    %v2181 = vrcp.pop %v2180
    %v2182 = vmul.f32 1.0, %v2181
    %v2183 = vmul.f32 %v2175, %v1961
    %v2184 = vmul.f32 %v2169, %v2176
    %v2185 = vadd.f32 %v2183, %v2184
    %v2186 = vtanh.pop %v2185
    %v2187 = vmul.f32 %v2182, %v2186
    %v2188 = vxor.u32 %v2160, 2147483648
    %v2189 = vmul.f32 %v2188, 1.442695
    %v2190 = vpow.pop %v2189
    %v2191 = vadd.f32 %v2190, 1.0
    %v2192 = vrcp.pop %v2191
    %v2193 = vmul.f32 1.0, %v2192
    %v2194 = vxor.u32 %v2161, 2147483648
    %v2195 = vmul.f32 %v2194, 1.442695
    %v2196 = vpow.pop %v2195
    %v2197 = vadd.f32 %v2196, 1.0
    %v2198 = vrcp.pop %v2197
    %v2199 = vmul.f32 1.0, %v2198
    %v2200 = vtanh.pop %v2162
    %v2201 = vxor.u32 %v2163, 2147483648
    %v2202 = vmul.f32 %v2201, 1.442695
    %v2203 = vpow.pop %v2202
    %v2204 = vadd.f32 %v2203, 1.0
    %v2205 = vrcp.pop %v2204
    %v2206 = vmul.f32 1.0, %v2205
    %v2207 = vmul.f32 %v2199, %v1985
    %v2208 = vmul.f32 %v2193, %v2200
    %v2209 = vadd.f32 %v2207, %v2208
    %v2210 = vtanh.pop %v2209
    %v2211 = vmul.f32 %v2206, %v2210
    %v2212 = vmax.f32 %v1988, %v2187
    %v2213 = vmax.f32 %v1989, %v2211
    %v2214 = vpack.c.bf16 %v2187, %v2187
    %2215 = vmatprep.subr.bf16.mxu0 %v849
    %2216 = vmatpush1.bf16.msra.mxu0 %v848
    %2217 = vmatprep.subr.bf16.mxu0 %v845
    %2218 = vmatpush1.bf16.msra.mxu0 %v844
    %2219 = vmatprep.subr.bf16.mxu0 %v841
    %2220 = vmatpush1.bf16.msra.mxu0 %v840
    %2221 = vmatprep.subr.bf16.mxu0 %v837
    %2222 = vmatpush1.bf16.msra.mxu0 %v836
    %2223 = vmatprep.subr.bf16.mxu0 %v833
    %2224 = vmatpush1.bf16.msra.mxu0 %v832
    %2225 = vmatprep.subr.bf16.mxu0 %v829
    %2226 = vmatpush1.bf16.msra.mxu0 %v828
    %2227 = vmatprep.subr.bf16.mxu0 %v825
    %2228 = vmatpush1.bf16.msra.mxu0 %v824
    %2229 = vmatprep.subr.bf16.mxu0 %v821
    %2230 = vmatpush1.bf16.msra.mxu0 %v820
    %2231 = vmatprep.subr.bf16.mxu0 0
    %2232 = vmatpush2.bf16.msra.mxu0 0
    %2233 = vmatprep.subr.bf16.mxu0 0
    %2234 = vmatpush2.bf16.msra.mxu0 0
    %2235 = vmatprep.subr.bf16.mxu0 0
    %2236 = vmatpush2.bf16.msra.mxu0 0
    %2237 = vmatprep.subr.bf16.mxu0 0
    %2238 = vmatpush2.bf16.msra.mxu0 0
    %2239 = vmatprep.subr.bf16.mxu0 0
    %2240 = vmatpush2.bf16.msra.mxu0 0
    %2241 = vmatprep.subr.bf16.mxu0 0
    %2242 = vmatpush2.bf16.msra.mxu0 0
    %2243 = vmatprep.subr.bf16.mxu0 0
    %2244 = vmatpush2.bf16.msra.mxu0 0
    %2245 = vmatprep.subr.bf16.mxu0 0
    %2246 = vmatpush2.bf16.msra.mxu0 0
    %2247 = vmatprep.mubr.bf16.mxu0 0
    %2248 = vmatmul.mubr.bf16.gmra.mxu0 %v2214
    %v2249 = vpop.f32.mrf.mxu0
    %v2250 = vadd.f32 0.0, %v2249
    %v2251 = vpop.f32.mrf.mxu0
    %v2252 = vadd.f32 0.0, %v2251
    %v2253 = vpop.f32.mrf.mxu0
    %v2254 = vpop.f32.mrf.mxu0
    %2255 = vdwg.mxu0
    %2256 = vmatprep.subr.bf16.mxu0 %v851
    %2257 = vmatpush1.bf16.msra.mxu0 %v850
    %2258 = vmatprep.subr.bf16.mxu0 %v847
    %2259 = vmatpush1.bf16.msra.mxu0 %v846
    %2260 = vmatprep.subr.bf16.mxu0 %v843
    %2261 = vmatpush1.bf16.msra.mxu0 %v842
    %2262 = vmatprep.subr.bf16.mxu0 %v839
    %2263 = vmatpush1.bf16.msra.mxu0 %v838
    %2264 = vmatprep.subr.bf16.mxu0 %v835
    %2265 = vmatpush1.bf16.msra.mxu0 %v834
    %2266 = vmatprep.subr.bf16.mxu0 %v831
    %2267 = vmatpush1.bf16.msra.mxu0 %v830
    %2268 = vmatprep.subr.bf16.mxu0 %v827
    %2269 = vmatpush1.bf16.msra.mxu0 %v826
    %2270 = vmatprep.subr.bf16.mxu0 %v823
    %2271 = vmatpush1.bf16.msra.mxu0 %v822
    %2272 = vmatprep.subr.bf16.mxu0 0
    %2273 = vmatpush2.bf16.msra.mxu0 0
    %2274 = vmatprep.subr.bf16.mxu0 0
    %2275 = vmatpush2.bf16.msra.mxu0 0
    %2276 = vmatprep.subr.bf16.mxu0 0
    %2277 = vmatpush2.bf16.msra.mxu0 0
    %2278 = vmatprep.subr.bf16.mxu0 0
    %2279 = vmatpush2.bf16.msra.mxu0 0
    %2280 = vmatprep.subr.bf16.mxu0 0
    %2281 = vmatpush2.bf16.msra.mxu0 0
    %2282 = vmatprep.subr.bf16.mxu0 0
    %2283 = vmatpush2.bf16.msra.mxu0 0
    %2284 = vmatprep.subr.bf16.mxu0 0
    %2285 = vmatpush2.bf16.msra.mxu0 0
    %2286 = vmatprep.subr.bf16.mxu0 0
    %2287 = vmatpush2.bf16.msra.mxu0 0
    %2288 = vmatprep.mubr.bf16.mxu0 0
    %2289 = vmatmul.mubr.bf16.gmra.mxu0 %v2214
    %v2290 = vpop.f32.mrf.mxu0
    %v2291 = vadd.f32 0.0, %v2290
    %v2292 = vpop.f32.mrf.mxu0
    %v2293 = vadd.f32 0.0, %v2292
    %v2294 = vpop.f32.mrf.mxu0
    %v2295 = vpop.f32.mrf.mxu0
    %2296 = vdwg.mxu0
    %v2297 = vadd.f32 %v1516, %v2250
    %v2298 = vadd.f32 %v1517, %v2252
    %v2299 = vadd.f32 %v1518, %v2291
    %v2300 = vadd.f32 %v1519, %v2293
    %v2301 = vpack.c.bf16 %v2211, %v2211
    %2302 = vmatprep.subr.bf16.mxu0 %v1095
    %2303 = vmatpush1.bf16.msra.mxu0 %v1094
    %2304 = vmatprep.subr.bf16.mxu0 %v1091
    %2305 = vmatpush1.bf16.msra.mxu0 %v1090
    %2306 = vmatprep.subr.bf16.mxu0 %v1087
    %2307 = vmatpush1.bf16.msra.mxu0 %v1086
    %2308 = vmatprep.subr.bf16.mxu0 %v1083
    %2309 = vmatpush1.bf16.msra.mxu0 %v1082
    %2310 = vmatprep.subr.bf16.mxu0 %v1079
    %2311 = vmatpush1.bf16.msra.mxu0 %v1078
    %2312 = vmatprep.subr.bf16.mxu0 %v1075
    %2313 = vmatpush1.bf16.msra.mxu0 %v1074
    %2314 = vmatprep.subr.bf16.mxu0 %v1071
    %2315 = vmatpush1.bf16.msra.mxu0 %v1070
    %2316 = vmatprep.subr.bf16.mxu0 %v1067
    %2317 = vmatpush1.bf16.msra.mxu0 %v1066
    %2318 = vmatprep.subr.bf16.mxu0 0
    %2319 = vmatpush2.bf16.msra.mxu0 0
    %2320 = vmatprep.subr.bf16.mxu0 0
    %2321 = vmatpush2.bf16.msra.mxu0 0
    %2322 = vmatprep.subr.bf16.mxu0 0
    %2323 = vmatpush2.bf16.msra.mxu0 0
    %2324 = vmatprep.subr.bf16.mxu0 0
    %2325 = vmatpush2.bf16.msra.mxu0 0
    %2326 = vmatprep.subr.bf16.mxu0 0
    %2327 = vmatpush2.bf16.msra.mxu0 0
    %2328 = vmatprep.subr.bf16.mxu0 0
    %2329 = vmatpush2.bf16.msra.mxu0 0
    %2330 = vmatprep.subr.bf16.mxu0 0
    %2331 = vmatpush2.bf16.msra.mxu0 0
    %2332 = vmatprep.subr.bf16.mxu0 0
    %2333 = vmatpush2.bf16.msra.mxu0 0
    %2334 = vmatprep.mubr.bf16.mxu0 0
    %2335 = vmatmul.mubr.bf16.gmra.mxu0 %v2301
    %v2336 = vpop.f32.mrf.mxu0
    %v2337 = vadd.f32 0.0, %v2336
    %v2338 = vpop.f32.mrf.mxu0
    %v2339 = vadd.f32 0.0, %v2338
    %v2340 = vpop.f32.mrf.mxu0
    %v2341 = vpop.f32.mrf.mxu0
    %2342 = vdwg.mxu0
    %2343 = vmatprep.subr.bf16.mxu0 %v1097
    %2344 = vmatpush1.bf16.msra.mxu0 %v1096
    %2345 = vmatprep.subr.bf16.mxu0 %v1093
    %2346 = vmatpush1.bf16.msra.mxu0 %v1092
    %2347 = vmatprep.subr.bf16.mxu0 %v1089
    %2348 = vmatpush1.bf16.msra.mxu0 %v1088
    %2349 = vmatprep.subr.bf16.mxu0 %v1085
    %2350 = vmatpush1.bf16.msra.mxu0 %v1084
    %2351 = vmatprep.subr.bf16.mxu0 %v1081
    %2352 = vmatpush1.bf16.msra.mxu0 %v1080
    %2353 = vmatprep.subr.bf16.mxu0 %v1077
    %2354 = vmatpush1.bf16.msra.mxu0 %v1076
    %2355 = vmatprep.subr.bf16.mxu0 %v1073
    %2356 = vmatpush1.bf16.msra.mxu0 %v1072
    %2357 = vmatprep.subr.bf16.mxu0 %v1069
    %2358 = vmatpush1.bf16.msra.mxu0 %v1068
    %2359 = vmatprep.subr.bf16.mxu0 0
    %2360 = vmatpush2.bf16.msra.mxu0 0
    %2361 = vmatprep.subr.bf16.mxu0 0
    %2362 = vmatpush2.bf16.msra.mxu0 0
    %2363 = vmatprep.subr.bf16.mxu0 0
    %2364 = vmatpush2.bf16.msra.mxu0 0
    %2365 = vmatprep.subr.bf16.mxu0 0
    %2366 = vmatpush2.bf16.msra.mxu0 0
    %2367 = vmatprep.subr.bf16.mxu0 0
    %2368 = vmatpush2.bf16.msra.mxu0 0
    %2369 = vmatprep.subr.bf16.mxu0 0
    %2370 = vmatpush2.bf16.msra.mxu0 0
    %2371 = vmatprep.subr.bf16.mxu0 0
    %2372 = vmatpush2.bf16.msra.mxu0 0
    %2373 = vmatprep.subr.bf16.mxu0 0
    %2374 = vmatpush2.bf16.msra.mxu0 0
    %2375 = vmatprep.mubr.bf16.mxu0 0
    %2376 = vmatmul.mubr.bf16.gmra.mxu0 %v2301
    %v2377 = vpop.f32.mrf.mxu0
    %v2378 = vadd.f32 0.0, %v2377
    %v2379 = vpop.f32.mrf.mxu0
    %v2380 = vadd.f32 0.0, %v2379
    %v2381 = vpop.f32.mrf.mxu0
    %v2382 = vpop.f32.mrf.mxu0
    %2383 = vdwg.mxu0
    %v2384 = vadd.f32 %v1511, %v2337
    %v2385 = vadd.f32 %v1512, %v2339
    %v2386 = vadd.f32 %v1513, %v2378
    %v2387 = vadd.f32 %v1514, %v2380
    %v2388 = vxor.u32 %v2297, 2147483648
    %v2389 = vmul.f32 %v2388, 1.442695
    %v2390 = vpow.pop %v2389
    %v2391 = vadd.f32 %v2390, 1.0
    %v2392 = vrcp.pop %v2391
    %v2393 = vmul.f32 1.0, %v2392
    %v2394 = vxor.u32 %v2298, 2147483648
    %v2395 = vmul.f32 %v2394, 1.442695
    %v2396 = vpow.pop %v2395
    %v2397 = vadd.f32 %v2396, 1.0
    %v2398 = vrcp.pop %v2397
    %v2399 = vmul.f32 1.0, %v2398
    %v2400 = vtanh.pop %v2299
    %v2401 = vxor.u32 %v2300, 2147483648
    %v2402 = vmul.f32 %v2401, 1.442695
    %v2403 = vpow.pop %v2402
    %v2404 = vadd.f32 %v2403, 1.0
    %v2405 = vrcp.pop %v2404
    %v2406 = vmul.f32 1.0, %v2405
    %v2407 = vmul.f32 %v2399, %v2185
    %v2408 = vmul.f32 %v2393, %v2400
    %v2409 = vadd.f32 %v2407, %v2408
    %v2410 = vtanh.pop %v2409
    %v2411 = vmul.f32 %v2406, %v2410
    %v2412 = vxor.u32 %v2384, 2147483648
    %v2413 = vmul.f32 %v2412, 1.442695
    %v2414 = vpow.pop %v2413
    %v2415 = vadd.f32 %v2414, 1.0
    %v2416 = vrcp.pop %v2415
    %v2417 = vmul.f32 1.0, %v2416
    %v2418 = vxor.u32 %v2385, 2147483648
    %v2419 = vmul.f32 %v2418, 1.442695
    %v2420 = vpow.pop %v2419
    %v2421 = vadd.f32 %v2420, 1.0
    %v2422 = vrcp.pop %v2421
    %v2423 = vmul.f32 1.0, %v2422
    %v2424 = vtanh.pop %v2386
    %v2425 = vxor.u32 %v2387, 2147483648
    %v2426 = vmul.f32 %v2425, 1.442695
    %v2427 = vpow.pop %v2426
    %v2428 = vadd.f32 %v2427, 1.0
    %v2429 = vrcp.pop %v2428
    %v2430 = vmul.f32 1.0, %v2429
    %v2431 = vmul.f32 %v2423, %v2209
    %v2432 = vmul.f32 %v2417, %v2424
    %v2433 = vadd.f32 %v2431, %v2432
    %v2434 = vtanh.pop %v2433
    %v2435 = vmul.f32 %v2430, %v2434
    %v2436 = vmax.f32 %v2212, %v2411
    %v2437 = vmax.f32 %v2213, %v2435
    %v2438 = vpack.c.bf16 %v2411, %v2411
    %2439 = vmatprep.subr.bf16.mxu0 %v849
    %2440 = vmatpush1.bf16.msra.mxu0 %v848
    %2441 = vmatprep.subr.bf16.mxu0 %v845
    %2442 = vmatpush1.bf16.msra.mxu0 %v844
    %2443 = vmatprep.subr.bf16.mxu0 %v841
    %2444 = vmatpush1.bf16.msra.mxu0 %v840
    %2445 = vmatprep.subr.bf16.mxu0 %v837
    %2446 = vmatpush1.bf16.msra.mxu0 %v836
    %2447 = vmatprep.subr.bf16.mxu0 %v833
    %2448 = vmatpush1.bf16.msra.mxu0 %v832
    %2449 = vmatprep.subr.bf16.mxu0 %v829
    %2450 = vmatpush1.bf16.msra.mxu0 %v828
    %2451 = vmatprep.subr.bf16.mxu0 %v825
    %2452 = vmatpush1.bf16.msra.mxu0 %v824
    %2453 = vmatprep.subr.bf16.mxu0 %v821
    %2454 = vmatpush1.bf16.msra.mxu0 %v820
    %2455 = vmatprep.subr.bf16.mxu0 0
    %2456 = vmatpush2.bf16.msra.mxu0 0
    %2457 = vmatprep.subr.bf16.mxu0 0
    %2458 = vmatpush2.bf16.msra.mxu0 0
    %2459 = vmatprep.subr.bf16.mxu0 0
    %2460 = vmatpush2.bf16.msra.mxu0 0
    %2461 = vmatprep.subr.bf16.mxu0 0
    %2462 = vmatpush2.bf16.msra.mxu0 0
    %2463 = vmatprep.subr.bf16.mxu0 0
    %2464 = vmatpush2.bf16.msra.mxu0 0
    %2465 = vmatprep.subr.bf16.mxu0 0
    %2466 = vmatpush2.bf16.msra.mxu0 0
    %2467 = vmatprep.subr.bf16.mxu0 0
    %2468 = vmatpush2.bf16.msra.mxu0 0
    %2469 = vmatprep.subr.bf16.mxu0 0
    %2470 = vmatpush2.bf16.msra.mxu0 0
    %2471 = vmatprep.mubr.bf16.mxu0 0
    %2472 = vmatmul.mubr.bf16.gmra.mxu0 %v2438
    %v2473 = vpop.f32.mrf.mxu0
    %v2474 = vadd.f32 0.0, %v2473
    %v2475 = vpop.f32.mrf.mxu0
    %v2476 = vadd.f32 0.0, %v2475
    %v2477 = vpop.f32.mrf.mxu0
    %v2478 = vpop.f32.mrf.mxu0
    %2479 = vdwg.mxu0
    %2480 = vmatprep.subr.bf16.mxu0 %v851
    %2481 = vmatpush1.bf16.msra.mxu0 %v850
    %2482 = vmatprep.subr.bf16.mxu0 %v847
    %2483 = vmatpush1.bf16.msra.mxu0 %v846
    %2484 = vmatprep.subr.bf16.mxu0 %v843
    %2485 = vmatpush1.bf16.msra.mxu0 %v842
    %2486 = vmatprep.subr.bf16.mxu0 %v839
    %2487 = vmatpush1.bf16.msra.mxu0 %v838
    %2488 = vmatprep.subr.bf16.mxu0 %v835
    %2489 = vmatpush1.bf16.msra.mxu0 %v834
    %2490 = vmatprep.subr.bf16.mxu0 %v831
    %2491 = vmatpush1.bf16.msra.mxu0 %v830
    %2492 = vmatprep.subr.bf16.mxu0 %v827
    %2493 = vmatpush1.bf16.msra.mxu0 %v826
    %2494 = vmatprep.subr.bf16.mxu0 %v823
    %2495 = vmatpush1.bf16.msra.mxu0 %v822
    %2496 = vmatprep.subr.bf16.mxu0 0
    %2497 = vmatpush2.bf16.msra.mxu0 0
    %2498 = vmatprep.subr.bf16.mxu0 0
    %2499 = vmatpush2.bf16.msra.mxu0 0
    %2500 = vmatprep.subr.bf16.mxu0 0
    %2501 = vmatpush2.bf16.msra.mxu0 0
    %2502 = vmatprep.subr.bf16.mxu0 0
    %2503 = vmatpush2.bf16.msra.mxu0 0
    %2504 = vmatprep.subr.bf16.mxu0 0
    %2505 = vmatpush2.bf16.msra.mxu0 0
    %2506 = vmatprep.subr.bf16.mxu0 0
    %2507 = vmatpush2.bf16.msra.mxu0 0
    %2508 = vmatprep.subr.bf16.mxu0 0
    %2509 = vmatpush2.bf16.msra.mxu0 0
    %2510 = vmatprep.subr.bf16.mxu0 0
    %2511 = vmatpush2.bf16.msra.mxu0 0
    %2512 = vmatprep.mubr.bf16.mxu0 0
    %2513 = vmatmul.mubr.bf16.gmra.mxu0 %v2438
    %v2514 = vpop.f32.mrf.mxu0
    %v2515 = vadd.f32 0.0, %v2514
    %v2516 = vpop.f32.mrf.mxu0
    %v2517 = vadd.f32 0.0, %v2516
    %v2518 = vpop.f32.mrf.mxu0
    %v2519 = vpop.f32.mrf.mxu0
    %2520 = vdwg.mxu0
    %v2521 = vadd.f32 %v1274, %v2474
    %v2522 = vadd.f32 %v1275, %v2476
    %v2523 = vadd.f32 %v1276, %v2515
    %v2524 = vadd.f32 %v1277, %v2517
    %v2525 = vpack.c.bf16 %v2435, %v2435
    %2526 = vmatprep.subr.bf16.mxu0 %v1095
    %2527 = vmatpush1.bf16.msra.mxu0 %v1094
    %2528 = vmatprep.subr.bf16.mxu0 %v1091
    %2529 = vmatpush1.bf16.msra.mxu0 %v1090
    %2530 = vmatprep.subr.bf16.mxu0 %v1087
    %2531 = vmatpush1.bf16.msra.mxu0 %v1086
    %2532 = vmatprep.subr.bf16.mxu0 %v1083
    %2533 = vmatpush1.bf16.msra.mxu0 %v1082
    %2534 = vmatprep.subr.bf16.mxu0 %v1079
    %2535 = vmatpush1.bf16.msra.mxu0 %v1078
    %2536 = vmatprep.subr.bf16.mxu0 %v1075
    %2537 = vmatpush1.bf16.msra.mxu0 %v1074
    %2538 = vmatprep.subr.bf16.mxu0 %v1071
    %2539 = vmatpush1.bf16.msra.mxu0 %v1070
    %2540 = vmatprep.subr.bf16.mxu0 %v1067
    %2541 = vmatpush1.bf16.msra.mxu0 %v1066
    %2542 = vmatprep.subr.bf16.mxu0 0
    %2543 = vmatpush2.bf16.msra.mxu0 0
    %2544 = vmatprep.subr.bf16.mxu0 0
    %2545 = vmatpush2.bf16.msra.mxu0 0
    %2546 = vmatprep.subr.bf16.mxu0 0
    %2547 = vmatpush2.bf16.msra.mxu0 0
    %2548 = vmatprep.subr.bf16.mxu0 0
    %2549 = vmatpush2.bf16.msra.mxu0 0
    %2550 = vmatprep.subr.bf16.mxu0 0
    %2551 = vmatpush2.bf16.msra.mxu0 0
    %2552 = vmatprep.subr.bf16.mxu0 0
    %2553 = vmatpush2.bf16.msra.mxu0 0
    %2554 = vmatprep.subr.bf16.mxu0 0
    %2555 = vmatpush2.bf16.msra.mxu0 0
    %2556 = vmatprep.subr.bf16.mxu0 0
    %2557 = vmatpush2.bf16.msra.mxu0 0
    %2558 = vmatprep.mubr.bf16.mxu0 0
    %2559 = vmatmul.mubr.bf16.gmra.mxu0 %v2525
    %v2560 = vpop.f32.mrf.mxu0
    %v2561 = vadd.f32 0.0, %v2560
    %v2562 = vpop.f32.mrf.mxu0
    %v2563 = vadd.f32 0.0, %v2562
    %v2564 = vpop.f32.mrf.mxu0
    %v2565 = vpop.f32.mrf.mxu0
    %2566 = vdwg.mxu0
    %2567 = vmatprep.subr.bf16.mxu0 %v1097
    %2568 = vmatpush1.bf16.msra.mxu0 %v1096
    %2569 = vmatprep.subr.bf16.mxu0 %v1093
    %2570 = vmatpush1.bf16.msra.mxu0 %v1092
    %2571 = vmatprep.subr.bf16.mxu0 %v1089
    %2572 = vmatpush1.bf16.msra.mxu0 %v1088
    %2573 = vmatprep.subr.bf16.mxu0 %v1085
    %2574 = vmatpush1.bf16.msra.mxu0 %v1084
    %2575 = vmatprep.subr.bf16.mxu0 %v1081
    %2576 = vmatpush1.bf16.msra.mxu0 %v1080
    %2577 = vmatprep.subr.bf16.mxu0 %v1077
    %2578 = vmatpush1.bf16.msra.mxu0 %v1076
    %2579 = vmatprep.subr.bf16.mxu0 %v1073
    %2580 = vmatpush1.bf16.msra.mxu0 %v1072
    %2581 = vmatprep.subr.bf16.mxu0 %v1069
    %2582 = vmatpush1.bf16.msra.mxu0 %v1068
    %2583 = vmatprep.subr.bf16.mxu0 0
    %2584 = vmatpush2.bf16.msra.mxu0 0
    %2585 = vmatprep.subr.bf16.mxu0 0
    %2586 = vmatpush2.bf16.msra.mxu0 0
    %2587 = vmatprep.subr.bf16.mxu0 0
    %2588 = vmatpush2.bf16.msra.mxu0 0
    %2589 = vmatprep.subr.bf16.mxu0 0
    %2590 = vmatpush2.bf16.msra.mxu0 0
    %2591 = vmatprep.subr.bf16.mxu0 0
    %2592 = vmatpush2.bf16.msra.mxu0 0
    %2593 = vmatprep.subr.bf16.mxu0 0
    %2594 = vmatpush2.bf16.msra.mxu0 0
    %2595 = vmatprep.subr.bf16.mxu0 0
    %2596 = vmatpush2.bf16.msra.mxu0 0
    %2597 = vmatprep.subr.bf16.mxu0 0
    %2598 = vmatpush2.bf16.msra.mxu0 0
    %2599 = vmatprep.mubr.bf16.mxu0 0
    %2600 = vmatmul.mubr.bf16.gmra.mxu0 %v2525
    %v2601 = vpop.f32.mrf.mxu0
    %v2602 = vadd.f32 0.0, %v2601
    %v2603 = vpop.f32.mrf.mxu0
    %v2604 = vadd.f32 0.0, %v2603
    %v2605 = vpop.f32.mrf.mxu0
    %v2606 = vpop.f32.mrf.mxu0
    %2607 = vdwg.mxu0
    %v2608 = vadd.f32 %v1269, %v2561
    %v2609 = vadd.f32 %v1270, %v2563
    %v2610 = vadd.f32 %v1271, %v2602
    %v2611 = vadd.f32 %v1272, %v2604
    %v2612 = vxor.u32 %v2521, 2147483648
    %v2613 = vmul.f32 %v2612, 1.442695
    %v2614 = vpow.pop %v2613
    %v2615 = vadd.f32 %v2614, 1.0
    %v2616 = vrcp.pop %v2615
    %v2617 = vmul.f32 1.0, %v2616
    %v2618 = vxor.u32 %v2522, 2147483648
    %v2619 = vmul.f32 %v2618, 1.442695
    %v2620 = vpow.pop %v2619
    %v2621 = vadd.f32 %v2620, 1.0
    %v2622 = vrcp.pop %v2621
    %v2623 = vmul.f32 1.0, %v2622
    %v2624 = vtanh.pop %v2523
    %v2625 = vxor.u32 %v2524, 2147483648
    %v2626 = vmul.f32 %v2625, 1.442695
    %v2627 = vpow.pop %v2626
    %v2628 = vadd.f32 %v2627, 1.0
    %v2629 = vrcp.pop %v2628
    %v2630 = vmul.f32 1.0, %v2629
    %v2631 = vmul.f32 %v2623, %v2409
    %v2632 = vmul.f32 %v2617, %v2624
    %v2633 = vadd.f32 %v2631, %v2632
    %v2634 = vtanh.pop %v2633
    %v2635 = vmul.f32 %v2630, %v2634
    %v2636 = vxor.u32 %v2608, 2147483648
    %v2637 = vmul.f32 %v2636, 1.442695
    %v2638 = vpow.pop %v2637
    %v2639 = vadd.f32 %v2638, 1.0
    %v2640 = vrcp.pop %v2639
    %v2641 = vmul.f32 1.0, %v2640
    %v2642 = vxor.u32 %v2609, 2147483648
    %v2643 = vmul.f32 %v2642, 1.442695
    %v2644 = vpow.pop %v2643
    %v2645 = vadd.f32 %v2644, 1.0
    %v2646 = vrcp.pop %v2645
    %v2647 = vmul.f32 1.0, %v2646
    %v2648 = vtanh.pop %v2610
    %v2649 = vxor.u32 %v2611, 2147483648
    %v2650 = vmul.f32 %v2649, 1.442695
    %v2651 = vpow.pop %v2650
    %v2652 = vadd.f32 %v2651, 1.0
    %v2653 = vrcp.pop %v2652
    %v2654 = vmul.f32 1.0, %v2653
    %v2655 = vmul.f32 %v2647, %v2433
    %v2656 = vmul.f32 %v2641, %v2648
    %v2657 = vadd.f32 %v2655, %v2656
    %v2658 = vtanh.pop %v2657
    %v2659 = vmul.f32 %v2654, %v2658
    %v2660 = vmax.f32 %v2436, %v2635
    %v2661 = vmax.f32 %v2437, %v2659
    %v2662 = vpack.c.bf16 %v2635, %v2635
    %2663 = vmatprep.subr.bf16.mxu0 %v849
    %2664 = vmatpush1.bf16.msra.mxu0 %v848
    %2665 = vmatprep.subr.bf16.mxu0 %v845
    %2666 = vmatpush1.bf16.msra.mxu0 %v844
    %2667 = vmatprep.subr.bf16.mxu0 %v841
    %2668 = vmatpush1.bf16.msra.mxu0 %v840
    %2669 = vmatprep.subr.bf16.mxu0 %v837
    %2670 = vmatpush1.bf16.msra.mxu0 %v836
    %2671 = vmatprep.subr.bf16.mxu0 %v833
    %2672 = vmatpush1.bf16.msra.mxu0 %v832
    %2673 = vmatprep.subr.bf16.mxu0 %v829
    %2674 = vmatpush1.bf16.msra.mxu0 %v828
    %2675 = vmatprep.subr.bf16.mxu0 %v825
    %2676 = vmatpush1.bf16.msra.mxu0 %v824
    %2677 = vmatprep.subr.bf16.mxu0 %v821
    %2678 = vmatpush1.bf16.msra.mxu0 %v820
    %2679 = vmatprep.subr.bf16.mxu0 0
    %2680 = vmatpush2.bf16.msra.mxu0 0
    %2681 = vmatprep.subr.bf16.mxu0 0
    %2682 = vmatpush2.bf16.msra.mxu0 0
    %2683 = vmatprep.subr.bf16.mxu0 0
    %2684 = vmatpush2.bf16.msra.mxu0 0
    %2685 = vmatprep.subr.bf16.mxu0 0
    %2686 = vmatpush2.bf16.msra.mxu0 0
    %2687 = vmatprep.subr.bf16.mxu0 0
    %2688 = vmatpush2.bf16.msra.mxu0 0
    %2689 = vmatprep.subr.bf16.mxu0 0
    %2690 = vmatpush2.bf16.msra.mxu0 0
    %2691 = vmatprep.subr.bf16.mxu0 0
    %2692 = vmatpush2.bf16.msra.mxu0 0
    %2693 = vmatprep.subr.bf16.mxu0 0
    %2694 = vmatpush2.bf16.msra.mxu0 0
    %2695 = vmatprep.mubr.bf16.mxu0 0
    %2696 = vmatmul.mubr.bf16.gmra.mxu0 %v2662
    %v2697 = vpop.f32.mrf.mxu0
    %v2698 = vadd.f32 0.0, %v2697
    %v2699 = vpop.f32.mrf.mxu0
    %v2700 = vadd.f32 0.0, %v2699
    %v2701 = vpop.f32.mrf.mxu0
    %v2702 = vpop.f32.mrf.mxu0
    %2703 = vdwg.mxu0
    %2704 = vmatprep.subr.bf16.mxu0 %v851
    %2705 = vmatpush1.bf16.msra.mxu0 %v850
    %2706 = vmatprep.subr.bf16.mxu0 %v847
    %2707 = vmatpush1.bf16.msra.mxu0 %v846
    %2708 = vmatprep.subr.bf16.mxu0 %v843
    %2709 = vmatpush1.bf16.msra.mxu0 %v842
    %2710 = vmatprep.subr.bf16.mxu0 %v839
    %2711 = vmatpush1.bf16.msra.mxu0 %v838
    %2712 = vmatprep.subr.bf16.mxu0 %v835
    %2713 = vmatpush1.bf16.msra.mxu0 %v834
    %2714 = vmatprep.subr.bf16.mxu0 %v831
    %2715 = vmatpush1.bf16.msra.mxu0 %v830
    %2716 = vmatprep.subr.bf16.mxu0 %v827
    %2717 = vmatpush1.bf16.msra.mxu0 %v826
    %2718 = vmatprep.subr.bf16.mxu0 %v823
    %2719 = vmatpush1.bf16.msra.mxu0 %v822
    %2720 = vmatprep.subr.bf16.mxu0 0
    %2721 = vmatpush2.bf16.msra.mxu0 0
    %2722 = vmatprep.subr.bf16.mxu0 0
    %2723 = vmatpush2.bf16.msra.mxu0 0
    %2724 = vmatprep.subr.bf16.mxu0 0
    %2725 = vmatpush2.bf16.msra.mxu0 0
    %2726 = vmatprep.subr.bf16.mxu0 0
    %2727 = vmatpush2.bf16.msra.mxu0 0
    %2728 = vmatprep.subr.bf16.mxu0 0
    %2729 = vmatpush2.bf16.msra.mxu0 0
    %2730 = vmatprep.subr.bf16.mxu0 0
    %2731 = vmatpush2.bf16.msra.mxu0 0
    %2732 = vmatprep.subr.bf16.mxu0 0
    %2733 = vmatpush2.bf16.msra.mxu0 0
    %2734 = vmatprep.subr.bf16.mxu0 0
    %2735 = vmatpush2.bf16.msra.mxu0 0
    %2736 = vmatprep.mubr.bf16.mxu0 0
    %2737 = vmatmul.mubr.bf16.gmra.mxu0 %v2662
    %v2738 = vpop.f32.mrf.mxu0
    %v2739 = vadd.f32 0.0, %v2738
    %v2740 = vpop.f32.mrf.mxu0
    %v2741 = vadd.f32 0.0, %v2740
    %v2742 = vpop.f32.mrf.mxu0
    %v2743 = vpop.f32.mrf.mxu0
    %2744 = vdwg.mxu0
    %v2745 = vadd.f32 %v716, %v2698
    %v2746 = vadd.f32 %v717, %v2700
    %v2747 = vadd.f32 %v718, %v2739
    %v2748 = vadd.f32 %v719, %v2741
    %v2749 = vpack.c.bf16 %v2659, %v2659
    %2750 = vmatprep.subr.bf16.mxu0 %v1095
    %2751 = vmatpush1.bf16.msra.mxu0 %v1094
    %2752 = vmatprep.subr.bf16.mxu0 %v1091
    %2753 = vmatpush1.bf16.msra.mxu0 %v1090
    %2754 = vmatprep.subr.bf16.mxu0 %v1087
    %2755 = vmatpush1.bf16.msra.mxu0 %v1086
    %2756 = vmatprep.subr.bf16.mxu0 %v1083
    %2757 = vmatpush1.bf16.msra.mxu0 %v1082
    %2758 = vmatprep.subr.bf16.mxu0 %v1079
    %2759 = vmatpush1.bf16.msra.mxu0 %v1078
    %2760 = vmatprep.subr.bf16.mxu0 %v1075
    %2761 = vmatpush1.bf16.msra.mxu0 %v1074
    %2762 = vmatprep.subr.bf16.mxu0 %v1071
    %2763 = vmatpush1.bf16.msra.mxu0 %v1070
    %2764 = vmatprep.subr.bf16.mxu0 %v1067
    %2765 = vmatpush1.bf16.msra.mxu0 %v1066
    %2766 = vmatprep.subr.bf16.mxu0 0
    %2767 = vmatpush2.bf16.msra.mxu0 0
    %2768 = vmatprep.subr.bf16.mxu0 0
    %2769 = vmatpush2.bf16.msra.mxu0 0
    %2770 = vmatprep.subr.bf16.mxu0 0
    %2771 = vmatpush2.bf16.msra.mxu0 0
    %2772 = vmatprep.subr.bf16.mxu0 0
    %2773 = vmatpush2.bf16.msra.mxu0 0
    %2774 = vmatprep.subr.bf16.mxu0 0
    %2775 = vmatpush2.bf16.msra.mxu0 0
    %2776 = vmatprep.subr.bf16.mxu0 0
    %2777 = vmatpush2.bf16.msra.mxu0 0
    %2778 = vmatprep.subr.bf16.mxu0 0
    %2779 = vmatpush2.bf16.msra.mxu0 0
    %2780 = vmatprep.subr.bf16.mxu0 0
    %2781 = vmatpush2.bf16.msra.mxu0 0
    %2782 = vmatprep.mubr.bf16.mxu0 0
    %2783 = vmatmul.mubr.bf16.gmra.mxu0 %v2749
    %v2784 = vpop.f32.mrf.mxu0
    %v2785 = vadd.f32 0.0, %v2784
    %v2786 = vpop.f32.mrf.mxu0
    %v2787 = vadd.f32 0.0, %v2786
    %v2788 = vpop.f32.mrf.mxu0
    %v2789 = vpop.f32.mrf.mxu0
    %2790 = vdwg.mxu0
    %2791 = vmatprep.subr.bf16.mxu0 %v1097
    %2792 = vmatpush1.bf16.msra.mxu0 %v1096
    %2793 = vmatprep.subr.bf16.mxu0 %v1093
    %2794 = vmatpush1.bf16.msra.mxu0 %v1092
    %2795 = vmatprep.subr.bf16.mxu0 %v1089
    %2796 = vmatpush1.bf16.msra.mxu0 %v1088
    %2797 = vmatprep.subr.bf16.mxu0 %v1085
    %2798 = vmatpush1.bf16.msra.mxu0 %v1084
    %2799 = vmatprep.subr.bf16.mxu0 %v1081
    %2800 = vmatpush1.bf16.msra.mxu0 %v1080
    %2801 = vmatprep.subr.bf16.mxu0 %v1077
    %2802 = vmatpush1.bf16.msra.mxu0 %v1076
    %2803 = vmatprep.subr.bf16.mxu0 %v1073
    %2804 = vmatpush1.bf16.msra.mxu0 %v1072
    %2805 = vmatprep.subr.bf16.mxu0 %v1069
    %2806 = vmatpush1.bf16.msra.mxu0 %v1068
    %2807 = vmatprep.subr.bf16.mxu0 0
    %2808 = vmatpush2.bf16.msra.mxu0 0
    %2809 = vmatprep.subr.bf16.mxu0 0
    %2810 = vmatpush2.bf16.msra.mxu0 0
    %2811 = vmatprep.subr.bf16.mxu0 0
    %2812 = vmatpush2.bf16.msra.mxu0 0
    %2813 = vmatprep.subr.bf16.mxu0 0
    %2814 = vmatpush2.bf16.msra.mxu0 0
    %2815 = vmatprep.subr.bf16.mxu0 0
    %2816 = vmatpush2.bf16.msra.mxu0 0
    %2817 = vmatprep.subr.bf16.mxu0 0
    %2818 = vmatpush2.bf16.msra.mxu0 0
    %2819 = vmatprep.subr.bf16.mxu0 0
    %2820 = vmatpush2.bf16.msra.mxu0 0
    %2821 = vmatprep.subr.bf16.mxu0 0
    %2822 = vmatpush2.bf16.msra.mxu0 0
    %2823 = vmatprep.mubr.bf16.mxu0 0
    %2824 = vmatmul.mubr.bf16.gmra.mxu0 %v2749
    %v2825 = vpop.f32.mrf.mxu0
    %v2826 = vadd.f32 0.0, %v2825
    %v2827 = vpop.f32.mrf.mxu0
    %v2828 = vadd.f32 0.0, %v2827
    %v2829 = vpop.f32.mrf.mxu0
    %v2830 = vpop.f32.mrf.mxu0
    %2831 = vdwg.mxu0
    %v2832 = vadd.f32 %v711, %v2785
    %v2833 = vadd.f32 %v712, %v2787
    %v2834 = vadd.f32 %v713, %v2826
    %v2835 = vadd.f32 %v714, %v2828
    %v2836 = vxor.u32 %v2745, 2147483648
    %v2837 = vmul.f32 %v2836, 1.442695
    %v2838 = vpow.pop %v2837
    %v2839 = vadd.f32 %v2838, 1.0
    %v2840 = vrcp.pop %v2839
    %v2841 = vmul.f32 1.0, %v2840
    %v2842 = vxor.u32 %v2746, 2147483648
    %v2843 = vmul.f32 %v2842, 1.442695
    %v2844 = vpow.pop %v2843
    %v2845 = vadd.f32 %v2844, 1.0
    %v2846 = vrcp.pop %v2845
    %v2847 = vmul.f32 1.0, %v2846
    %v2848 = vtanh.pop %v2747
    %v2849 = vxor.u32 %v2748, 2147483648
    %v2850 = vmul.f32 %v2849, 1.442695
    %v2851 = vpow.pop %v2850
    %v2852 = vadd.f32 %v2851, 1.0
    %v2853 = vrcp.pop %v2852
    %v2854 = vmul.f32 1.0, %v2853
    %v2855 = vmul.f32 %v2847, %v2633
    %v2856 = vmul.f32 %v2841, %v2848
    %v2857 = vadd.f32 %v2855, %v2856
    %v2858 = vtanh.pop %v2857
    %v2859 = vmul.f32 %v2854, %v2858
    %v2860 = vxor.u32 %v2832, 2147483648
    %v2861 = vmul.f32 %v2860, 1.442695
    %v2862 = vpow.pop %v2861
    %v2863 = vadd.f32 %v2862, 1.0
    %v2864 = vrcp.pop %v2863
    %v2865 = vmul.f32 1.0, %v2864
    %v2866 = vxor.u32 %v2833, 2147483648
    %v2867 = vmul.f32 %v2866, 1.442695
    %v2868 = vpow.pop %v2867
    %v2869 = vadd.f32 %v2868, 1.0
    %v2870 = vrcp.pop %v2869
    %v2871 = vmul.f32 1.0, %v2870
    %v2872 = vtanh.pop %v2834
    %v2873 = vxor.u32 %v2835, 2147483648
    %v2874 = vmul.f32 %v2873, 1.442695
    %v2875 = vpow.pop %v2874
    %v2876 = vadd.f32 %v2875, 1.0
    %v2877 = vrcp.pop %v2876
    %v2878 = vmul.f32 1.0, %v2877
    %v2879 = vmul.f32 %v2871, %v2657
    %v2880 = vmul.f32 %v2865, %v2872
    %v2881 = vadd.f32 %v2879, %v2880
    %v2882 = vtanh.pop %v2881
    %v2883 = vmul.f32 %v2878, %v2882
    %v2884 = vmax.f32 %v2660, %v2859
    %v2885 = vmax.f32 %v2661, %v2883
    %v2886 = vpack.c.bf16 %v2884, %v2884
    %v2887 = vld [vmem:[#allocation12] sm:$0xf]
    %v2888 = vld [vmem:[#allocation12 + $0x4] sm:$0xf]
    %v2889 = vld [vmem:[#allocation12 + $0x8] sm:$0xf]
    %v2890 = vld [vmem:[#allocation12 + $0xc] sm:$0xf]
    %v2891 = vld [vmem:[#allocation12 + $0x10] sm:$0xf]
    %v2892 = vld [vmem:[#allocation12 + $0x14] sm:$0xf]
    %v2893 = vld [vmem:[#allocation12 + $0x18] sm:$0xf]
    %v2894 = vld [vmem:[#allocation12 + $0x1c] sm:$0xf]
    %v2895 = vld [vmem:[#allocation12 + $0x20] sm:$0xf]
    %v2896 = vld [vmem:[#allocation12 + $0x24] sm:$0xf]
    %v2897 = vld [vmem:[#allocation12 + $0x28] sm:$0xf]
    %v2898 = vld [vmem:[#allocation12 + $0x2c] sm:$0xf]
    %v2899 = vld [vmem:[#allocation12 + $0x30] sm:$0xf]
    %v2900 = vld [vmem:[#allocation12 + $0x34] sm:$0xf]
    %v2901 = vld [vmem:[#allocation12 + $0x38] sm:$0xf]
    %v2902 = vld [vmem:[#allocation12 + $0x3c] sm:$0xf]
    %v2903 = vpack.c.bf16 %v2885, %v2885
    %v2904 = vld [vmem:[#allocation14] sm:$0xf]
    %v2905 = vld [vmem:[#allocation14 + $0x4] sm:$0xf]
    %v2906 = vld [vmem:[#allocation14 + $0x8] sm:$0xf]
    %v2907 = vld [vmem:[#allocation14 + $0xc] sm:$0xf]
    %v2908 = vld [vmem:[#allocation14 + $0x10] sm:$0xf]
    %v2909 = vld [vmem:[#allocation14 + $0x14] sm:$0xf]
    %v2910 = vld [vmem:[#allocation14 + $0x18] sm:$0xf]
    %v2911 = vld [vmem:[#allocation14 + $0x1c] sm:$0xf]
    %v2912 = vld [vmem:[#allocation14 + $0x20] sm:$0xf]
    %v2913 = vld [vmem:[#allocation14 + $0x24] sm:$0xf]
    %v2914 = vld [vmem:[#allocation14 + $0x28] sm:$0xf]
    %v2915 = vld [vmem:[#allocation14 + $0x2c] sm:$0xf]
    %v2916 = vld [vmem:[#allocation14 + $0x30] sm:$0xf]
    %v2917 = vld [vmem:[#allocation14 + $0x34] sm:$0xf]
    %v2918 = vld [vmem:[#allocation14 + $0x38] sm:$0xf]
    %v2919 = vld [vmem:[#allocation14 + $0x3c] sm:$0xf]
    %v2936 = vunpack.c.l.b16 %v2904
    %v2937 = vunpack.c.l.b16 %v2905
    %v2938 = vunpack.c.l.b16 %v2906
    %v2939 = vunpack.c.l.b16 %v2907
    %v2940 = vunpack.c.l.b16 %v2908
    %v2941 = vunpack.c.l.b16 %v2909
    %v2942 = vunpack.c.l.b16 %v2910
    %v2943 = vunpack.c.l.b16 %v2911
    %v2944 = vunpack.c.l.b16 %v2912
    %v2945 = vunpack.c.l.b16 %v2913
    %v2946 = vunpack.c.l.b16 %v2914
    %v2947 = vunpack.c.l.b16 %v2915
    %v2948 = vunpack.c.l.b16 %v2916
    %v2949 = vunpack.c.l.b16 %v2917
    %v2950 = vunpack.c.l.b16 %v2918
    %v2951 = vunpack.c.l.b16 %v2919
    %v2952 = vpack.c.b16 %v2937, %v2936
    %v2953 = vpack.c.b16 %v2939, %v2938
    %v2954 = vpack.c.b16 %v2941, %v2940
    %v2955 = vpack.c.b16 %v2943, %v2942
    %v2956 = vpack.c.b16 %v2945, %v2944
    %v2957 = vpack.c.b16 %v2947, %v2946
    %v2958 = vpack.c.b16 %v2949, %v2948
    %v2959 = vpack.c.b16 %v2951, %v2950
    %2968 = vmatprep.subr.bf16.mxu0 0
    %2969 = vmatpush1.bf16.msra.mxu0 %v2959
    %2970 = vmatprep.subr.bf16.mxu0 0
    %2971 = vmatpush1.bf16.msra.mxu0 %v2958
    %2972 = vmatprep.subr.bf16.mxu0 0
    %2973 = vmatpush1.bf16.msra.mxu0 %v2957
    %2974 = vmatprep.subr.bf16.mxu0 0
    %2975 = vmatpush1.bf16.msra.mxu0 %v2956
    %2976 = vmatprep.subr.bf16.mxu0 0
    %2977 = vmatpush1.bf16.msra.mxu0 %v2955
    %2978 = vmatprep.subr.bf16.mxu0 0
    %2979 = vmatpush1.bf16.msra.mxu0 %v2954
    %2980 = vmatprep.subr.bf16.mxu0 0
    %2981 = vmatpush1.bf16.msra.mxu0 %v2953
    %2982 = vmatprep.subr.bf16.mxu0 0
    %2983 = vmatpush1.bf16.msra.mxu0 %v2952
    %2984 = vmatprep.subr.bf16.mxu0 0
    %2985 = vmatpush2.bf16.msra.mxu0 0
    %2986 = vmatprep.subr.bf16.mxu0 0
    %2987 = vmatpush2.bf16.msra.mxu0 0
    %2988 = vmatprep.subr.bf16.mxu0 0
    %2989 = vmatpush2.bf16.msra.mxu0 0
    %2990 = vmatprep.subr.bf16.mxu0 0
    %2991 = vmatpush2.bf16.msra.mxu0 0
    %2992 = vmatprep.subr.bf16.mxu0 0
    %2993 = vmatpush2.bf16.msra.mxu0 0
    %2994 = vmatprep.subr.bf16.mxu0 0
    %2995 = vmatpush2.bf16.msra.mxu0 0
    %2996 = vmatprep.subr.bf16.mxu0 0
    %2997 = vmatpush2.bf16.msra.mxu0 0
    %2998 = vmatprep.subr.bf16.mxu0 0
    %2999 = vmatpush2.bf16.msra.mxu0 0
    %3000 = vmatprep.mubr.bf16.mxu0 0
    %3001 = vmatmul.mubr.bf16.gmra.mxu0 %v2903
    %v3002 = vpop.f32.mrf.mxu0
    %v3003 = vadd.f32 0.0, %v3002
    %v3004 = vpop.f32.mrf.mxu0
    %v3005 = vpop.f32.mrf.mxu0
    %v3006 = vpop.f32.mrf.mxu0
    %3007 = vdwg.mxu0
    %v3024 = vunpack.c.l.b16 %v2887
    %v3025 = vunpack.c.l.b16 %v2888
    %v3026 = vunpack.c.l.b16 %v2889
    %v3027 = vunpack.c.l.b16 %v2890
    %v3028 = vunpack.c.l.b16 %v2891
    %v3029 = vunpack.c.l.b16 %v2892
    %v3030 = vunpack.c.l.b16 %v2893
    %v3031 = vunpack.c.l.b16 %v2894
    %v3032 = vunpack.c.l.b16 %v2895
    %v3033 = vunpack.c.l.b16 %v2896
    %v3034 = vunpack.c.l.b16 %v2897
    %v3035 = vunpack.c.l.b16 %v2898
    %v3036 = vunpack.c.l.b16 %v2899
    %v3037 = vunpack.c.l.b16 %v2900
    %v3038 = vunpack.c.l.b16 %v2901
    %v3039 = vunpack.c.l.b16 %v2902
    %v3040 = vpack.c.b16 %v3025, %v3024
    %v3041 = vpack.c.b16 %v3027, %v3026
    %v3042 = vpack.c.b16 %v3029, %v3028
    %v3043 = vpack.c.b16 %v3031, %v3030
    %v3044 = vpack.c.b16 %v3033, %v3032
    %v3045 = vpack.c.b16 %v3035, %v3034
    %v3046 = vpack.c.b16 %v3037, %v3036
    %v3047 = vpack.c.b16 %v3039, %v3038
    %3056 = vmatprep.subr.bf16.mxu0 0
    %3057 = vmatpush1.bf16.msra.mxu0 %v3047
    %3058 = vmatprep.subr.bf16.mxu0 0
    %3059 = vmatpush1.bf16.msra.mxu0 %v3046
    %3060 = vmatprep.subr.bf16.mxu0 0
    %3061 = vmatpush1.bf16.msra.mxu0 %v3045
    %3062 = vmatprep.subr.bf16.mxu0 0
    %3063 = vmatpush1.bf16.msra.mxu0 %v3044
    %3064 = vmatprep.subr.bf16.mxu0 0
    %3065 = vmatpush1.bf16.msra.mxu0 %v3043
    %3066 = vmatprep.subr.bf16.mxu0 0
    %3067 = vmatpush1.bf16.msra.mxu0 %v3042
    %3068 = vmatprep.subr.bf16.mxu0 0
    %3069 = vmatpush1.bf16.msra.mxu0 %v3041
    %3070 = vmatprep.subr.bf16.mxu0 0
    %3071 = vmatpush1.bf16.msra.mxu0 %v3040
    %3072 = vmatprep.subr.bf16.mxu0 0
    %3073 = vmatpush2.bf16.msra.mxu0 0
    %3074 = vmatprep.subr.bf16.mxu0 0
    %3075 = vmatpush2.bf16.msra.mxu0 0
    %3076 = vmatprep.subr.bf16.mxu0 0
    %3077 = vmatpush2.bf16.msra.mxu0 0
    %3078 = vmatprep.subr.bf16.mxu0 0
    %3079 = vmatpush2.bf16.msra.mxu0 0
    %3080 = vmatprep.subr.bf16.mxu0 0
    %3081 = vmatpush2.bf16.msra.mxu0 0
    %3082 = vmatprep.subr.bf16.mxu0 0
    %3083 = vmatpush2.bf16.msra.mxu0 0
    %3084 = vmatprep.subr.bf16.mxu0 0
    %3085 = vmatpush2.bf16.msra.mxu0 0
    %3086 = vmatprep.subr.bf16.mxu0 0
    %3087 = vmatpush2.bf16.msra.mxu0 0
    %3088 = vmatprep.mubr.bf16.mxu0 0
    %3089 = vmatmul.mubr.bf16.gmra.mxu0 %v2886
    %v3090 = vpop.f32.mrf.mxu0
    %v3091 = vadd.f32 %v3003, %v3090
    %v3092 = vpop.f32.mrf.mxu0
    %v3093 = vpop.f32.mrf.mxu0
    %v3094 = vpop.f32.mrf.mxu0
    %3095 = vdwg.mxu0
    %v3096 = vld [vmem:[%s7] sm:$0x1]
    %v3098 = vlaneseq
    %v3099 = vshrl.u32 %v3098, 7
    %v3100 = vsub.s32 0, %v3099
    %v3101 = vrot.slane %v3096, %v3100
    %v3103 = vadd.f32 %v3091, %v3101
    %3104 = vst [vmem:[#allocation15] sm:$0xff] %v3103
    // Predicated region
    $region62: #{tpu_custom_call.1} parent=1 // pred_check
      _
    $region63: #{tpu_custom_call.1} parent=1 // pred_check_branch
      %3106 = sbr.rel (0) target = $region65
    $region64: #{tpu_custom_call.1} parent=1 // pred_region
      %s3108 = ssub.s32 128, 128
      %3109 = vsyncadd [#allocation5], %s3108
      %s3111 = sshll.u32 [#allocation15], 4
      %s3112 = int_to_ptr.vmem [resolvable:$true] %s3111
      %3114 = dma.vmem_to_hbm [thread:$0]  %s3112, 128, %s8, [#allocation5]
    $region65: #{tpu_custom_call.1} parent=1 // pred_fallthru
      _
    // Predicated region
    $region66: #{tpu_custom_call.1} parent=1 // pred_check
      _
    $region67: #{tpu_custom_call.1} parent=1 // pred_check_branch
      %3116 = sbr.rel (0) target = $region69
    $region68: #{tpu_custom_call.1} parent=1 // pred_region
      %3117 = dma.done [#allocation5], 128
    $region69: #{tpu_custom_call.1} parent=1 // pred_fallthru
      _
    %3118 = vsyncpa [#allocation4], 1
    %3119 = vsyncpa [#allocation7], 1
    %3120 = vsyncpa [#allocation10], 1
    %3121 = vsyncpa [#allocation13], 1
    %3122 = vsyncpa [#allocation5], 1

</llo_original>
